<compile_context>
chip_gen: v7x
topology: tpu7x:2x2x1
jax: 0.10.0
libtpu: 0.0.40
codegen_flags: <defaults>
</compile_context>

<pallas_src>
import jax
import jax.numpy as jnp
from jax.experimental import pallas as pl
from jax.experimental.pallas import tpu as pltpu

# ----------------------------- hyper-parameters -----------------------------
B = 2            # batch
IMG = 32         # square image size
CIN = 3          # input channels
STRIDE = 4       # backbone downsample (feature_to_image_scale = 1/4)
FH = FW = IMG // STRIDE          # feature map spatial = 8
CFEAT = 64                        # backbone feature channels
HID_RPN = 128                     # hidden_dim_rpn (scaled down)
HID_CLS = 128                     # hidden_dim_class (scaled down)
N_LABELS = 4
N_CLS = N_LABELS + 1              # + background
A = 9                             # anchors per location (3 scales x 3 ratios)
NA = FH * FW * A                  # 576 anchors per image
TOP_N = 16                        # proposals kept per image
ROI = 2                           # roi_size
G = 2                             # ground-truth boxes per image
POS_T = 0.68
NEG_T = 0.3
FG_T = 0.5
LOSS_SCALE = 1.0
FEAT_SCALE = 1.0 / STRIDE

K_BB = CIN * 9                    # 27 — backbone im2col K
K_BB_PAD = 32                     # padded K (multiple of bf16 sublane pack)
HEAD_N = 128                      # fused head output padded to lane-dense 128
M_ROI = B * TOP_N                 # 32 classifier rows

# lane-dense loss slab reshapes hard-code these divisibilities
assert (B * NA) % 128 == 0 and (B * NA * 4) % 128 == 0

_VMEM = pltpu.MemorySpace.VMEM
_SMEM = pltpu.MemorySpace.SMEM


# ============================ Pallas kernels ================================
def _bbrpn_kernel(patch_ref, bbw_ref, bbb_ref, rpnw_ref, rpnb_ref, hdw_ref, hdb_ref,
                  head_ref, feat_ref, fpad_ref):
    """Backbone conv + RPN 3x3 hidden conv (9 shifted matmuls) + fused obj/delta head."""
    # backbone: relu(patches @ bb_w + bb_b), f32 accumulation
    f = jnp.dot(patch_ref[...], bbw_ref[...], preferred_element_type=jnp.float32)
    f = jnp.maximum(f + bbb_ref[...], 0.0)                      # (B*FH*FW, CFEAT) f32
    feat_ref[...] = f.astype(feat_ref.dtype)                    # bf16 feature map (ROI pool)

    # zero-padded (pad=1 halo) feature scratch for the in-kernel 3x3 conv
    fpad_ref[...] = jnp.zeros(fpad_ref.shape, fpad_ref.dtype)
    fpad_ref[:, 1:FH + 1, 1:FW + 1, :] = f.reshape(B, FH, FW, CFEAT)

    # RPN hidden conv = sum over the 9 kernel taps of (shifted features) @ (weight slice)
    acc = jnp.zeros((B * FH * FW, HID_RPN), jnp.float32)
    for ky in range(3):
        for kx in range(3):
            k = ky * 3 + kx
            sl = fpad_ref[:, ky:ky + FH, kx:kx + FW, :].reshape(B * FH * FW, CFEAT)
            acc += jnp.dot(sl.astype(jnp.bfloat16),
                           rpnw_ref[k * CFEAT:(k + 1) * CFEAT, :],
                           preferred_element_type=jnp.float32)
    h = jnp.maximum(acc + rpnb_ref[...], 0.0).astype(jnp.bfloat16)

    # fused head: [objectness (A) | box deltas (4A) | zero pad] -> 128 lanes
    head_ref[...] = (jnp.dot(h, hdw_ref[...], preferred_element_type=jnp.float32)
                     + hdb_ref[...])


def _cls_loss_kernel(roi_ref, w1_ref, b1_ref, w2_ref, b2_ref,
                     rpn_cls_ref, rpn_box_ref, aux_ref, o_ref):
    """Classifier MLP + fused class/box head + all four losses -> single SMEM scalar."""
    # classifier: relu(roi @ w1 + b1) @ w2 + b2   (f32 accumulation)
    h = jnp.dot(roi_ref[...], w1_ref[...], preferred_element_type=jnp.float32)
    h = jnp.maximum(h + b1_ref[...], 0.0).astype(jnp.bfloat16)
    out = (jnp.dot(h, w2_ref[...], preferred_element_type=jnp.float32)
           + b2_ref[...])                                        # (M_ROI, 128)

    # --- RPN objectness: masked BCE-with-logits / n_cls ---
    x = rpn_cls_ref[0]
    y = rpn_cls_ref[1]
    cm = rpn_cls_ref[2]
    bce = jnp.maximum(x, 0.0) - x * y + jnp.log(1.0 + jnp.exp(-jnp.abs(x)))
    n_cls = jnp.maximum(jnp.sum(cm), 1.0)
    rpn_cls_loss = jnp.sum(bce * cm) / n_cls

    # --- RPN box regression: masked smooth-L1 / n_pos ---
    d = jnp.abs(rpn_box_ref[0] - rpn_box_ref[1])
    pm = rpn_box_ref[2]
    l1_rpn = jnp.sum(jnp.where(d < 1.0, 0.5 * d * d, d - 0.5) * pm)
    n_pos = jnp.maximum(0.25 * jnp.sum(pm), 1.0)      # mask repeated 4x per anchor
    rpn_box_loss = l1_rpn / (4.0 * n_pos)

    # --- classifier CE over the first N_CLS logit columns of `out` ---
    col = jax.lax.broadcasted_iota(jnp.int32, (M_ROI, HEAD_N), 1)
    logit = jnp.where(col < N_CLS, out, -1e30)
    mx = jnp.max(logit, axis=-1, keepdims=True)
    lse = mx + jnp.log(jnp.sum(jnp.exp(logit - mx), axis=-1, keepdims=True))
    picked = jnp.sum(aux_ref[0] * out, axis=-1, keepdims=True)   # onehot pick (cols < N_CLS)
    ce_loss = jnp.sum(lse - picked) / float(M_ROI)

    # --- classifier box regression: fg*onehot-masked smooth-L1 over cols N_CLS:5*N_CLS ---
    dc = jnp.abs(out - aux_ref[2])
    fm = aux_ref[1]
    l1_cls = jnp.sum(jnp.where(dc < 1.0, 0.5 * dc * dc, dc - 0.5) * fm)
    n_fg = jnp.maximum(0.25 * jnp.sum(fm), 1.0)
    cls_box_loss = l1_cls / (4.0 * n_fg)

    o_ref[0, 0] = LOSS_SCALE * (rpn_cls_loss + rpn_box_loss + ce_loss + cls_box_loss)


# ============================== JAX glue ====================================
def im2col3x3(x, stride, out_hw):
    """x: [B,H,W,C] (pad=1, 3x3 kernel) -> [B,out_hw,out_hw,9*C]."""
    xp = jnp.pad(x, ((0, 0), (1, 1), (1, 1), (0, 0)))
    cols = []
    for ky in range(3):
        for kx in range(3):
            cols.append(xp[:, ky::stride, kx::stride, :][:, :out_hw, :out_hw, :])
    return jnp.concatenate(cols, axis=-1)


def make_anchors():
    ys = (jnp.arange(FH, dtype=jnp.float32) + 0.5) * STRIDE
    xs = (jnp.arange(FW, dtype=jnp.float32) + 0.5) * STRIDE
    cy, cx = jnp.meshgrid(ys, xs, indexing="ij")
    anc = []
    for s in (8.0, 16.0, 24.0):          # anc_scales
        for r in (0.5, 1.0, 2.0):        # anc_ratios
            h = s * (r ** 0.5)
            w = s / (r ** 0.5)
            anc.append(jnp.stack([cx - w / 2, cy - h / 2, cx + w / 2, cy + h / 2],
                                 axis=-1))
    return jnp.stack(anc, axis=2).reshape(NA, 4).astype(jnp.float32)


def box_iou(a, b):
    area_a = jnp.maximum(a[:, 2] - a[:, 0], 0) * jnp.maximum(a[:, 3] - a[:, 1], 0)
    area_b = jnp.maximum(b[:, 2] - b[:, 0], 0) * jnp.maximum(b[:, 3] - b[:, 1], 0)
    lt = jnp.maximum(a[:, None, :2], b[None, :, :2])
    rb = jnp.minimum(a[:, None, 2:], b[None, :, 2:])
    wh = jnp.clip(rb - lt, 0.0)
    inter = wh[..., 0] * wh[..., 1]
    return inter / (area_a[:, None] + area_b[None, :] - inter + 1e-6)


def boxes_to_deltas(src, tgt):
    sw = jnp.maximum(src[..., 2] - src[..., 0], 1.0)
    sh = jnp.maximum(src[..., 3] - src[..., 1], 1.0)
    scx = src[..., 0] + 0.5 * sw
    scy = src[..., 1] + 0.5 * sh
    tw = jnp.maximum(tgt[..., 2] - tgt[..., 0], 1.0)
    th = jnp.maximum(tgt[..., 3] - tgt[..., 1], 1.0)
    tcx = tgt[..., 0] + 0.5 * tw
    tcy = tgt[..., 1] + 0.5 * th
    return jnp.stack([(tcx - scx) / sw, (tcy - scy) / sh,
                      jnp.log(tw / sw), jnp.log(th / sh)], axis=-1)


def deltas_to_boxes(deltas, boxes):
    w = jnp.maximum(boxes[..., 2] - boxes[..., 0], 1.0)
    h = jnp.maximum(boxes[..., 3] - boxes[..., 1], 1.0)
    cx = boxes[..., 0] + 0.5 * w
    cy = boxes[..., 1] + 0.5 * h
    ncx = cx + deltas[..., 0] * w
    ncy = cy + deltas[..., 1] * h
    nw = w * jnp.exp(jnp.clip(deltas[..., 2], -4.0, 4.0))
    nh = h * jnp.exp(jnp.clip(deltas[..., 3], -4.0, 4.0))
    return jnp.stack([ncx - 0.5 * nw, ncy - 0.5 * nh,
                      ncx + 0.5 * nw, ncy + 0.5 * nh], axis=-1)


def assign_anchors(anchors, gt_boxes):
    ious = box_iou(anchors, gt_boxes)                 # [NA, G]
    max_iou = ious.max(axis=1)
    arg = ious.argmax(axis=1)
    pos = max_iou > POS_T
    best = jnp.argmax(ious, axis=0)                   # best anchor per gt -> positive
    pos = pos.at[best].set(True)
    neg = (max_iou < NEG_T) & (~pos)
    labels = pos.astype(jnp.float32)
    cls_mask = (pos | neg).astype(jnp.float32)
    deltas = boxes_to_deltas(anchors, gt_boxes[arg])
    return labels, cls_mask, pos.astype(jnp.float32), deltas


def assign_proposals(props, gt_boxes, gt_labels):
    ious = box_iou(props, gt_boxes)                   # [TOP_N, G]
    max_iou = ious.max(axis=1)
    arg = ious.argmax(axis=1)
    fg = max_iou > FG_T
    labels = jnp.where(fg, gt_labels[arg], 0)
    deltas = boxes_to_deltas(props, gt_boxes[arg])
    return labels, fg.astype(jnp.float32), deltas


def roi_pool_one(feat, props):
    """feat: [FH,FW,C], props: [TOP_N,4] in image coords -> [TOP_N,ROI,ROI,C]."""
    # TODO(synk): torchvision roi_align not reproduced; nearest-neighbour grid pool.
    p = props * FEAT_SCALE
    x0, y0, x1, y1 = p[:, 0], p[:, 1], p[:, 2], p[:, 3]
    rr = (jnp.arange(ROI, dtype=jnp.float32) + 0.5) / ROI
    ys = y0[:, None] + rr[None, :] * jnp.maximum(y1 - y0, 1e-3)[:, None]
    xs = x0[:, None] + rr[None, :] * jnp.maximum(x1 - x0, 1e-3)[:, None]
    yi = jnp.clip(jnp.floor(ys), 0, FH - 1).astype(jnp.int32)
    xi = jnp.clip(jnp.floor(xs), 0, FW - 1).astype(jnp.int32)
    return feat[yi[:, :, None], xi[:, None, :], :]


# ============================= model ========================================
def init_params(key):
    ks = jax.random.split(key, 8)
    bf = jnp.bfloat16

    def w(k, shape, scale=0.05):
        return (scale * jax.random.normal(k, shape)).astype(jnp.float32)

    z2 = lambda n: jnp.zeros((1, n), jnp.float32)

    # backbone (stand-in for truncated ResNet-50): one 3x3/stride-4 conv (K padded 27->32)
    bb_w = jnp.pad(w(ks[0], (K_BB, CFEAT)), ((0, K_BB_PAD - K_BB), (0, 0)))
    # fused RPN heads: [objectness (A) | box deltas (4A)] padded to 128 lanes
    rpn_head_w = jnp.pad(
        jnp.concatenate([w(ks[2], (HID_RPN, A)), w(ks[3], (HID_RPN, A * 4))], axis=1),
        ((0, 0), (0, HEAD_N - 5 * A)))
    # fused classifier heads: [class logits (N_CLS) | box deltas (4*N_CLS)] padded to 128
    cls_head_w = jnp.pad(
        jnp.concatenate([w(ks[5], (HID_CLS, N_CLS)), w(ks[6], (HID_CLS, N_CLS * 4))],
                        axis=1),
        ((0, 0), (0, HEAD_N - 5 * N_CLS)))

    return {
        "bb_w": bb_w.astype(bf), "bb_b": z2(CFEAT),
        "rpn_hw": w(ks[1], (CFEAT * 9, HID_RPN)).astype(bf), "rpn_hb": z2(HID_RPN),
        "rpn_head_w": rpn_head_w.astype(bf), "rpn_head_b": z2(HEAD_N),
        "cls_hw": w(ks[4], (CFEAT * ROI * ROI, HID_CLS)).astype(bf), "cls_hb": z2(HID_CLS),
        "cls_head_w": cls_head_w.astype(bf), "cls_head_b": z2(HEAD_N),
    }


def faster_rcnn_forward(params, images_nchw, truth_labels, truth_bboxes):
    images = jnp.transpose(images_nchw, (0, 2, 3, 1)).astype(jnp.float32)  # NHWC

    # ---------------- launch 1: backbone + RPN (single fused kernel) ----------------
    # TODO(synk): full ResNet-50 (layers 0..6) not reproduced; single 3x3/s4 conv+ReLU stand-in.
    # TODO(synk): RPN dropout omitted (stochastic training-mode op).
    patches = im2col3x3(images, STRIDE, FH).reshape(B * FH * FW, K_BB)
    patches = jnp.pad(patches, ((0, 0), (0, K_BB_PAD - K_BB))).astype(jnp.bfloat16)

    head_out, feat2d = pl.pallas_call(
        _bbrpn_kernel,
        out_shape=(jax.ShapeDtypeStruct((B * FH * FW, HEAD_N), jnp.float32),
                   jax.ShapeDtypeStruct((B * FH * FW, CFEAT), jnp.bfloat16)),
        in_specs=[pl.BlockSpec(memory_space=_VMEM)] * 7,
        out_specs=(pl.BlockSpec(memory_space=_VMEM),
                   pl.BlockSpec(memory_space=_VMEM)),
        scratch_shapes=[pltpu.VMEM((B, FH + 2, FW + 2, CFEAT), jnp.float32)],
    )(patches, params["bb_w"], params["bb_b"],
      params["rpn_hw"], params["rpn_hb"],
      params["rpn_head_w"], params["rpn_head_b"])

    features = feat2d.reshape(B, FH, FW, CFEAT)                 # bf16, for ROI pool only
    obj = head_out[:, :A].reshape(B, NA)                        # objectness logits
    dlt = head_out[:, A:5 * A].reshape(B, NA, 4)                # anchor box deltas

    # ---------------- anchor assignment + proposals (XLA glue) ----------------
    anchors = make_anchors()
    labels, cls_mask, pos_mask, tdeltas = jax.vmap(
        lambda g: assign_anchors(anchors, g))(truth_bboxes)

    prop_boxes = deltas_to_boxes(dlt, jnp.broadcast_to(anchors, (B, NA, 4)))
    prop_boxes = jnp.clip(prop_boxes, 0.0, float(IMG))
    # TODO(synk): NMS has no clean Pallas equivalent; plain top-k by objectness instead.
    _, top_idx = jax.lax.top_k(obj, TOP_N)                              # [B, TOP_N]
    proposals = jnp.take_along_axis(prop_boxes, top_idx[:, :, None], axis=1)
    proposals = jax.lax.stop_gradient(proposals)

    asn_lab, fg_mask, cls_tdeltas = jax.vmap(assign_proposals)(
        proposals, truth_bboxes, truth_labels)
    # TODO(synk): ResNet layer4 (backbone_classifier) + classifier dropout not reproduced.
    roi_feats = jax.vmap(roi_pool_one)(features, proposals)    # [B,TOP_N,ROI,ROI,C] bf16
    roi_flat = roi_feats.reshape(M_ROI, ROI * ROI * CFEAT).astype(jnp.bfloat16)

    # ---------------- coalesced, lane-dense loss slabs ----------------
    rpn_cls_slab = jnp.stack([obj.reshape(-1, 128),
                              labels.reshape(-1, 128),
                              cls_mask.reshape(-1, 128)])                        # (3, 9, 128)
    pmask = jnp.broadcast_to(pos_mask[..., None], (B, NA, 4))
    rpn_box_slab = jnp.stack([dlt.reshape(-1, 128),
                              tdeltas.reshape(-1, 128),
                              pmask.reshape(-1, 128)])                           # (3, 36, 128)

    lab_flat = asn_lab.reshape(M_ROI)
    onehot128 = jax.nn.one_hot(lab_flat, HEAD_N, dtype=jnp.float32)              # (M, 128)
    oh5 = onehot128[:, :N_CLS]
    fgf = fg_mask.reshape(M_ROI)
    box_mask = jnp.broadcast_to((fgf[:, None] * oh5)[:, :, None],
                                (M_ROI, N_CLS, 4)).reshape(M_ROI, 4 * N_CLS)
    box_tgt = jnp.broadcast_to(cls_tdeltas.reshape(M_ROI, 1, 4),
                               (M_ROI, N_CLS, 4)).reshape(M_ROI, 4 * N_CLS)
    padw = ((0, 0), (N_CLS, HEAD_N - 5 * N_CLS))    # align with head columns N_CLS:5*N_CLS
    cls_aux_slab = jnp.stack([onehot128,
                              jnp.pad(box_mask, padw),
                              jnp.pad(box_tgt, padw)])                           # (3, 32, 128)

    # ---------------- launch 2: classifier + all four losses -> scalar ----------------
    total_loss = pl.pallas_call(
        _cls_loss_kernel,
        out_shape=jax.ShapeDtypeStruct((1, 1), jnp.float32),
        in_specs=[pl.BlockSpec(memory_space=_VMEM)] * 8,
        out_specs=pl.BlockSpec(memory_space=_SMEM),
    )(roi_flat, params["cls_hw"], params["cls_hb"],
      params["cls_head_w"], params["cls_head_b"],
      rpn_cls_slab, rpn_box_slab, cls_aux_slab)[0, 0]
    return total_loss


# ================================ main ======================================
if __name__ == "__main__":
    key = jax.random.PRNGKey(0)
    k_img, k_box, k_sz, k_lab, k_par = jax.random.split(key, 5)

    images = jax.random.normal(k_img, (B, CIN, IMG, IMG), jnp.float32)  # NCHW like PyTorch
    centers = jax.random.uniform(k_box, (B, G, 2), minval=8.0, maxval=24.0)
    sizes = jax.random.uniform(k_sz, (B, G, 2), minval=8.0, maxval=20.0)
    x0y0 = jnp.clip(centers - sizes / 2, 0.0, float(IMG))
    x1y1 = jnp.clip(centers + sizes / 2, 0.0, float(IMG))
    truth_bboxes = jnp.concatenate([x0y0, x1y1], axis=-1).astype(jnp.float32)
    truth_labels = jax.random.randint(k_lab, (B, G), 1, N_LABELS + 1)

    params = init_params(k_par)

    loss = jax.jit(faster_rcnn_forward)(params, images, truth_labels, truth_bboxes)
    jax.block_until_ready(loss)
    print("KERNEL_OK")
</pallas_src>

<mosaic_0001>
module attributes {stable_mosaic.version = 11 : i64} {
  func.func @_bbrpn_kernel(%arg0: memref<128x32xbf16, #tpu.memory_space<vmem>>, %arg1: memref<32x64xbf16, #tpu.memory_space<vmem>>, %arg2: memref<1x64xf32, #tpu.memory_space<vmem>>, %arg3: memref<576x128xbf16, #tpu.memory_space<vmem>>, %arg4: memref<1x128xf32, #tpu.memory_space<vmem>>, %arg5: memref<128x128xbf16, #tpu.memory_space<vmem>>, %arg6: memref<1x128xf32, #tpu.memory_space<vmem>>, %arg7: memref<128x128xf32, #tpu.memory_space<vmem>>, %arg8: memref<128x64xbf16, #tpu.memory_space<vmem>>, %arg9: memref<2x10x10x64xf32, #tpu.memory_space<vmem>>) attributes {dimension_semantics = [], scalar_prefetch = 0 : i64, scratch_operands = 1 : i64, tpu.core_type = #tpu.core_type<tc>} {
    %c0 = arith.constant 0 : index
    %c0_0 = arith.constant 0 : index
    %0 = vector.load %arg0[%c0, %c0_0] : memref<128x32xbf16, #tpu.memory_space<vmem>>, vector<128x32xbf16>
    %c0_1 = arith.constant 0 : index
    %c0_2 = arith.constant 0 : index
    %1 = vector.load %arg1[%c0_1, %c0_2] : memref<32x64xbf16, #tpu.memory_space<vmem>>, vector<32x64xbf16>
    %cst = arith.constant dense<0.000000e+00> : vector<128x64xf32>
    %2 = tpu.matmul %0, %1, %cst {dimension_numbers = #tpu.dot_dimension_numbers<[1], [0], [0], [1], [0, 0, 1, 1], [], []>} : vector<128x32xbf16>, vector<32x64xbf16>, vector<128x64xf32> -> vector<128x64xf32>
    %c0_3 = arith.constant 0 : index
    %c0_4 = arith.constant 0 : index
    %3 = vector.load %arg2[%c0_3, %c0_4] : memref<1x64xf32, #tpu.memory_space<vmem>>, vector<1x64xf32>
    %4 = vector.broadcast %3 : vector<1x64xf32> to vector<128x64xf32>
    %5 = arith.addf %2, %4 : vector<128x64xf32>
    %cst_5 = arith.constant 0.000000e+00 : f32
    %6 = vector.broadcast %cst_5 : f32 to vector<128x64xf32>
    %7 = arith.maximumf %5, %6 : vector<128x64xf32>
    %8 = arith.truncf %7 : vector<128x64xf32> to vector<128x64xbf16>
    %c0_6 = arith.constant 0 : index
    %c0_7 = arith.constant 0 : index
    %9 = vector.load %arg8[%c0_6, %c0_7] : memref<128x64xbf16, #tpu.memory_space<vmem>>, vector<128x64xbf16>
    tpu.vector_store %arg8[%c0_6, %c0_7], %8 {strides = array<i32>} : memref<128x64xbf16, #tpu.memory_space<vmem>>, vector<128x64xbf16>,
    %cst_8 = arith.constant 0.000000e+00 : f32
    %10 = vector.broadcast %cst_8 : f32 to vector<2x10x10x64xf32>
    %c0_9 = arith.constant 0 : index
    %c0_10 = arith.constant 0 : index
    %c0_11 = arith.constant 0 : index
    %c0_12 = arith.constant 0 : index
    %11 = vector.load %arg9[%c0_9, %c0_10, %c0_11, %c0_12] : memref<2x10x10x64xf32, #tpu.memory_space<vmem>>, vector<2x10x10x64xf32>
    tpu.vector_store %arg9[%c0_9, %c0_10, %c0_11, %c0_12], %10 {strides = array<i32>} : memref<2x10x10x64xf32, #tpu.memory_space<vmem>>, vector<2x10x10x64xf32>,
    %12 = vector.shape_cast %7 : vector<128x64xf32> to vector<2x8x8x64xf32>
    %c0_13 = arith.constant 0 : index
    %c1 = arith.constant 1 : index
    %c1_14 = arith.constant 1 : index
    %c0_15 = arith.constant 0 : index
    %13 = vector.load %arg9[%c0_13, %c1, %c1_14, %c0_15] : memref<2x10x10x64xf32, #tpu.memory_space<vmem>>, vector<2x8x8x64xf32>
    tpu.vector_store %arg9[%c0_13, %c1, %c1_14, %c0_15], %12 {strides = array<i32>} : memref<2x10x10x64xf32, #tpu.memory_space<vmem>>, vector<2x8x8x64xf32>,
    %cst_16 = arith.constant 0.000000e+00 : f32
    %14 = vector.broadcast %cst_16 : f32 to vector<128x128xf32>
    %c0_17 = arith.constant 0 : index
    %c0_18 = arith.constant 0 : index
    %c0_19 = arith.constant 0 : index
    %c0_20 = arith.constant 0 : index
    %15 = vector.load %arg9[%c0_17, %c0_18, %c0_19, %c0_20] : memref<2x10x10x64xf32, #tpu.memory_space<vmem>>, vector<2x8x8x64xf32>
    %16 = vector.shape_cast %15 : vector<2x8x8x64xf32> to vector<128x64xf32>
    %17 = arith.truncf %16 : vector<128x64xf32> to vector<128x64xbf16>
    %c0_21 = arith.constant 0 : index
    %c0_22 = arith.constant 0 : index
    %18 = vector.load %arg3[%c0_21, %c0_22] : memref<576x128xbf16, #tpu.memory_space<vmem>>, vector<64x128xbf16>
    %cst_23 = arith.constant dense<0.000000e+00> : vector<128x128xf32>
    %19 = tpu.matmul %17, %18, %cst_23 {dimension_numbers = #tpu.dot_dimension_numbers<[1], [0], [0], [1], [0, 0, 1, 1], [], []>} : vector<128x64xbf16>, vector<64x128xbf16>, vector<128x128xf32> -> vector<128x128xf32>
    %20 = arith.addf %14, %19 : vector<128x128xf32>
    %c0_24 = arith.constant 0 : index
    %c0_25 = arith.constant 0 : index
    %c1_26 = arith.constant 1 : index
    %c0_27 = arith.constant 0 : index
    %21 = vector.load %arg9[%c0_24, %c0_25, %c1_26, %c0_27] : memref<2x10x10x64xf32, #tpu.memory_space<vmem>>, vector<2x8x8x64xf32>
    %22 = vector.shape_cast %21 : vector<2x8x8x64xf32> to vector<128x64xf32>
    %23 = arith.truncf %22 : vector<128x64xf32> to vector<128x64xbf16>
    %c64 = arith.constant 64 : index
    %c0_28 = arith.constant 0 : index
    %24 = vector.load %arg3[%c64, %c0_28] : memref<576x128xbf16, #tpu.memory_space<vmem>>, vector<64x128xbf16>
    %cst_29 = arith.constant dense<0.000000e+00> : vector<128x128xf32>
    %25 = tpu.matmul %23, %24, %cst_29 {dimension_numbers = #tpu.dot_dimension_numbers<[1], [0], [0], [1], [0, 0, 1, 1], [], []>} : vector<128x64xbf16>, vector<64x128xbf16>, vector<128x128xf32> -> vector<128x128xf32>
    %26 = arith.addf %20, %25 : vector<128x128xf32>
    %c0_30 = arith.constant 0 : index
    %c0_31 = arith.constant 0 : index
    %c2 = arith.constant 2 : index
    %c0_32 = arith.constant 0 : index
    %27 = vector.load %arg9[%c0_30, %c0_31, %c2, %c0_32] : memref<2x10x10x64xf32, #tpu.memory_space<vmem>>, vector<2x8x8x64xf32>
    %28 = vector.shape_cast %27 : vector<2x8x8x64xf32> to vector<128x64xf32>
    %29 = arith.truncf %28 : vector<128x64xf32> to vector<128x64xbf16>
    %c128 = arith.constant 128 : index
    %c0_33 = arith.constant 0 : index
    %30 = vector.load %arg3[%c128, %c0_33] : memref<576x128xbf16, #tpu.memory_space<vmem>>, vector<64x128xbf16>
    %cst_34 = arith.constant dense<0.000000e+00> : vector<128x128xf32>
    %31 = tpu.matmul %29, %30, %cst_34 {dimension_numbers = #tpu.dot_dimension_numbers<[1], [0], [0], [1], [0, 0, 1, 1], [], []>} : vector<128x64xbf16>, vector<64x128xbf16>, vector<128x128xf32> -> vector<128x128xf32>
    %32 = arith.addf %26, %31 : vector<128x128xf32>
    %c0_35 = arith.constant 0 : index
    %c1_36 = arith.constant 1 : index
    %c0_37 = arith.constant 0 : index
    %c0_38 = arith.constant 0 : index
    %33 = vector.load %arg9[%c0_35, %c1_36, %c0_37, %c0_38] : memref<2x10x10x64xf32, #tpu.memory_space<vmem>>, vector<2x8x8x64xf32>
    %34 = vector.shape_cast %33 : vector<2x8x8x64xf32> to vector<128x64xf32>
    %35 = arith.truncf %34 : vector<128x64xf32> to vector<128x64xbf16>
    %c192 = arith.constant 192 : index
    %c0_39 = arith.constant 0 : index
    %36 = vector.load %arg3[%c192, %c0_39] : memref<576x128xbf16, #tpu.memory_space<vmem>>, vector<64x128xbf16>
    %cst_40 = arith.constant dense<0.000000e+00> : vector<128x128xf32>
    %37 = tpu.matmul %35, %36, %cst_40 {dimension_numbers = #tpu.dot_dimension_numbers<[1], [0], [0], [1], [0, 0, 1, 1], [], []>} : vector<128x64xbf16>, vector<64x128xbf16>, vector<128x128xf32> -> vector<128x128xf32>
    %38 = arith.addf %32, %37 : vector<128x128xf32>
    %c0_41 = arith.constant 0 : index
    %c1_42 = arith.constant 1 : index
    %c1_43 = arith.constant 1 : index
    %c0_44 = arith.constant 0 : index
    %39 = vector.load %arg9[%c0_41, %c1_42, %c1_43, %c0_44] : memref<2x10x10x64xf32, #tpu.memory_space<vmem>>, vector<2x8x8x64xf32>
    %40 = vector.shape_cast %39 : vector<2x8x8x64xf32> to vector<128x64xf32>
    %41 = arith.truncf %40 : vector<128x64xf32> to vector<128x64xbf16>
    %c256 = arith.constant 256 : index
    %c0_45 = arith.constant 0 : index
    %42 = vector.load %arg3[%c256, %c0_45] : memref<576x128xbf16, #tpu.memory_space<vmem>>, vector<64x128xbf16>
    %cst_46 = arith.constant dense<0.000000e+00> : vector<128x128xf32>
    %43 = tpu.matmul %41, %42, %cst_46 {dimension_numbers = #tpu.dot_dimension_numbers<[1], [0], [0], [1], [0, 0, 1, 1], [], []>} : vector<128x64xbf16>, vector<64x128xbf16>, vector<128x128xf32> -> vector<128x128xf32>
    %44 = arith.addf %38, %43 : vector<128x128xf32>
    %c0_47 = arith.constant 0 : index
    %c1_48 = arith.constant 1 : index
    %c2_49 = arith.constant 2 : index
    %c0_50 = arith.constant 0 : index
    %45 = vector.load %arg9[%c0_47, %c1_48, %c2_49, %c0_50] : memref<2x10x10x64xf32, #tpu.memory_space<vmem>>, vector<2x8x8x64xf32>
    %46 = vector.shape_cast %45 : vector<2x8x8x64xf32> to vector<128x64xf32>
    %47 = arith.truncf %46 : vector<128x64xf32> to vector<128x64xbf16>
    %c320 = arith.constant 320 : index
    %c0_51 = arith.constant 0 : index
    %48 = vector.load %arg3[%c320, %c0_51] : memref<576x128xbf16, #tpu.memory_space<vmem>>, vector<64x128xbf16>
    %cst_52 = arith.constant dense<0.000000e+00> : vector<128x128xf32>
    %49 = tpu.matmul %47, %48, %cst_52 {dimension_numbers = #tpu.dot_dimension_numbers<[1], [0], [0], [1], [0, 0, 1, 1], [], []>} : vector<128x64xbf16>, vector<64x128xbf16>, vector<128x128xf32> -> vector<128x128xf32>
    %50 = arith.addf %44, %49 : vector<128x128xf32>
    %c0_53 = arith.constant 0 : index
    %c2_54 = arith.constant 2 : index
    %c0_55 = arith.constant 0 : index
    %c0_56 = arith.constant 0 : index
    %51 = vector.load %arg9[%c0_53, %c2_54, %c0_55, %c0_56] : memref<2x10x10x64xf32, #tpu.memory_space<vmem>>, vector<2x8x8x64xf32>
    %52 = vector.shape_cast %51 : vector<2x8x8x64xf32> to vector<128x64xf32>
    %53 = arith.truncf %52 : vector<128x64xf32> to vector<128x64xbf16>
    %c384 = arith.constant 384 : index
    %c0_57 = arith.constant 0 : index
    %54 = vector.load %arg3[%c384, %c0_57] : memref<576x128xbf16, #tpu.memory_space<vmem>>, vector<64x128xbf16>
    %cst_58 = arith.constant dense<0.000000e+00> : vector<128x128xf32>
    %55 = tpu.matmul %53, %54, %cst_58 {dimension_numbers = #tpu.dot_dimension_numbers<[1], [0], [0], [1], [0, 0, 1, 1], [], []>} : vector<128x64xbf16>, vector<64x128xbf16>, vector<128x128xf32> -> vector<128x128xf32>
    %56 = arith.addf %50, %55 : vector<128x128xf32>
    %c0_59 = arith.constant 0 : index
    %c2_60 = arith.constant 2 : index
    %c1_61 = arith.constant 1 : index
    %c0_62 = arith.constant 0 : index
    %57 = vector.load %arg9[%c0_59, %c2_60, %c1_61, %c0_62] : memref<2x10x10x64xf32, #tpu.memory_space<vmem>>, vector<2x8x8x64xf32>
    %58 = vector.shape_cast %57 : vector<2x8x8x64xf32> to vector<128x64xf32>
    %59 = arith.truncf %58 : vector<128x64xf32> to vector<128x64xbf16>
    %c448 = arith.constant 448 : index
    %c0_63 = arith.constant 0 : index
    %60 = vector.load %arg3[%c448, %c0_63] : memref<576x128xbf16, #tpu.memory_space<vmem>>, vector<64x128xbf16>
    %cst_64 = arith.constant dense<0.000000e+00> : vector<128x128xf32>
    %61 = tpu.matmul %59, %60, %cst_64 {dimension_numbers = #tpu.dot_dimension_numbers<[1], [0], [0], [1], [0, 0, 1, 1], [], []>} : vector<128x64xbf16>, vector<64x128xbf16>, vector<128x128xf32> -> vector<128x128xf32>
    %62 = arith.addf %56, %61 : vector<128x128xf32>
    %c0_65 = arith.constant 0 : index
    %c2_66 = arith.constant 2 : index
    %c2_67 = arith.constant 2 : index
    %c0_68 = arith.constant 0 : index
    %63 = vector.load %arg9[%c0_65, %c2_66, %c2_67, %c0_68] : memref<2x10x10x64xf32, #tpu.memory_space<vmem>>, vector<2x8x8x64xf32>
    %64 = vector.shape_cast %63 : vector<2x8x8x64xf32> to vector<128x64xf32>
    %65 = arith.truncf %64 : vector<128x64xf32> to vector<128x64xbf16>
    %c512 = arith.constant 512 : index
    %c0_69 = arith.constant 0 : index
    %66 = vector.load %arg3[%c512, %c0_69] : memref<576x128xbf16, #tpu.memory_space<vmem>>, vector<64x128xbf16>
    %cst_70 = arith.constant dense<0.000000e+00> : vector<128x128xf32>
    %67 = tpu.matmul %65, %66, %cst_70 {dimension_numbers = #tpu.dot_dimension_numbers<[1], [0], [0], [1], [0, 0, 1, 1], [], []>} : vector<128x64xbf16>, vector<64x128xbf16>, vector<128x128xf32> -> vector<128x128xf32>
    %68 = arith.addf %62, %67 : vector<128x128xf32>
    %c0_71 = arith.constant 0 : index
    %c0_72 = arith.constant 0 : index
    %69 = vector.load %arg4[%c0_71, %c0_72] : memref<1x128xf32, #tpu.memory_space<vmem>>, vector<1x128xf32>
    %70 = vector.broadcast %69 : vector<1x128xf32> to vector<128x128xf32>
    %71 = arith.addf %68, %70 : vector<128x128xf32>
    %cst_73 = arith.constant 0.000000e+00 : f32
    %72 = vector.broadcast %cst_73 : f32 to vector<128x128xf32>
    %73 = arith.maximumf %71, %72 : vector<128x128xf32>
    %74 = arith.truncf %73 : vector<128x128xf32> to vector<128x128xbf16>
    %c0_74 = arith.constant 0 : index
    %c0_75 = arith.constant 0 : index
    %75 = vector.load %arg5[%c0_74, %c0_75] : memref<128x128xbf16, #tpu.memory_space<vmem>>, vector<128x128xbf16>
    %cst_76 = arith.constant dense<0.000000e+00> : vector<128x128xf32>
    %76 = tpu.matmul %74, %75, %cst_76 {dimension_numbers = #tpu.dot_dimension_numbers<[1], [0], [0], [1], [0, 0, 1, 1], [], []>} : vector<128x128xbf16>, vector<128x128xbf16>, vector<128x128xf32> -> vector<128x128xf32>
    %c0_77 = arith.constant 0 : index
    %c0_78 = arith.constant 0 : index
    %77 = vector.load %arg6[%c0_77, %c0_78] : memref<1x128xf32, #tpu.memory_space<vmem>>, vector<1x128xf32>
    %78 = vector.broadcast %77 : vector<1x128xf32> to vector<128x128xf32>
    %79 = arith.addf %76, %78 : vector<128x128xf32>
    %c0_79 = arith.constant 0 : index
    %c0_80 = arith.constant 0 : index
    %80 = vector.load %arg7[%c0_79, %c0_80] : memref<128x128xf32, #tpu.memory_space<vmem>>, vector<128x128xf32>
    tpu.vector_store %arg7[%c0_79, %c0_80], %79 {strides = array<i32>} : memref<128x128xf32, #tpu.memory_space<vmem>>, vector<128x128xf32>,
    return
  }
}

module attributes {stable_mosaic.version = 11 : i64} {
  func.func @_cls_loss_kernel(%arg0: memref<32x256xbf16, #tpu.memory_space<vmem>>, %arg1: memref<256x128xbf16, #tpu.memory_space<vmem>>, %arg2: memref<1x128xf32, #tpu.memory_space<vmem>>, %arg3: memref<128x128xbf16, #tpu.memory_space<vmem>>, %arg4: memref<1x128xf32, #tpu.memory_space<vmem>>, %arg5: memref<3x9x128xf32, #tpu.memory_space<vmem>>, %arg6: memref<3x36x128xf32, #tpu.memory_space<vmem>>, %arg7: memref<3x32x128xf32, #tpu.memory_space<vmem>>, %arg8: memref<1x1xf32, #tpu.memory_space<smem>>) attributes {dimension_semantics = [], scalar_prefetch = 0 : i64, scratch_operands = 0 : i64, tpu.core_type = #tpu.core_type<tc>} {
    %c0 = arith.constant 0 : index
    %c0_0 = arith.constant 0 : index
    %0 = vector.load %arg0[%c0, %c0_0] : memref<32x256xbf16, #tpu.memory_space<vmem>>, vector<32x256xbf16>
    %c0_1 = arith.constant 0 : index
    %c0_2 = arith.constant 0 : index
    %1 = vector.load %arg1[%c0_1, %c0_2] : memref<256x128xbf16, #tpu.memory_space<vmem>>, vector<256x128xbf16>
    %cst = arith.constant dense<0.000000e+00> : vector<32x128xf32>
    %2 = tpu.matmul %0, %1, %cst {dimension_numbers = #tpu.dot_dimension_numbers<[1], [0], [0], [1], [0, 0, 1, 1], [], []>} : vector<32x256xbf16>, vector<256x128xbf16>, vector<32x128xf32> -> vector<32x128xf32>
    %c0_3 = arith.constant 0 : index
    %c0_4 = arith.constant 0 : index
    %3 = vector.load %arg2[%c0_3, %c0_4] : memref<1x128xf32, #tpu.memory_space<vmem>>, vector<1x128xf32>
    %4 = vector.broadcast %3 : vector<1x128xf32> to vector<32x128xf32>
    %5 = arith.addf %2, %4 : vector<32x128xf32>
    %cst_5 = arith.constant 0.000000e+00 : f32
    %6 = vector.broadcast %cst_5 : f32 to vector<32x128xf32>
    %7 = arith.maximumf %5, %6 : vector<32x128xf32>
    %8 = arith.truncf %7 : vector<32x128xf32> to vector<32x128xbf16>
    %c0_6 = arith.constant 0 : index
    %c0_7 = arith.constant 0 : index
    %9 = vector.load %arg3[%c0_6, %c0_7] : memref<128x128xbf16, #tpu.memory_space<vmem>>, vector<128x128xbf16>
    %cst_8 = arith.constant dense<0.000000e+00> : vector<32x128xf32>
    %10 = tpu.matmul %8, %9, %cst_8 {dimension_numbers = #tpu.dot_dimension_numbers<[1], [0], [0], [1], [0, 0, 1, 1], [], []>} : vector<32x128xbf16>, vector<128x128xbf16>, vector<32x128xf32> -> vector<32x128xf32>
    %c0_9 = arith.constant 0 : index
    %c0_10 = arith.constant 0 : index
    %11 = vector.load %arg4[%c0_9, %c0_10] : memref<1x128xf32, #tpu.memory_space<vmem>>, vector<1x128xf32>
    %12 = vector.broadcast %11 : vector<1x128xf32> to vector<32x128xf32>
    %13 = arith.addf %10, %12 : vector<32x128xf32>
    %c0_11 = arith.constant 0 : index
    %c0_12 = arith.constant 0 : index
    %c0_13 = arith.constant 0 : index
    %14 = vector.load %arg5[%c0_11, %c0_12, %c0_13] : memref<3x9x128xf32, #tpu.memory_space<vmem>>, vector<1x9x128xf32>
    %15 = vector.shape_cast %14 : vector<1x9x128xf32> to vector<9x128xf32>
    %c1 = arith.constant 1 : index
    %c0_14 = arith.constant 0 : index
    %c0_15 = arith.constant 0 : index
    %16 = vector.load %arg5[%c1, %c0_14, %c0_15] : memref<3x9x128xf32, #tpu.memory_space<vmem>>, vector<1x9x128xf32>
    %17 = vector.shape_cast %16 : vector<1x9x128xf32> to vector<9x128xf32>
    %c2 = arith.constant 2 : index
    %c0_16 = arith.constant 0 : index
    %c0_17 = arith.constant 0 : index
    %18 = vector.load %arg5[%c2, %c0_16, %c0_17] : memref<3x9x128xf32, #tpu.memory_space<vmem>>, vector<1x9x128xf32>
    %19 = vector.shape_cast %18 : vector<1x9x128xf32> to vector<9x128xf32>
    %cst_18 = arith.constant 0.000000e+00 : f32
    %20 = vector.broadcast %cst_18 : f32 to vector<9x128xf32>
    %21 = arith.maximumf %15, %20 : vector<9x128xf32>
    %22 = arith.mulf %15, %17 : vector<9x128xf32>
    %23 = arith.subf %21, %22 : vector<9x128xf32>
    %24 = math.absf %15 : vector<9x128xf32>
    %cst_19 = arith.constant 0.000000e+00 : f32
    %25 = vector.broadcast %cst_19 : f32 to vector<9x128xf32>
    %26 = arith.subf %25, %24 : vector<9x128xf32>
    %27 = math.exp %26 : vector<9x128xf32>
    %cst_20 = arith.constant 1.000000e+00 : f32
    %28 = vector.broadcast %cst_20 : f32 to vector<9x128xf32>
    %29 = arith.addf %28, %27 : vector<9x128xf32>
    %30 = math.log %29 : vector<9x128xf32>
    %31 = arith.addf %23, %30 : vector<9x128xf32>
    %32 = vector.shape_cast %19 : vector<9x128xf32> to vector<1x9x128xf32>
    %cst_21 = arith.constant dense<0.000000e+00> : vector<1xf32>
    %33 = vector.multi_reduction <add>, %32, %cst_21 [1, 2] : vector<1x9x128xf32> to vector<1xf32>
    %34 = vector.shape_cast %33 : vector<1xf32> to vector<1x1x1xf32>
    %35 = vector.extract %34[0, 0, 0] : f32 from vector<1x1x1xf32>
    %cst_22 = arith.constant 1.000000e+00 : f32
    %36 = arith.maximumf %35, %cst_22 : f32
    %37 = arith.mulf %31, %19 : vector<9x128xf32>
    %38 = vector.shape_cast %37 : vector<9x128xf32> to vector<1x9x128xf32>
    %cst_23 = arith.constant dense<0.000000e+00> : vector<1xf32>
    %39 = vector.multi_reduction <add>, %38, %cst_23 [1, 2] : vector<1x9x128xf32> to vector<1xf32>
    %40 = vector.shape_cast %39 : vector<1xf32> to vector<1x1x1xf32>
    %41 = vector.extract %40[0, 0, 0] : f32 from vector<1x1x1xf32>
    %42 = arith.divf %41, %36 : f32
    %c0_24 = arith.constant 0 : index
    %c0_25 = arith.constant 0 : index
    %c0_26 = arith.constant 0 : index
    %43 = vector.load %arg6[%c0_24, %c0_25, %c0_26] : memref<3x36x128xf32, #tpu.memory_space<vmem>>, vector<1x36x128xf32>
    %44 = vector.shape_cast %43 : vector<1x36x128xf32> to vector<36x128xf32>
    %c1_27 = arith.constant 1 : index
    %c0_28 = arith.constant 0 : index
    %c0_29 = arith.constant 0 : index
    %45 = vector.load %arg6[%c1_27, %c0_28, %c0_29] : memref<3x36x128xf32, #tpu.memory_space<vmem>>, vector<1x36x128xf32>
    %46 = vector.shape_cast %45 : vector<1x36x128xf32> to vector<36x128xf32>
    %47 = arith.subf %44, %46 : vector<36x128xf32>
    %48 = math.absf %47 : vector<36x128xf32>
    %c2_30 = arith.constant 2 : index
    %c0_31 = arith.constant 0 : index
    %c0_32 = arith.constant 0 : index
    %49 = vector.load %arg6[%c2_30, %c0_31, %c0_32] : memref<3x36x128xf32, #tpu.memory_space<vmem>>, vector<1x36x128xf32>
    %50 = vector.shape_cast %49 : vector<1x36x128xf32> to vector<36x128xf32>
    %cst_33 = arith.constant 1.000000e+00 : f32
    %51 = vector.broadcast %cst_33 : f32 to vector<36x128xf32>
    %52 = arith.cmpf olt, %48, %51 : vector<36x128xf32>
    %cst_34 = arith.constant 5.000000e-01 : f32
    %53 = vector.broadcast %cst_34 : f32 to vector<36x128xf32>
    %54 = arith.mulf %53, %48 : vector<36x128xf32>
    %55 = arith.mulf %54, %48 : vector<36x128xf32>
    %cst_35 = arith.constant 5.000000e-01 : f32
    %56 = vector.broadcast %cst_35 : f32 to vector<36x128xf32>
    %57 = arith.subf %48, %56 : vector<36x128xf32>
    %58 = arith.select %52, %55, %57 : vector<36x128xi1>, vector<36x128xf32>
    %59 = arith.mulf %58, %50 : vector<36x128xf32>
    %60 = vector.shape_cast %59 : vector<36x128xf32> to vector<1x36x128xf32>
    %cst_36 = arith.constant dense<0.000000e+00> : vector<1xf32>
    %61 = vector.multi_reduction <add>, %60, %cst_36 [1, 2] : vector<1x36x128xf32> to vector<1xf32>
    %62 = vector.shape_cast %61 : vector<1xf32> to vector<1x1x1xf32>
    %63 = vector.extract %62[0, 0, 0] : f32 from vector<1x1x1xf32>
    %64 = vector.shape_cast %50 : vector<36x128xf32> to vector<1x36x128xf32>
    %cst_37 = arith.constant dense<0.000000e+00> : vector<1xf32>
    %65 = vector.multi_reduction <add>, %64, %cst_37 [1, 2] : vector<1x36x128xf32> to vector<1xf32>
    %66 = vector.shape_cast %65 : vector<1xf32> to vector<1x1x1xf32>
    %67 = vector.extract %66[0, 0, 0] : f32 from vector<1x1x1xf32>
    %cst_38 = arith.constant 2.500000e-01 : f32
    %68 = arith.mulf %cst_38, %67 : f32
    %cst_39 = arith.constant 1.000000e+00 : f32
    %69 = arith.maximumf %68, %cst_39 : f32
    %cst_40 = arith.constant 4.000000e+00 : f32
    %70 = arith.mulf %cst_40, %69 : f32
    %71 = arith.divf %63, %70 : f32
    %72 = tpu.iota {dimensions = array<i32: 1>} : vector<32x128xi32>
    %c5_i32 = arith.constant 5 : i32
    %73 = vector.broadcast %c5_i32 : i32 to vector<32x128xi32>
    %74 = arith.cmpi slt, %72, %73 : vector<32x128xi32>
    %cst_41 = arith.constant -1.000000e+30 : f32
    %75 = vector.broadcast %cst_41 : f32 to vector<32x128xf32>
    %76 = arith.select %74, %13, %75 : vector<32x128xi1>, vector<32x128xf32>
    %cst_42 = arith.constant dense<0xFF800000> : vector<32xf32>
    %77 = vector.multi_reduction <maximumf>, %76, %cst_42 [1] : vector<32x128xf32> to vector<32xf32>
    %78 = vector.shape_cast %77 : vector<32xf32> to vector<32x1xf32>
    %79 = vector.broadcast %78 : vector<32x1xf32> to vector<32x128xf32>
    %80 = arith.subf %76, %79 : vector<32x128xf32>
    %81 = math.exp %80 : vector<32x128xf32>
    %cst_43 = arith.constant dense<0.000000e+00> : vector<32xf32>
    %82 = vector.multi_reduction <add>, %81, %cst_43 [1] : vector<32x128xf32> to vector<32xf32>
    %83 = vector.shape_cast %82 : vector<32xf32> to vector<32x1xf32>
    %84 = math.log %83 : vector<32x1xf32>
    %85 = arith.addf %78, %84 : vector<32x1xf32>
    %c0_44 = arith.constant 0 : index
    %c0_45 = arith.constant 0 : index
    %c0_46 = arith.constant 0 : index
    %86 = vector.load %arg7[%c0_44, %c0_45, %c0_46] : memref<3x32x128xf32, #tpu.memory_space<vmem>>, vector<1x32x128xf32>
    %87 = vector.shape_cast %86 : vector<1x32x128xf32> to vector<32x128xf32>
    %88 = arith.mulf %87, %13 : vector<32x128xf32>
    %cst_47 = arith.constant dense<0.000000e+00> : vector<32xf32>
    %89 = vector.multi_reduction <add>, %88, %cst_47 [1] : vector<32x128xf32> to vector<32xf32>
    %90 = vector.shape_cast %89 : vector<32xf32> to vector<32x1xf32>
    %91 = arith.subf %85, %90 : vector<32x1xf32>
    %92 = vector.shape_cast %91 : vector<32x1xf32> to vector<1x32x1xf32>
    %cst_48 = arith.constant dense<0.000000e+00> : vector<1xf32>
    %93 = vector.multi_reduction <add>, %92, %cst_48 [1, 2] : vector<1x32x1xf32> to vector<1xf32>
    %94 = vector.shape_cast %93 : vector<1xf32> to vector<1x1x1xf32>
    %95 = vector.extract %94[0, 0, 0] : f32 from vector<1x1x1xf32>
    %cst_49 = arith.constant 3.200000e+01 : f32
    %96 = arith.divf %95, %cst_49 : f32
    %c2_50 = arith.constant 2 : index
    %c0_51 = arith.constant 0 : index
    %c0_52 = arith.constant 0 : index
    %97 = vector.load %arg7[%c2_50, %c0_51, %c0_52] : memref<3x32x128xf32, #tpu.memory_space<vmem>>, vector<1x32x128xf32>
    %98 = vector.shape_cast %97 : vector<1x32x128xf32> to vector<32x128xf32>
    %99 = arith.subf %13, %98 : vector<32x128xf32>
    %100 = math.absf %99 : vector<32x128xf32>
    %c1_53 = arith.constant 1 : index
    %c0_54 = arith.constant 0 : index
    %c0_55 = arith.constant 0 : index
    %101 = vector.load %arg7[%c1_53, %c0_54, %c0_55] : memref<3x32x128xf32, #tpu.memory_space<vmem>>, vector<1x32x128xf32>
    %102 = vector.shape_cast %101 : vector<1x32x128xf32> to vector<32x128xf32>
    %cst_56 = arith.constant 1.000000e+00 : f32
    %103 = vector.broadcast %cst_56 : f32 to vector<32x128xf32>
    %104 = arith.cmpf olt, %100, %103 : vector<32x128xf32>
    %cst_57 = arith.constant 5.000000e-01 : f32
    %105 = vector.broadcast %cst_57 : f32 to vector<32x128xf32>
    %106 = arith.mulf %105, %100 : vector<32x128xf32>
    %107 = arith.mulf %106, %100 : vector<32x128xf32>
    %cst_58 = arith.constant 5.000000e-01 : f32
    %108 = vector.broadcast %cst_58 : f32 to vector<32x128xf32>
    %109 = arith.subf %100, %108 : vector<32x128xf32>
    %110 = arith.select %104, %107, %109 : vector<32x128xi1>, vector<32x128xf32>
    %111 = arith.mulf %110, %102 : vector<32x128xf32>
    %112 = vector.shape_cast %111 : vector<32x128xf32> to vector<1x32x128xf32>
    %cst_59 = arith.constant dense<0.000000e+00> : vector<1xf32>
    %113 = vector.multi_reduction <add>, %112, %cst_59 [1, 2] : vector<1x32x128xf32> to vector<1xf32>
    %114 = vector.shape_cast %113 : vector<1xf32> to vector<1x1x1xf32>
    %115 = vector.extract %114[0, 0, 0] : f32 from vector<1x1x1xf32>
    %116 = vector.shape_cast %102 : vector<32x128xf32> to vector<1x32x128xf32>
    %cst_60 = arith.constant dense<0.000000e+00> : vector<1xf32>
    %117 = vector.multi_reduction <add>, %116, %cst_60 [1, 2] : vector<1x32x128xf32> to vector<1xf32>
    %118 = vector.shape_cast %117 : vector<1xf32> to vector<1x1x1xf32>
    %119 = vector.extract %118[0, 0, 0] : f32 from vector<1x1x1xf32>
    %cst_61 = arith.constant 2.500000e-01 : f32
    %120 = arith.mulf %cst_61, %119 : f32
    %cst_62 = arith.constant 1.000000e+00 : f32
    %121 = arith.maximumf %120, %cst_62 : f32
    %cst_63 = arith.constant 4.000000e+00 : f32
    %122 = arith.mulf %cst_63, %121 : f32
    %123 = arith.divf %115, %122 : f32
    %124 = arith.addf %42, %71 : f32
    %125 = arith.addf %124, %96 : f32
    %126 = arith.addf %125, %123 : f32
    %cst_64 = arith.constant 1.000000e+00 : f32
    %127 = arith.mulf %cst_64, %126 : f32
    %c0_65 = arith.constant 0 : index
    %c0_66 = arith.constant 0 : index
    %128 = memref.load %arg8[%c0_65, %c0_66] : memref<1x1xf32, #tpu.memory_space<smem>>
    memref.store %127, %arg8[%c0_65, %c0_66] : memref<1x1xf32, #tpu.memory_space<smem>>
    return
  }
}

</mosaic_0001>

<llo_original>
// kernel: faster_rcnn_forward.2
$region0: #{faster_rcnn_forward.2}
  #allocation0 [shape = 'u32[]', space=smem, size = 0x4, offset = 0x4, fixed_abs, tag = 'smem constant byte address 0x4 - core index']
  #allocation1 [shape = 'u32[144,128]{1,0:T(1,128)}', space=vmem, size = 0x12000, scoped, tag = 'internal scratch']
  #allocation2 [shape = 'f32[2,10,10,64]{3,2,1,0:T(8,128)}', space=vmem, size = 0x28000, scoped, tag = 'scratch operand']
  %s0 = inlined_call_operand.vmem [shape: bf16[128,32], index: 0, kind: input, shape index: {}]
  %s1 = inlined_call_operand.vmem [shape: bf16[32,64], index: 1, kind: input, shape index: {}]
  %s2 = inlined_call_operand.vmem [shape: f32[1,64], index: 2, kind: input, shape index: {}]
  %s3 = inlined_call_operand.vmem [shape: bf16[576,128], index: 3, kind: input, shape index: {}]
  %s4 = inlined_call_operand.vmem [shape: f32[1,128], index: 4, kind: input, shape index: {}]
  %s5 = inlined_call_operand.vmem [shape: bf16[128,128], index: 5, kind: input, shape index: {}]
  %s6 = inlined_call_operand.vmem [shape: f32[1,128], index: 6, kind: input, shape index: {}]
  %s7 = inlined_call_operand.vmem [shape: f32[128,128], index: 7, kind: output, shape index: {0}]
  %s8 = inlined_call_operand.vmem [shape: bf16[128,64], index: 8, kind: output, shape index: {1}]
  %9 = xla_tuple %s7, %s8
  %s10 = sld [smem:[#allocation0]]
  $region46: #{faster_rcnn_forward.2} parent=0
    _
  %s12 = ssub.s32 1, %s10
  %s13 = scalar_select 0, %s12, %s10
  // Predicated region
  $region2: #{faster_rcnn_forward.2} parent=0 // pred_check
    _
  $region3: #{faster_rcnn_forward.2} parent=0 // pred_check_branch
    %15 = sbr.rel (0) target = $region5
  $region4: #{faster_rcnn_forward.2} parent=0 // pred_region
    _
  $region5: #{faster_rcnn_forward.2} parent=0 // pred_fallthru
    _
  // Predicated region
  $region6: #{faster_rcnn_forward.2} parent=0 // pred_check
    _
  $region7: #{faster_rcnn_forward.2} parent=0 // pred_check_branch
    %17 = sbr.rel (0) target = $region9
  $region8: #{faster_rcnn_forward.2} parent=0 // pred_region
    _
  $region9: #{faster_rcnn_forward.2} parent=0 // pred_fallthru
    _
  // Predicated region
  $region10: #{faster_rcnn_forward.2} parent=0 // pred_check
    _
  $region11: #{faster_rcnn_forward.2} parent=0 // pred_check_branch
    %19 = sbr.rel (0) target = $region13
  $region12: #{faster_rcnn_forward.2} parent=0 // pred_region
    _
  $region13: #{faster_rcnn_forward.2} parent=0 // pred_fallthru
    _
  // Predicated region
  $region14: #{faster_rcnn_forward.2} parent=0 // pred_check
    _
  $region15: #{faster_rcnn_forward.2} parent=0 // pred_check_branch
    %21 = sbr.rel (0) target = $region17
  $region16: #{faster_rcnn_forward.2} parent=0 // pred_region
    _
  $region17: #{faster_rcnn_forward.2} parent=0 // pred_fallthru
    _
  // Predicated region
  $region18: #{faster_rcnn_forward.2} parent=0 // pred_check
    _
  $region19: #{faster_rcnn_forward.2} parent=0 // pred_check_branch
    %23 = sbr.rel (0) target = $region21
  $region20: #{faster_rcnn_forward.2} parent=0 // pred_region
    _
  $region21: #{faster_rcnn_forward.2} parent=0 // pred_fallthru
    _
  // Predicated region
  $region22: #{faster_rcnn_forward.2} parent=0 // pred_check
    _
  $region23: #{faster_rcnn_forward.2} parent=0 // pred_check_branch
    %25 = sbr.rel (0) target = $region25
  $region24: #{faster_rcnn_forward.2} parent=0 // pred_region
    _
  $region25: #{faster_rcnn_forward.2} parent=0 // pred_fallthru
    _
  // Predicated region
  $region26: #{faster_rcnn_forward.2} parent=0 // pred_check
    _
  $region27: #{faster_rcnn_forward.2} parent=0 // pred_check_branch
    %27 = sbr.rel (0) target = $region29
  $region28: #{faster_rcnn_forward.2} parent=0 // pred_region
    _
  $region29: #{faster_rcnn_forward.2} parent=0 // pred_fallthru
    _
  %v29 = vld [vmem:[%s0] sm:$0xf]
  %v30 = vld [vmem:[%s0 + $0x4] sm:$0xf]
  %v31 = vld [vmem:[%s0 + $0x8] sm:$0xf]
  %v32 = vld [vmem:[%s0 + $0xc] sm:$0xf]
  %v33 = vld [vmem:[%s0 + $0x10] sm:$0xf]
  %v34 = vld [vmem:[%s0 + $0x14] sm:$0xf]
  %v35 = vld [vmem:[%s0 + $0x18] sm:$0xf]
  %v36 = vld [vmem:[%s0 + $0x1c] sm:$0xf]
  %v37 = vld [vmem:[%s0 + $0x20] sm:$0xf]
  %v38 = vld [vmem:[%s0 + $0x24] sm:$0xf]
  %v39 = vld [vmem:[%s0 + $0x28] sm:$0xf]
  %v40 = vld [vmem:[%s0 + $0x2c] sm:$0xf]
  %v41 = vld [vmem:[%s0 + $0x30] sm:$0xf]
  %v42 = vld [vmem:[%s0 + $0x34] sm:$0xf]
  %v43 = vld [vmem:[%s0 + $0x38] sm:$0xf]
  %v44 = vld [vmem:[%s0 + $0x3c] sm:$0xf]
  %v45 = vld [vmem:[%s1] sm:$0xf]
  %v46 = vld [vmem:[%s1 + $0x4] sm:$0xf]
  %v47 = vld [vmem:[%s1 + $0x8] sm:$0xf]
  %v48 = vld [vmem:[%s1 + $0xc] sm:$0xf]
  %v49 = vld [vmem:[%s2] sm:$0x1]
  %v51 = vlaneseq
  %v52 = vshrl.u32 %v51, 7
  %v53 = vsub.s32 0, %v52
  %v54 = vrot.slane %v49, %v53
  %v72 = vunpack.c.l.b16 %v29
  %v73 = vunpack.c.l.b16 %v30
  %v74 = vunpack.c.l.b16 %v31
  %v75 = vunpack.c.l.b16 %v32
  %v76 = vunpack.c.l.b16 %v33
  %v77 = vunpack.c.l.b16 %v34
  %v78 = vunpack.c.l.b16 %v35
  %v79 = vunpack.c.l.b16 %v36
  %v80 = vunpack.c.l.b16 %v37
  %v81 = vunpack.c.l.b16 %v38
  %v82 = vunpack.c.l.b16 %v39
  %v83 = vunpack.c.l.b16 %v40
  %v84 = vunpack.c.l.b16 %v41
  %v85 = vunpack.c.l.b16 %v42
  %v86 = vunpack.c.l.b16 %v43
  %v87 = vunpack.c.l.b16 %v44
  %v88 = vpack.c.b16 %v73, %v72
  %v89 = vpack.c.b16 %v75, %v74
  %v90 = vpack.c.b16 %v77, %v76
  %v91 = vpack.c.b16 %v79, %v78
  %v92 = vpack.c.b16 %v81, %v80
  %v93 = vpack.c.b16 %v83, %v82
  %v94 = vpack.c.b16 %v85, %v84
  %v95 = vpack.c.b16 %v87, %v86
  %v100 = vunpack.c.l.b16 %v45
  %v101 = vunpack.c.l.b16 %v46
  %v102 = vunpack.c.l.b16 %v47
  %v103 = vunpack.c.l.b16 %v48
  %v104 = vpack.c.b16 %v101, %v100
  %v105 = vpack.c.b16 %v103, %v102
  %vm108 = vcmask 261120
  %v110 = vsel %vm108, %v88, 0
  %v113 = vsel %vm108, %v89, 0
  %v116 = vsel %vm108, %v90, 0
  %v119 = vsel %vm108, %v91, 0
  %v122 = vsel %vm108, %v92, 0
  %v125 = vsel %vm108, %v93, 0
  %v128 = vsel %vm108, %v94, 0
  %v131 = vsel %vm108, %v95, 0
  %133 = vmatprep.subr.bf16.mxu0 0
  %134 = vmatpush1.bf16.msra.mxu0 %v104
  %135 = vmatprep.subr.bf16.mxu0 0
  %136 = vmatpush1.bf16.msra.mxu0 %v105
  %137 = vmatprep.subr.bf16.mxu0 0
  %138 = vmatpush1.bf16.msra.mxu0 0
  %139 = vmatprep.subr.bf16.mxu0 0
  %140 = vmatpush1.bf16.msra.mxu0 0
  %141 = vmatprep.subr.bf16.mxu0 0
  %142 = vmatpush1.bf16.msra.mxu0 0
  %143 = vmatprep.subr.bf16.mxu0 0
  %144 = vmatpush1.bf16.msra.mxu0 0
  %145 = vmatprep.subr.bf16.mxu0 0
  %146 = vmatpush1.bf16.msra.mxu0 0
  %147 = vmatprep.subr.bf16.mxu0 0
  %148 = vmatpush1.bf16.msra.mxu0 0
  %149 = vmatprep.subr.bf16.mxu0 0
  %150 = vmatpush1.bf16.msra.mxu0 0
  %151 = vmatprep.subr.bf16.mxu0 0
  %152 = vmatpush1.bf16.msra.mxu0 0
  %153 = vmatprep.subr.bf16.mxu0 0
  %154 = vmatpush1.bf16.msra.mxu0 0
  %155 = vmatprep.subr.bf16.mxu0 0
  %156 = vmatpush1.bf16.msra.mxu0 0
  %157 = vmatprep.subr.bf16.mxu0 0
  %158 = vmatpush1.bf16.msra.mxu0 0
  %159 = vmatprep.subr.bf16.mxu0 0
  %160 = vmatpush1.bf16.msra.mxu0 0
  %161 = vmatprep.subr.bf16.mxu0 0
  %162 = vmatpush1.bf16.msra.mxu0 0
  %163 = vmatprep.subr.bf16.mxu0 0
  %164 = vmatpush1.bf16.msra.mxu0 0
  %165 = vmatprep.mubr.bf16.mxu0 0
  %166 = vmatmul.mubr.bf16.gmra.mrb[0].mxu0 %v110
  %v167 = vpop.f32.mrb[0].mxu0
  %v168 = vadd.f32 %v54, %v167
  %v169 = vpop.f32.mrb[0].mxu0
  %v170 = vpop.f32.mrb[0].mxu0
  %v171 = vadd.f32 %v54, %v170
  %v172 = vpop.f32.mrb[0].mxu0
  %173 = vmatprep.mubr.bf16.mxu0 0
  %174 = vmatmul.mubr.bf16.gmra.mrb[0].mxu0 %v113
  %v175 = vpop.f32.mrb[0].mxu0
  %v176 = vadd.f32 %v54, %v175
  %v177 = vpop.f32.mrb[0].mxu0
  %v178 = vpop.f32.mrb[0].mxu0
  %v179 = vadd.f32 %v54, %v178
  %v180 = vpop.f32.mrb[0].mxu0
  %181 = vmatprep.mubr.bf16.mxu0 0
  %182 = vmatmul.mubr.bf16.gmra.mrb[0].mxu0 %v116
  %v183 = vpop.f32.mrb[0].mxu0
  %v184 = vadd.f32 %v54, %v183
  %v185 = vpop.f32.mrb[0].mxu0
  %v186 = vpop.f32.mrb[0].mxu0
  %v187 = vadd.f32 %v54, %v186
  %v188 = vpop.f32.mrb[0].mxu0
  %189 = vmatprep.mubr.bf16.mxu0 0
  %190 = vmatmul.mubr.bf16.gmra.mrb[0].mxu0 %v119
  %v191 = vpop.f32.mrb[0].mxu0
  %v192 = vadd.f32 %v54, %v191
  %v193 = vpop.f32.mrb[0].mxu0
  %v194 = vpop.f32.mrb[0].mxu0
  %v195 = vadd.f32 %v54, %v194
  %v196 = vpop.f32.mrb[0].mxu0
  %197 = vmatprep.mubr.bf16.mxu0 0
  %198 = vmatmul.mubr.bf16.gmra.mrb[0].mxu0 %v122
  %v199 = vpop.f32.mrb[0].mxu0
  %v200 = vadd.f32 %v54, %v199
  %v201 = vpop.f32.mrb[0].mxu0
  %v202 = vpop.f32.mrb[0].mxu0
  %v203 = vadd.f32 %v54, %v202
  %v204 = vpop.f32.mrb[0].mxu0
  %205 = vmatprep.mubr.bf16.mxu0 0
  %206 = vmatmul.mubr.bf16.gmra.mrb[0].mxu0 %v125
  %v207 = vpop.f32.mrb[0].mxu0
  %v208 = vadd.f32 %v54, %v207
  %v209 = vpop.f32.mrb[0].mxu0
  %v210 = vpop.f32.mrb[0].mxu0
  %v211 = vadd.f32 %v54, %v210
  %v212 = vpop.f32.mrb[0].mxu0
  %213 = vmatprep.mubr.bf16.mxu0 0
  %214 = vmatmul.mubr.bf16.gmra.mrb[0].mxu0 %v128
  %v215 = vpop.f32.mrb[0].mxu0
  %v216 = vadd.f32 %v54, %v215
  %v217 = vpop.f32.mrb[0].mxu0
  %v218 = vpop.f32.mrb[0].mxu0
  %v219 = vadd.f32 %v54, %v218
  %v220 = vpop.f32.mrb[0].mxu0
  %221 = vmatprep.mubr.bf16.mxu0 0
  %222 = vmatmul.mubr.bf16.gmra.mrb[0].mxu0 %v131
  %v223 = vpop.f32.mrb[0].mxu0
  %v224 = vadd.f32 %v54, %v223
  %v225 = vpop.f32.mrb[0].mxu0
  %v226 = vpop.f32.mrb[0].mxu0
  %v227 = vadd.f32 %v54, %v226
  %v228 = vpop.f32.mrb[0].mxu0
  %229 = vdwg.mxu0
  %v230 = vmax.f32 %v168, 0.0
  %v231 = vmax.f32 %v171, 0.0
  %v232 = vmax.f32 %v176, 0.0
  %v233 = vmax.f32 %v179, 0.0
  %v234 = vmax.f32 %v184, 0.0
  %v235 = vmax.f32 %v187, 0.0
  %v236 = vmax.f32 %v192, 0.0
  %v237 = vmax.f32 %v195, 0.0
  %v238 = vmax.f32 %v200, 0.0
  %v239 = vmax.f32 %v203, 0.0
  %v240 = vmax.f32 %v208, 0.0
  %v241 = vmax.f32 %v211, 0.0
  %v242 = vmax.f32 %v216, 0.0
  %v243 = vmax.f32 %v219, 0.0
  %v244 = vmax.f32 %v224, 0.0
  %v245 = vmax.f32 %v227, 0.0
  %v246 = vpack.c.bf16 %v231, %v230
  %v247 = vpack.c.bf16 %v233, %v232
  %v248 = vpack.c.bf16 %v235, %v234
  %v249 = vpack.c.bf16 %v237, %v236
  %v250 = vpack.c.bf16 %v239, %v238
  %v251 = vpack.c.bf16 %v241, %v240
  %v252 = vpack.c.bf16 %v243, %v242
  %v253 = vpack.c.bf16 %v245, %v244
  %v262 = vunpack.c.l.b16 %v246
  %v263 = vunpack.c.h.b16 %v246
  %v264 = vunpack.c.l.b16 %v247
  %v265 = vunpack.c.h.b16 %v247
  %v266 = vunpack.c.l.b16 %v248
  %v267 = vunpack.c.h.b16 %v248
  %v268 = vunpack.c.l.b16 %v249
  %v269 = vunpack.c.h.b16 %v249
  %v270 = vunpack.c.l.b16 %v250
  %v271 = vunpack.c.h.b16 %v250
  %v272 = vunpack.c.l.b16 %v251
  %v273 = vunpack.c.h.b16 %v251
  %v274 = vunpack.c.l.b16 %v252
  %v275 = vunpack.c.h.b16 %v252
  %v276 = vunpack.c.l.b16 %v253
  %v277 = vunpack.c.h.b16 %v253
  %v278 = vpack.c.b16 %v262, %v262
  %v279 = vpack.c.b16 %v263, %v263
  %v280 = vpack.c.b16 %v264, %v264
  %v281 = vpack.c.b16 %v265, %v265
  %v282 = vpack.c.b16 %v266, %v266
  %v283 = vpack.c.b16 %v267, %v267
  %v284 = vpack.c.b16 %v268, %v268
  %v285 = vpack.c.b16 %v269, %v269
  %v286 = vpack.c.b16 %v270, %v270
  %v287 = vpack.c.b16 %v271, %v271
  %v288 = vpack.c.b16 %v272, %v272
  %v289 = vpack.c.b16 %v273, %v273
  %v290 = vpack.c.b16 %v274, %v274
  %v291 = vpack.c.b16 %v275, %v275
  %v292 = vpack.c.b16 %v276, %v276
  %v293 = vpack.c.b16 %v277, %v277
  %vm310 = vcmask 519168
  %311 = vst.msk [vmem:[%s8] sm:$0xf] %vm310, %v278
  %312 = vst.msk [vmem:[%s8 + $0x4] sm:$0xf] %vm310, %v279
  %313 = vst.msk [vmem:[%s8 + $0x8] sm:$0xf] %vm310, %v280
  %314 = vst.msk [vmem:[%s8 + $0xc] sm:$0xf] %vm310, %v281
  %315 = vst.msk [vmem:[%s8 + $0x10] sm:$0xf] %vm310, %v282
  %316 = vst.msk [vmem:[%s8 + $0x14] sm:$0xf] %vm310, %v283
  %317 = vst.msk [vmem:[%s8 + $0x18] sm:$0xf] %vm310, %v284
  %318 = vst.msk [vmem:[%s8 + $0x1c] sm:$0xf] %vm310, %v285
  %319 = vst.msk [vmem:[%s8 + $0x20] sm:$0xf] %vm310, %v286
  %320 = vst.msk [vmem:[%s8 + $0x24] sm:$0xf] %vm310, %v287
  %321 = vst.msk [vmem:[%s8 + $0x28] sm:$0xf] %vm310, %v288
  %322 = vst.msk [vmem:[%s8 + $0x2c] sm:$0xf] %vm310, %v289
  %323 = vst.msk [vmem:[%s8 + $0x30] sm:$0xf] %vm310, %v290
  %324 = vst.msk [vmem:[%s8 + $0x34] sm:$0xf] %vm310, %v291
  %325 = vst.msk [vmem:[%s8 + $0x38] sm:$0xf] %vm310, %v292
  %326 = vst.msk [vmem:[%s8 + $0x3c] sm:$0xf] %vm310, %v293
  %vm327 = vcmask 523264
  %328 = vst.msk [vmem:[#allocation2] sm:$0xff] %vm327, 0.0
  %vm329 = vcmask 517120
  %330 = vst.msk [vmem:[#allocation2 + $0x8] sm:$0x3] %vm329, 0.0
  %331 = vst.msk [vmem:[#allocation2 + $0x10] sm:$0xff] %vm327, 0.0
  %332 = vst.msk [vmem:[#allocation2 + $0x18] sm:$0x3] %vm329, 0.0
  %333 = vst.msk [vmem:[#allocation2 + $0x20] sm:$0xff] %vm327, 0.0
  %334 = vst.msk [vmem:[#allocation2 + $0x28] sm:$0x3] %vm329, 0.0
  %335 = vst.msk [vmem:[#allocation2 + $0x30] sm:$0xff] %vm327, 0.0
  %336 = vst.msk [vmem:[#allocation2 + $0x38] sm:$0x3] %vm329, 0.0
  %337 = vst.msk [vmem:[#allocation2 + $0x40] sm:$0xff] %vm327, 0.0
  %338 = vst.msk [vmem:[#allocation2 + $0x48] sm:$0x3] %vm329, 0.0
  %339 = vst.msk [vmem:[#allocation2 + $0x50] sm:$0xff] %vm327, 0.0
  %340 = vst.msk [vmem:[#allocation2 + $0x58] sm:$0x3] %vm329, 0.0
  %341 = vst.msk [vmem:[#allocation2 + $0x60] sm:$0xff] %vm327, 0.0
  %342 = vst.msk [vmem:[#allocation2 + $0x68] sm:$0x3] %vm329, 0.0
  %343 = vst.msk [vmem:[#allocation2 + $0x70] sm:$0xff] %vm327, 0.0
  %344 = vst.msk [vmem:[#allocation2 + $0x78] sm:$0x3] %vm329, 0.0
  %345 = vst.msk [vmem:[#allocation2 + $0x80] sm:$0xff] %vm327, 0.0
  %346 = vst.msk [vmem:[#allocation2 + $0x88] sm:$0x3] %vm329, 0.0
  %347 = vst.msk [vmem:[#allocation2 + $0x90] sm:$0xff] %vm327, 0.0
  %348 = vst.msk [vmem:[#allocation2 + $0x98] sm:$0x3] %vm329, 0.0
  %349 = vst.msk [vmem:[#allocation2 + $0xa0] sm:$0xff] %vm327, 0.0
  %350 = vst.msk [vmem:[#allocation2 + $0xa8] sm:$0x3] %vm329, 0.0
  %351 = vst.msk [vmem:[#allocation2 + $0xb0] sm:$0xff] %vm327, 0.0
  %352 = vst.msk [vmem:[#allocation2 + $0xb8] sm:$0x3] %vm329, 0.0
  %353 = vst.msk [vmem:[#allocation2 + $0xc0] sm:$0xff] %vm327, 0.0
  %354 = vst.msk [vmem:[#allocation2 + $0xc8] sm:$0x3] %vm329, 0.0
  %355 = vst.msk [vmem:[#allocation2 + $0xd0] sm:$0xff] %vm327, 0.0
  %356 = vst.msk [vmem:[#allocation2 + $0xd8] sm:$0x3] %vm329, 0.0
  %357 = vst.msk [vmem:[#allocation2 + $0xe0] sm:$0xff] %vm327, 0.0
  %358 = vst.msk [vmem:[#allocation2 + $0xe8] sm:$0x3] %vm329, 0.0
  %359 = vst.msk [vmem:[#allocation2 + $0xf0] sm:$0xff] %vm327, 0.0
  %360 = vst.msk [vmem:[#allocation2 + $0xf8] sm:$0x3] %vm329, 0.0
  %361 = vst.msk [vmem:[#allocation2 + $0x100] sm:$0xff] %vm327, 0.0
  %362 = vst.msk [vmem:[#allocation2 + $0x108] sm:$0x3] %vm329, 0.0
  %363 = vst.msk [vmem:[#allocation2 + $0x110] sm:$0xff] %vm327, 0.0
  %364 = vst.msk [vmem:[#allocation2 + $0x118] sm:$0x3] %vm329, 0.0
  %365 = vst.msk [vmem:[#allocation2 + $0x120] sm:$0xff] %vm327, 0.0
  %366 = vst.msk [vmem:[#allocation2 + $0x128] sm:$0x3] %vm329, 0.0
  %367 = vst.msk [vmem:[#allocation2 + $0x130] sm:$0xff] %vm327, 0.0
  %368 = vst.msk [vmem:[#allocation2 + $0x138] sm:$0x3] %vm329, 0.0
  %s369 = scalar_lea.vmem [#allocation2], 16
  %370 = vst.msk [vmem:[%s369 + $0x1] sm:$0xff] %vm327, %v230
  %371 = vst.msk [vmem:[%s369 + $0x11] sm:$0xff] %vm327, %v231
  %372 = vst.msk [vmem:[%s369 + $0x21] sm:$0xff] %vm327, %v232
  %373 = vst.msk [vmem:[%s369 + $0x31] sm:$0xff] %vm327, %v233
  %374 = vst.msk [vmem:[%s369 + $0x41] sm:$0xff] %vm327, %v234
  %375 = vst.msk [vmem:[%s369 + $0x51] sm:$0xff] %vm327, %v235
  %376 = vst.msk [vmem:[%s369 + $0x61] sm:$0xff] %vm327, %v236
  %377 = vst.msk [vmem:[%s369 + $0x71] sm:$0xff] %vm327, %v237
  %378 = vst.msk [vmem:[%s369 + $0xa1] sm:$0xff] %vm327, %v238
  %379 = vst.msk [vmem:[%s369 + $0xb1] sm:$0xff] %vm327, %v239
  %380 = vst.msk [vmem:[%s369 + $0xc1] sm:$0xff] %vm327, %v240
  %381 = vst.msk [vmem:[%s369 + $0xd1] sm:$0xff] %vm327, %v241
  %382 = vst.msk [vmem:[%s369 + $0xe1] sm:$0xff] %vm327, %v242
  %383 = vst.msk [vmem:[%s369 + $0xf1] sm:$0xff] %vm327, %v243
  %384 = vst.msk [vmem:[%s369 + $0x101] sm:$0xff] %vm327, %v244
  %385 = vst.msk [vmem:[%s369 + $0x111] sm:$0xff] %vm327, %v245
  %v386 = vld [vmem:[#allocation2] sm:$0xff]
  %v387 = vld [vmem:[#allocation2 + $0x10] sm:$0xff]
  %v388 = vld [vmem:[#allocation2 + $0x20] sm:$0xff]
  %v389 = vld [vmem:[#allocation2 + $0x30] sm:$0xff]
  %v390 = vld [vmem:[#allocation2 + $0x40] sm:$0xff]
  %v391 = vld [vmem:[#allocation2 + $0x50] sm:$0xff]
  %v392 = vld [vmem:[#allocation2 + $0x60] sm:$0xff]
  %v393 = vld [vmem:[#allocation2 + $0x70] sm:$0xff]
  %v394 = vld [vmem:[#allocation2 + $0xa0] sm:$0xff]
  %v395 = vld [vmem:[#allocation2 + $0xb0] sm:$0xff]
  %v396 = vld [vmem:[#allocation2 + $0xc0] sm:$0xff]
  %v397 = vld [vmem:[#allocation2 + $0xd0] sm:$0xff]
  %v398 = vld [vmem:[#allocation2 + $0xe0] sm:$0xff]
  %v399 = vld [vmem:[#allocation2 + $0xf0] sm:$0xff]
  %v400 = vld [vmem:[#allocation2 + $0x100] sm:$0xff]
  %v401 = vld [vmem:[#allocation2 + $0x110] sm:$0xff]
  %v402 = vpack.c.bf16 %v387, %v386
  %v403 = vpack.c.bf16 %v389, %v388
  %v404 = vpack.c.bf16 %v391, %v390
  %v405 = vpack.c.bf16 %v393, %v392
  %v406 = vpack.c.bf16 %v395, %v394
  %v407 = vpack.c.bf16 %v397, %v396
  %v408 = vpack.c.bf16 %v399, %v398
  %v409 = vpack.c.bf16 %v401, %v400
  %v410 = vld [vmem:[%s3] sm:$0xf]
  %v411 = vld [vmem:[%s3 + $0x4] sm:$0xf]
  %v412 = vld [vmem:[%s3 + $0x8] sm:$0xf]
  %v413 = vld [vmem:[%s3 + $0xc] sm:$0xf]
  %v414 = vld [vmem:[%s3 + $0x10] sm:$0xf]
  %v415 = vld [vmem:[%s3 + $0x14] sm:$0xf]
  %v416 = vld [vmem:[%s3 + $0x18] sm:$0xf]
  %v417 = vld [vmem:[%s3 + $0x1c] sm:$0xf]
  %v418 = vld [vmem:[#allocation2 + $0x1] sm:$0xff]
  %v419 = vld [vmem:[#allocation2 + $0x11] sm:$0xff]
  %v420 = vld [vmem:[#allocation2 + $0x21] sm:$0xff]
  %v421 = vld [vmem:[#allocation2 + $0x31] sm:$0xff]
  %v422 = vld [vmem:[#allocation2 + $0x41] sm:$0xff]
  %v423 = vld [vmem:[#allocation2 + $0x51] sm:$0xff]
  %v424 = vld [vmem:[#allocation2 + $0x61] sm:$0xff]
  %v425 = vld [vmem:[#allocation2 + $0x71] sm:$0xff]
  %v426 = vld [vmem:[#allocation2 + $0xa1] sm:$0xff]
  %v427 = vld [vmem:[#allocation2 + $0xb1] sm:$0xff]
  %v428 = vld [vmem:[#allocation2 + $0xc1] sm:$0xff]
  %v429 = vld [vmem:[#allocation2 + $0xd1] sm:$0xff]
  %v430 = vld [vmem:[#allocation2 + $0xe1] sm:$0xff]
  %v431 = vld [vmem:[#allocation2 + $0xf1] sm:$0xff]
  %v432 = vld [vmem:[#allocation2 + $0x101] sm:$0xff]
  %v433 = vld [vmem:[#allocation2 + $0x111] sm:$0xff]
  %v434 = vpack.c.bf16 %v419, %v418
  %v435 = vpack.c.bf16 %v421, %v420
  %v436 = vpack.c.bf16 %v423, %v422
  %v437 = vpack.c.bf16 %v425, %v424
  %v438 = vpack.c.bf16 %v427, %v426
  %v439 = vpack.c.bf16 %v429, %v428
  %v440 = vpack.c.bf16 %v431, %v430
  %v441 = vpack.c.bf16 %v433, %v432
  %v442 = vld [vmem:[%s3 + $0x20] sm:$0xf]
  %v443 = vld [vmem:[%s3 + $0x24] sm:$0xf]
  %v444 = vld [vmem:[%s3 + $0x28] sm:$0xf]
  %v445 = vld [vmem:[%s3 + $0x2c] sm:$0xf]
  %v446 = vld [vmem:[%s3 + $0x30] sm:$0xf]
  %v447 = vld [vmem:[%s3 + $0x34] sm:$0xf]
  %v448 = vld [vmem:[%s3 + $0x38] sm:$0xf]
  %v449 = vld [vmem:[%s3 + $0x3c] sm:$0xf]
  %v458 = vunpack.c.l.b16 %v442
  %v459 = vunpack.c.l.b16 %v443
  %v460 = vunpack.c.l.b16 %v444
  %v461 = vunpack.c.l.b16 %v445
  %v462 = vunpack.c.l.b16 %v446
  %v463 = vunpack.c.l.b16 %v447
  %v464 = vunpack.c.l.b16 %v448
  %v465 = vunpack.c.l.b16 %v449
  %v466 = vpack.c.b16 %v459, %v458
  %v467 = vpack.c.b16 %v461, %v460
  %v468 = vpack.c.b16 %v463, %v462
  %v469 = vpack.c.b16 %v465, %v464
  %v475 = vsel %vm327, %v434, 0
  %v478 = vsel %vm327, %v435, 0
  %v481 = vsel %vm327, %v436, 0
  %v484 = vsel %vm327, %v437, 0
  %v487 = vsel %vm327, %v438, 0
  %v490 = vsel %vm327, %v439, 0
  %v493 = vsel %vm327, %v440, 0
  %v496 = vsel %vm327, %v441, 0
  %498 = vmatprep.subr.bf16.mxu0 0
  %499 = vmatpush1.bf16.msra.mxu0 %v466
  %500 = vmatprep.subr.bf16.mxu0 0
  %501 = vmatpush1.bf16.msra.mxu0 %v467
  %502 = vmatprep.subr.bf16.mxu0 0
  %503 = vmatpush1.bf16.msra.mxu0 %v468
  %504 = vmatprep.subr.bf16.mxu0 0
  %505 = vmatpush1.bf16.msra.mxu0 %v469
  %506 = vmatprep.subr.bf16.mxu0 0
  %507 = vmatpush1.bf16.msra.mxu0 0
  %508 = vmatprep.subr.bf16.mxu0 0
  %509 = vmatpush1.bf16.msra.mxu0 0
  %510 = vmatprep.subr.bf16.mxu0 0
  %511 = vmatpush1.bf16.msra.mxu0 0
  %512 = vmatprep.subr.bf16.mxu0 0
  %513 = vmatpush1.bf16.msra.mxu0 0
  %514 = vmatprep.subr.bf16.mxu0 0
  %515 = vmatpush1.bf16.msra.mxu0 0
  %516 = vmatprep.subr.bf16.mxu0 0
  %517 = vmatpush1.bf16.msra.mxu0 0
  %518 = vmatprep.subr.bf16.mxu0 0
  %519 = vmatpush1.bf16.msra.mxu0 0
  %520 = vmatprep.subr.bf16.mxu0 0
  %521 = vmatpush1.bf16.msra.mxu0 0
  %522 = vmatprep.subr.bf16.mxu0 0
  %523 = vmatpush1.bf16.msra.mxu0 0
  %524 = vmatprep.subr.bf16.mxu0 0
  %525 = vmatpush1.bf16.msra.mxu0 0
  %526 = vmatprep.subr.bf16.mxu0 0
  %527 = vmatpush1.bf16.msra.mxu0 0
  %528 = vmatprep.subr.bf16.mxu0 0
  %529 = vmatpush1.bf16.msra.mxu0 0
  %530 = vmatprep.mubr.bf16.mxu0 0
  %531 = vmatmul.mubr.bf16.gmra.mrb[0].mxu0 %v475
  %v532 = vpop.f32.mrb[0].mxu0
  %v533 = vadd.f32 0.0, %v532
  %v534 = vpop.f32.mrb[0].mxu0
  %v535 = vpop.f32.mrb[0].mxu0
  %v536 = vadd.f32 0.0, %v535
  %v537 = vpop.f32.mrb[0].mxu0
  %538 = vmatprep.mubr.bf16.mxu0 0
  %539 = vmatmul.mubr.bf16.gmra.mrb[0].mxu0 %v478
  %v540 = vpop.f32.mrb[0].mxu0
  %v541 = vadd.f32 0.0, %v540
  %v542 = vpop.f32.mrb[0].mxu0
  %v543 = vpop.f32.mrb[0].mxu0
  %v544 = vadd.f32 0.0, %v543
  %v545 = vpop.f32.mrb[0].mxu0
  %546 = vmatprep.mubr.bf16.mxu0 0
  %547 = vmatmul.mubr.bf16.gmra.mrb[0].mxu0 %v481
  %v548 = vpop.f32.mrb[0].mxu0
  %v549 = vadd.f32 0.0, %v548
  %v550 = vpop.f32.mrb[0].mxu0
  %v551 = vpop.f32.mrb[0].mxu0
  %v552 = vadd.f32 0.0, %v551
  %v553 = vpop.f32.mrb[0].mxu0
  %554 = vmatprep.mubr.bf16.mxu0 0
  %555 = vmatmul.mubr.bf16.gmra.mrb[0].mxu0 %v484
  %v556 = vpop.f32.mrb[0].mxu0
  %v557 = vadd.f32 0.0, %v556
  %v558 = vpop.f32.mrb[0].mxu0
  %v559 = vpop.f32.mrb[0].mxu0
  %v560 = vadd.f32 0.0, %v559
  %v561 = vpop.f32.mrb[0].mxu0
  %562 = vmatprep.mubr.bf16.mxu0 0
  %563 = vmatmul.mubr.bf16.gmra.mrb[0].mxu0 %v487
  %v564 = vpop.f32.mrb[0].mxu0
  %v565 = vadd.f32 0.0, %v564
  %v566 = vpop.f32.mrb[0].mxu0
  %v567 = vpop.f32.mrb[0].mxu0
  %v568 = vadd.f32 0.0, %v567
  %v569 = vpop.f32.mrb[0].mxu0
  %570 = vmatprep.mubr.bf16.mxu0 0
  %571 = vmatmul.mubr.bf16.gmra.mrb[0].mxu0 %v490
  %v572 = vpop.f32.mrb[0].mxu0
  %v573 = vadd.f32 0.0, %v572
  %v574 = vpop.f32.mrb[0].mxu0
  %v575 = vpop.f32.mrb[0].mxu0
  %v576 = vadd.f32 0.0, %v575
  %v577 = vpop.f32.mrb[0].mxu0
  %578 = vmatprep.mubr.bf16.mxu0 0
  %579 = vmatmul.mubr.bf16.gmra.mrb[0].mxu0 %v493
  %v580 = vpop.f32.mrb[0].mxu0
  %v581 = vadd.f32 0.0, %v580
  %v582 = vpop.f32.mrb[0].mxu0
  %v583 = vpop.f32.mrb[0].mxu0
  %v584 = vadd.f32 0.0, %v583
  %v585 = vpop.f32.mrb[0].mxu0
  %586 = vmatprep.mubr.bf16.mxu0 0
  %587 = vmatmul.mubr.bf16.gmra.mrb[0].mxu0 %v496
  %v588 = vpop.f32.mrb[0].mxu0
  %v589 = vadd.f32 0.0, %v588
  %v590 = vpop.f32.mrb[0].mxu0
  %v591 = vpop.f32.mrb[0].mxu0
  %v592 = vadd.f32 0.0, %v591
  %v593 = vpop.f32.mrb[0].mxu0
  %594 = vdwg.mxu0
  %v603 = vunpack.c.l.b16 %v410
  %v604 = vunpack.c.l.b16 %v411
  %v605 = vunpack.c.l.b16 %v412
  %v606 = vunpack.c.l.b16 %v413
  %v607 = vunpack.c.l.b16 %v414
  %v608 = vunpack.c.l.b16 %v415
  %v609 = vunpack.c.l.b16 %v416
  %v610 = vunpack.c.l.b16 %v417
  %v611 = vpack.c.b16 %v604, %v603
  %v612 = vpack.c.b16 %v606, %v605
  %v613 = vpack.c.b16 %v608, %v607
  %v614 = vpack.c.b16 %v610, %v609
  %v620 = vsel %vm327, %v402, 0
  %v623 = vsel %vm327, %v403, 0
  %v626 = vsel %vm327, %v404, 0
  %v629 = vsel %vm327, %v405, 0
  %v632 = vsel %vm327, %v406, 0
  %v635 = vsel %vm327, %v407, 0
  %v638 = vsel %vm327, %v408, 0
  %v641 = vsel %vm327, %v409, 0
  %643 = vmatprep.subr.bf16.mxu0 0
  %644 = vmatpush1.bf16.msra.mxu0 %v611
  %645 = vmatprep.subr.bf16.mxu0 0
  %646 = vmatpush1.bf16.msra.mxu0 %v612
  %647 = vmatprep.subr.bf16.mxu0 0
  %648 = vmatpush1.bf16.msra.mxu0 %v613
  %649 = vmatprep.subr.bf16.mxu0 0
  %650 = vmatpush1.bf16.msra.mxu0 %v614
  %651 = vmatprep.subr.bf16.mxu0 0
  %652 = vmatpush1.bf16.msra.mxu0 0
  %653 = vmatprep.subr.bf16.mxu0 0
  %654 = vmatpush1.bf16.msra.mxu0 0
  %655 = vmatprep.subr.bf16.mxu0 0
  %656 = vmatpush1.bf16.msra.mxu0 0
  %657 = vmatprep.subr.bf16.mxu0 0
  %658 = vmatpush1.bf16.msra.mxu0 0
  %659 = vmatprep.subr.bf16.mxu0 0
  %660 = vmatpush1.bf16.msra.mxu0 0
  %661 = vmatprep.subr.bf16.mxu0 0
  %662 = vmatpush1.bf16.msra.mxu0 0
  %663 = vmatprep.subr.bf16.mxu0 0
  %664 = vmatpush1.bf16.msra.mxu0 0
  %665 = vmatprep.subr.bf16.mxu0 0
  %666 = vmatpush1.bf16.msra.mxu0 0
  %667 = vmatprep.subr.bf16.mxu0 0
  %668 = vmatpush1.bf16.msra.mxu0 0
  %669 = vmatprep.subr.bf16.mxu0 0
  %670 = vmatpush1.bf16.msra.mxu0 0
  %671 = vmatprep.subr.bf16.mxu0 0
  %672 = vmatpush1.bf16.msra.mxu0 0
  %673 = vmatprep.subr.bf16.mxu0 0
  %674 = vmatpush1.bf16.msra.mxu0 0
  %675 = vmatprep.mubr.bf16.mxu0 0
  %676 = vmatmul.mubr.bf16.gmra.mrb[0].mxu0 %v620
  %v677 = vpop.f32.mrb[0].mxu0
  %v678 = vadd.f32 %v533, %v677
  %v679 = vpop.f32.mrb[0].mxu0
  %v680 = vpop.f32.mrb[0].mxu0
  %v681 = vadd.f32 %v536, %v680
  %v682 = vpop.f32.mrb[0].mxu0
  %683 = vmatprep.mubr.bf16.mxu0 0
  %684 = vmatmul.mubr.bf16.gmra.mrb[0].mxu0 %v623
  %v685 = vpop.f32.mrb[0].mxu0
  %v686 = vadd.f32 %v541, %v685
  %v687 = vpop.f32.mrb[0].mxu0
  %v688 = vpop.f32.mrb[0].mxu0
  %v689 = vadd.f32 %v544, %v688
  %v690 = vpop.f32.mrb[0].mxu0
  %691 = vmatprep.mubr.bf16.mxu0 0
  %692 = vmatmul.mubr.bf16.gmra.mrb[0].mxu0 %v626
  %v693 = vpop.f32.mrb[0].mxu0
  %v694 = vadd.f32 %v549, %v693
  %v695 = vpop.f32.mrb[0].mxu0
  %v696 = vpop.f32.mrb[0].mxu0
  %v697 = vadd.f32 %v552, %v696
  %v698 = vpop.f32.mrb[0].mxu0
  %699 = vmatprep.mubr.bf16.mxu0 0
  %700 = vmatmul.mubr.bf16.gmra.mrb[0].mxu0 %v629
  %v701 = vpop.f32.mrb[0].mxu0
  %v702 = vadd.f32 %v557, %v701
  %v703 = vpop.f32.mrb[0].mxu0
  %v704 = vpop.f32.mrb[0].mxu0
  %v705 = vadd.f32 %v560, %v704
  %v706 = vpop.f32.mrb[0].mxu0
  %707 = vmatprep.mubr.bf16.mxu0 0
  %708 = vmatmul.mubr.bf16.gmra.mrb[0].mxu0 %v632
  %v709 = vpop.f32.mrb[0].mxu0
  %v710 = vadd.f32 %v565, %v709
  %v711 = vpop.f32.mrb[0].mxu0
  %v712 = vpop.f32.mrb[0].mxu0
  %v713 = vadd.f32 %v568, %v712
  %v714 = vpop.f32.mrb[0].mxu0
  %715 = vmatprep.mubr.bf16.mxu0 0
  %716 = vmatmul.mubr.bf16.gmra.mrb[0].mxu0 %v635
  %v717 = vpop.f32.mrb[0].mxu0
  %v718 = vadd.f32 %v573, %v717
  %v719 = vpop.f32.mrb[0].mxu0
  %v720 = vpop.f32.mrb[0].mxu0
  %v721 = vadd.f32 %v576, %v720
  %v722 = vpop.f32.mrb[0].mxu0
  %723 = vmatprep.mubr.bf16.mxu0 0
  %724 = vmatmul.mubr.bf16.gmra.mrb[0].mxu0 %v638
  %v725 = vpop.f32.mrb[0].mxu0
  %v726 = vadd.f32 %v581, %v725
  %v727 = vpop.f32.mrb[0].mxu0
  %v728 = vpop.f32.mrb[0].mxu0
  %v729 = vadd.f32 %v584, %v728
  %v730 = vpop.f32.mrb[0].mxu0
  %731 = vmatprep.mubr.bf16.mxu0 0
  %732 = vmatmul.mubr.bf16.gmra.mrb[0].mxu0 %v641
  %v733 = vpop.f32.mrb[0].mxu0
  %v734 = vadd.f32 %v589, %v733
  %v735 = vpop.f32.mrb[0].mxu0
  %v736 = vpop.f32.mrb[0].mxu0
  %v737 = vadd.f32 %v592, %v736
  %v738 = vpop.f32.mrb[0].mxu0
  %739 = vdwg.mxu0
  %v740 = vld [vmem:[#allocation2 + $0x2] sm:$0xff]
  %v741 = vld [vmem:[#allocation2 + $0x12] sm:$0xff]
  %v742 = vld [vmem:[#allocation2 + $0x22] sm:$0xff]
  %v743 = vld [vmem:[#allocation2 + $0x32] sm:$0xff]
  %v744 = vld [vmem:[#allocation2 + $0x42] sm:$0xff]
  %v745 = vld [vmem:[#allocation2 + $0x52] sm:$0xff]
  %v746 = vld [vmem:[#allocation2 + $0x62] sm:$0xff]
  %v747 = vld [vmem:[#allocation2 + $0x72] sm:$0xff]
  %v748 = vld [vmem:[#allocation2 + $0xa2] sm:$0xff]
  %v749 = vld [vmem:[#allocation2 + $0xb2] sm:$0xff]
  %v750 = vld [vmem:[#allocation2 + $0xc2] sm:$0xff]
  %v751 = vld [vmem:[#allocation2 + $0xd2] sm:$0xff]
  %v752 = vld [vmem:[#allocation2 + $0xe2] sm:$0xff]
  %v753 = vld [vmem:[#allocation2 + $0xf2] sm:$0xff]
  %v754 = vld [vmem:[#allocation2 + $0x102] sm:$0xff]
  %v755 = vld [vmem:[#allocation2 + $0x112] sm:$0xff]
  %v756 = vpack.c.bf16 %v741, %v740
  %v757 = vpack.c.bf16 %v743, %v742
  %v758 = vpack.c.bf16 %v745, %v744
  %v759 = vpack.c.bf16 %v747, %v746
  %v760 = vpack.c.bf16 %v749, %v748
  %v761 = vpack.c.bf16 %v751, %v750
  %v762 = vpack.c.bf16 %v753, %v752
  %v763 = vpack.c.bf16 %v755, %v754
  %v764 = vld [vmem:[%s3 + $0x40] sm:$0xf]
  %v765 = vld [vmem:[%s3 + $0x44] sm:$0xf]
  %v766 = vld [vmem:[%s3 + $0x48] sm:$0xf]
  %v767 = vld [vmem:[%s3 + $0x4c] sm:$0xf]
  %v768 = vld [vmem:[%s3 + $0x50] sm:$0xf]
  %v769 = vld [vmem:[%s3 + $0x54] sm:$0xf]
  %v770 = vld [vmem:[%s3 + $0x58] sm:$0xf]
  %v771 = vld [vmem:[%s3 + $0x5c] sm:$0xf]
  %v780 = vunpack.c.l.b16 %v764
  %v781 = vunpack.c.l.b16 %v765
  %v782 = vunpack.c.l.b16 %v766
  %v783 = vunpack.c.l.b16 %v767
  %v784 = vunpack.c.l.b16 %v768
  %v785 = vunpack.c.l.b16 %v769
  %v786 = vunpack.c.l.b16 %v770
  %v787 = vunpack.c.l.b16 %v771
  %v788 = vpack.c.b16 %v781, %v780
  %v789 = vpack.c.b16 %v783, %v782
  %v790 = vpack.c.b16 %v785, %v784
  %v791 = vpack.c.b16 %v787, %v786
  %v797 = vsel %vm327, %v756, 0
  %v800 = vsel %vm327, %v757, 0
  %v803 = vsel %vm327, %v758, 0
  %v806 = vsel %vm327, %v759, 0
  %v809 = vsel %vm327, %v760, 0
  %v812 = vsel %vm327, %v761, 0
  %v815 = vsel %vm327, %v762, 0
  %v818 = vsel %vm327, %v763, 0
  %820 = vmatprep.subr.bf16.mxu0 0
  %821 = vmatpush1.bf16.msra.mxu0 %v788
  %822 = vmatprep.subr.bf16.mxu0 0
  %823 = vmatpush1.bf16.msra.mxu0 %v789
  %824 = vmatprep.subr.bf16.mxu0 0
  %825 = vmatpush1.bf16.msra.mxu0 %v790
  %826 = vmatprep.subr.bf16.mxu0 0
  %827 = vmatpush1.bf16.msra.mxu0 %v791
  %828 = vmatprep.subr.bf16.mxu0 0
  %829 = vmatpush1.bf16.msra.mxu0 0
  %830 = vmatprep.subr.bf16.mxu0 0
  %831 = vmatpush1.bf16.msra.mxu0 0
  %832 = vmatprep.subr.bf16.mxu0 0
  %833 = vmatpush1.bf16.msra.mxu0 0
  %834 = vmatprep.subr.bf16.mxu0 0
  %835 = vmatpush1.bf16.msra.mxu0 0
  %836 = vmatprep.subr.bf16.mxu0 0
  %837 = vmatpush1.bf16.msra.mxu0 0
  %838 = vmatprep.subr.bf16.mxu0 0
  %839 = vmatpush1.bf16.msra.mxu0 0
  %840 = vmatprep.subr.bf16.mxu0 0
  %841 = vmatpush1.bf16.msra.mxu0 0
  %842 = vmatprep.subr.bf16.mxu0 0
  %843 = vmatpush1.bf16.msra.mxu0 0
  %844 = vmatprep.subr.bf16.mxu0 0
  %845 = vmatpush1.bf16.msra.mxu0 0
  %846 = vmatprep.subr.bf16.mxu0 0
  %847 = vmatpush1.bf16.msra.mxu0 0
  %848 = vmatprep.subr.bf16.mxu0 0
  %849 = vmatpush1.bf16.msra.mxu0 0
  %850 = vmatprep.subr.bf16.mxu0 0
  %851 = vmatpush1.bf16.msra.mxu0 0
  %852 = vmatprep.mubr.bf16.mxu0 0
  %853 = vmatmul.mubr.bf16.gmra.mrb[0].mxu0 %v797
  %v854 = vpop.f32.mrb[0].mxu0
  %v855 = vadd.f32 0.0, %v854
  %v856 = vpop.f32.mrb[0].mxu0
  %v857 = vpop.f32.mrb[0].mxu0
  %v858 = vadd.f32 0.0, %v857
  %v859 = vpop.f32.mrb[0].mxu0
  %860 = vmatprep.mubr.bf16.mxu0 0
  %861 = vmatmul.mubr.bf16.gmra.mrb[0].mxu0 %v800
  %v862 = vpop.f32.mrb[0].mxu0
  %v863 = vadd.f32 0.0, %v862
  %v864 = vpop.f32.mrb[0].mxu0
  %v865 = vpop.f32.mrb[0].mxu0
  %v866 = vadd.f32 0.0, %v865
  %v867 = vpop.f32.mrb[0].mxu0
  %868 = vmatprep.mubr.bf16.mxu0 0
  %869 = vmatmul.mubr.bf16.gmra.mrb[0].mxu0 %v803
  %v870 = vpop.f32.mrb[0].mxu0
  %v871 = vadd.f32 0.0, %v870
  %v872 = vpop.f32.mrb[0].mxu0
  %v873 = vpop.f32.mrb[0].mxu0
  %v874 = vadd.f32 0.0, %v873
  %v875 = vpop.f32.mrb[0].mxu0
  %876 = vmatprep.mubr.bf16.mxu0 0
  %877 = vmatmul.mubr.bf16.gmra.mrb[0].mxu0 %v806
  %v878 = vpop.f32.mrb[0].mxu0
  %v879 = vadd.f32 0.0, %v878
  %v880 = vpop.f32.mrb[0].mxu0
  %v881 = vpop.f32.mrb[0].mxu0
  %v882 = vadd.f32 0.0, %v881
  %v883 = vpop.f32.mrb[0].mxu0
  %884 = vmatprep.mubr.bf16.mxu0 0
  %885 = vmatmul.mubr.bf16.gmra.mrb[0].mxu0 %v809
  %v886 = vpop.f32.mrb[0].mxu0
  %v887 = vadd.f32 0.0, %v886
  %v888 = vpop.f32.mrb[0].mxu0
  %v889 = vpop.f32.mrb[0].mxu0
  %v890 = vadd.f32 0.0, %v889
  %v891 = vpop.f32.mrb[0].mxu0
  %892 = vmatprep.mubr.bf16.mxu0 0
  %893 = vmatmul.mubr.bf16.gmra.mrb[0].mxu0 %v812
  %v894 = vpop.f32.mrb[0].mxu0
  %v895 = vadd.f32 0.0, %v894
  %v896 = vpop.f32.mrb[0].mxu0
  %v897 = vpop.f32.mrb[0].mxu0
  %v898 = vadd.f32 0.0, %v897
  %v899 = vpop.f32.mrb[0].mxu0
  %900 = vmatprep.mubr.bf16.mxu0 0
  %901 = vmatmul.mubr.bf16.gmra.mrb[0].mxu0 %v815
  %v902 = vpop.f32.mrb[0].mxu0
  %v903 = vadd.f32 0.0, %v902
  %v904 = vpop.f32.mrb[0].mxu0
  %v905 = vpop.f32.mrb[0].mxu0
  %v906 = vadd.f32 0.0, %v905
  %v907 = vpop.f32.mrb[0].mxu0
  %908 = vmatprep.mubr.bf16.mxu0 0
  %909 = vmatmul.mubr.bf16.gmra.mrb[0].mxu0 %v818
  %v910 = vpop.f32.mrb[0].mxu0
  %v911 = vadd.f32 0.0, %v910
  %v912 = vpop.f32.mrb[0].mxu0
  %v913 = vpop.f32.mrb[0].mxu0
  %v914 = vadd.f32 0.0, %v913
  %v915 = vpop.f32.mrb[0].mxu0
  %916 = vdwg.mxu0
  %v917 = vadd.f32 %v678, %v855
  %v918 = vadd.f32 %v681, %v858
  %v919 = vadd.f32 %v686, %v863
  %v920 = vadd.f32 %v689, %v866
  %v921 = vadd.f32 %v694, %v871
  %v922 = vadd.f32 %v697, %v874
  %v923 = vadd.f32 %v702, %v879
  %v924 = vadd.f32 %v705, %v882
  %v925 = vadd.f32 %v710, %v887
  %v926 = vadd.f32 %v713, %v890
  %v927 = vadd.f32 %v718, %v895
  %v928 = vadd.f32 %v721, %v898
  %v929 = vadd.f32 %v726, %v903
  %v930 = vadd.f32 %v729, %v906
  %v931 = vadd.f32 %v734, %v911
  %v932 = vadd.f32 %v737, %v914
  %v933 = vld [vmem:[%s369] sm:$0xff]
  %v934 = vld [vmem:[%s369 + $0x10] sm:$0xff]
  %v935 = vld [vmem:[%s369 + $0x20] sm:$0xff]
  %v936 = vld [vmem:[%s369 + $0x30] sm:$0xff]
  %v937 = vld [vmem:[%s369 + $0x40] sm:$0xff]
  %v938 = vld [vmem:[%s369 + $0x50] sm:$0xff]
  %v939 = vld [vmem:[%s369 + $0x60] sm:$0xff]
  %v940 = vld [vmem:[%s369 + $0x70] sm:$0xff]
  %v941 = vld [vmem:[%s369 + $0xa0] sm:$0xff]
  %v942 = vld [vmem:[%s369 + $0xb0] sm:$0xff]
  %v943 = vld [vmem:[%s369 + $0xc0] sm:$0xff]
  %v944 = vld [vmem:[%s369 + $0xd0] sm:$0xff]
  %v945 = vld [vmem:[%s369 + $0xe0] sm:$0xff]
  %v946 = vld [vmem:[%s369 + $0xf0] sm:$0xff]
  %v947 = vld [vmem:[%s369 + $0x100] sm:$0xff]
  %v948 = vld [vmem:[%s369 + $0x110] sm:$0xff]
  %v949 = vpack.c.bf16 %v934, %v933
  %v950 = vpack.c.bf16 %v936, %v935
  %v951 = vpack.c.bf16 %v938, %v937
  %v952 = vpack.c.bf16 %v940, %v939
  %v953 = vpack.c.bf16 %v942, %v941
  %v954 = vpack.c.bf16 %v944, %v943
  %v955 = vpack.c.bf16 %v946, %v945
  %v956 = vpack.c.bf16 %v948, %v947
  %v957 = vld [vmem:[%s3 + $0x60] sm:$0xf]
  %v958 = vld [vmem:[%s3 + $0x64] sm:$0xf]
  %v959 = vld [vmem:[%s3 + $0x68] sm:$0xf]
  %v960 = vld [vmem:[%s3 + $0x6c] sm:$0xf]
  %v961 = vld [vmem:[%s3 + $0x70] sm:$0xf]
  %v962 = vld [vmem:[%s3 + $0x74] sm:$0xf]
  %v963 = vld [vmem:[%s3 + $0x78] sm:$0xf]
  %v964 = vld [vmem:[%s3 + $0x7c] sm:$0xf]
  %v973 = vunpack.c.l.b16 %v957
  %v974 = vunpack.c.l.b16 %v958
  %v975 = vunpack.c.l.b16 %v959
  %v976 = vunpack.c.l.b16 %v960
  %v977 = vunpack.c.l.b16 %v961
  %v978 = vunpack.c.l.b16 %v962
  %v979 = vunpack.c.l.b16 %v963
  %v980 = vunpack.c.l.b16 %v964
  %v981 = vpack.c.b16 %v974, %v973
  %v982 = vpack.c.b16 %v976, %v975
  %v983 = vpack.c.b16 %v978, %v977
  %v984 = vpack.c.b16 %v980, %v979
  %v990 = vsel %vm327, %v949, 0
  %v993 = vsel %vm327, %v950, 0
  %v996 = vsel %vm327, %v951, 0
  %v999 = vsel %vm327, %v952, 0
  %v1002 = vsel %vm327, %v953, 0
  %v1005 = vsel %vm327, %v954, 0
  %v1008 = vsel %vm327, %v955, 0
  %v1011 = vsel %vm327, %v956, 0
  %1013 = vmatprep.subr.bf16.mxu0 0
  %1014 = vmatpush1.bf16.msra.mxu0 %v981
  %1015 = vmatprep.subr.bf16.mxu0 0
  %1016 = vmatpush1.bf16.msra.mxu0 %v982
  %1017 = vmatprep.subr.bf16.mxu0 0
  %1018 = vmatpush1.bf16.msra.mxu0 %v983
  %1019 = vmatprep.subr.bf16.mxu0 0
  %1020 = vmatpush1.bf16.msra.mxu0 %v984
  %1021 = vmatprep.subr.bf16.mxu0 0
  %1022 = vmatpush1.bf16.msra.mxu0 0
  %1023 = vmatprep.subr.bf16.mxu0 0
  %1024 = vmatpush1.bf16.msra.mxu0 0
  %1025 = vmatprep.subr.bf16.mxu0 0
  %1026 = vmatpush1.bf16.msra.mxu0 0
  %1027 = vmatprep.subr.bf16.mxu0 0
  %1028 = vmatpush1.bf16.msra.mxu0 0
  %1029 = vmatprep.subr.bf16.mxu0 0
  %1030 = vmatpush1.bf16.msra.mxu0 0
  %1031 = vmatprep.subr.bf16.mxu0 0
  %1032 = vmatpush1.bf16.msra.mxu0 0
  %1033 = vmatprep.subr.bf16.mxu0 0
  %1034 = vmatpush1.bf16.msra.mxu0 0
  %1035 = vmatprep.subr.bf16.mxu0 0
  %1036 = vmatpush1.bf16.msra.mxu0 0
  %1037 = vmatprep.subr.bf16.mxu0 0
  %1038 = vmatpush1.bf16.msra.mxu0 0
  %1039 = vmatprep.subr.bf16.mxu0 0
  %1040 = vmatpush1.bf16.msra.mxu0 0
  %1041 = vmatprep.subr.bf16.mxu0 0
  %1042 = vmatpush1.bf16.msra.mxu0 0
  %1043 = vmatprep.subr.bf16.mxu0 0
  %1044 = vmatpush1.bf16.msra.mxu0 0
  %1045 = vmatprep.mubr.bf16.mxu0 0
  %1046 = vmatmul.mubr.bf16.gmra.mrb[0].mxu0 %v990
  %v1047 = vpop.f32.mrb[0].mxu0
  %v1048 = vadd.f32 0.0, %v1047
  %v1049 = vpop.f32.mrb[0].mxu0
  %v1050 = vpop.f32.mrb[0].mxu0
  %v1051 = vadd.f32 0.0, %v1050
  %v1052 = vpop.f32.mrb[0].mxu0
  %1053 = vmatprep.mubr.bf16.mxu0 0
  %1054 = vmatmul.mubr.bf16.gmra.mrb[0].mxu0 %v993
  %v1055 = vpop.f32.mrb[0].mxu0
  %v1056 = vadd.f32 0.0, %v1055
  %v1057 = vpop.f32.mrb[0].mxu0
  %v1058 = vpop.f32.mrb[0].mxu0
  %v1059 = vadd.f32 0.0, %v1058
  %v1060 = vpop.f32.mrb[0].mxu0
  %1061 = vmatprep.mubr.bf16.mxu0 0
  %1062 = vmatmul.mubr.bf16.gmra.mrb[0].mxu0 %v996
  %v1063 = vpop.f32.mrb[0].mxu0
  %v1064 = vadd.f32 0.0, %v1063
  %v1065 = vpop.f32.mrb[0].mxu0
  %v1066 = vpop.f32.mrb[0].mxu0
  %v1067 = vadd.f32 0.0, %v1066
  %v1068 = vpop.f32.mrb[0].mxu0
  %1069 = vmatprep.mubr.bf16.mxu0 0
  %1070 = vmatmul.mubr.bf16.gmra.mrb[0].mxu0 %v999
  %v1071 = vpop.f32.mrb[0].mxu0
  %v1072 = vadd.f32 0.0, %v1071
  %v1073 = vpop.f32.mrb[0].mxu0
  %v1074 = vpop.f32.mrb[0].mxu0
  %v1075 = vadd.f32 0.0, %v1074
  %v1076 = vpop.f32.mrb[0].mxu0
  %1077 = vmatprep.mubr.bf16.mxu0 0
  %1078 = vmatmul.mubr.bf16.gmra.mrb[0].mxu0 %v1002
  %v1079 = vpop.f32.mrb[0].mxu0
  %v1080 = vadd.f32 0.0, %v1079
  %v1081 = vpop.f32.mrb[0].mxu0
  %v1082 = vpop.f32.mrb[0].mxu0
  %v1083 = vadd.f32 0.0, %v1082
  %v1084 = vpop.f32.mrb[0].mxu0
  %1085 = vmatprep.mubr.bf16.mxu0 0
  %1086 = vmatmul.mubr.bf16.gmra.mrb[0].mxu0 %v1005
  %v1087 = vpop.f32.mrb[0].mxu0
  %v1088 = vadd.f32 0.0, %v1087
  %v1089 = vpop.f32.mrb[0].mxu0
  %v1090 = vpop.f32.mrb[0].mxu0
  %v1091 = vadd.f32 0.0, %v1090
  %v1092 = vpop.f32.mrb[0].mxu0
  %1093 = vmatprep.mubr.bf16.mxu0 0
  %1094 = vmatmul.mubr.bf16.gmra.mrb[0].mxu0 %v1008
  %v1095 = vpop.f32.mrb[0].mxu0
  %v1096 = vadd.f32 0.0, %v1095
  %v1097 = vpop.f32.mrb[0].mxu0
  %v1098 = vpop.f32.mrb[0].mxu0
  %v1099 = vadd.f32 0.0, %v1098
  %v1100 = vpop.f32.mrb[0].mxu0
  %1101 = vmatprep.mubr.bf16.mxu0 0
  %1102 = vmatmul.mubr.bf16.gmra.mrb[0].mxu0 %v1011
  %v1103 = vpop.f32.mrb[0].mxu0
  %v1104 = vadd.f32 0.0, %v1103
  %v1105 = vpop.f32.mrb[0].mxu0
  %v1106 = vpop.f32.mrb[0].mxu0
  %v1107 = vadd.f32 0.0, %v1106
  %v1108 = vpop.f32.mrb[0].mxu0
  %1109 = vdwg.mxu0
  %v1110 = vadd.f32 %v917, %v1048
  %v1111 = vadd.f32 %v918, %v1051
  %v1112 = vadd.f32 %v919, %v1056
  %v1113 = vadd.f32 %v920, %v1059
  %v1114 = vadd.f32 %v921, %v1064
  %v1115 = vadd.f32 %v922, %v1067
  %v1116 = vadd.f32 %v923, %v1072
  %v1117 = vadd.f32 %v924, %v1075
  %v1118 = vadd.f32 %v925, %v1080
  %v1119 = vadd.f32 %v926, %v1083
  %v1120 = vadd.f32 %v927, %v1088
  %v1121 = vadd.f32 %v928, %v1091
  %v1122 = vadd.f32 %v929, %v1096
  %v1123 = vadd.f32 %v930, %v1099
  %v1124 = vadd.f32 %v931, %v1104
  %v1125 = vadd.f32 %v932, %v1107
  %v1126 = vld [vmem:[%s369 + $0x1] sm:$0xff]
  %v1127 = vld [vmem:[%s369 + $0x11] sm:$0xff]
  %v1128 = vld [vmem:[%s369 + $0x21] sm:$0xff]
  %v1129 = vld [vmem:[%s369 + $0x31] sm:$0xff]
  %v1130 = vld [vmem:[%s369 + $0x41] sm:$0xff]
  %v1131 = vld [vmem:[%s369 + $0x51] sm:$0xff]
  %v1132 = vld [vmem:[%s369 + $0x61] sm:$0xff]
  %v1133 = vld [vmem:[%s369 + $0x71] sm:$0xff]
  %v1134 = vld [vmem:[%s369 + $0xa1] sm:$0xff]
  %v1135 = vld [vmem:[%s369 + $0xb1] sm:$0xff]
  %v1136 = vld [vmem:[%s369 + $0xc1] sm:$0xff]
  %v1137 = vld [vmem:[%s369 + $0xd1] sm:$0xff]
  %v1138 = vld [vmem:[%s369 + $0xe1] sm:$0xff]
  %v1139 = vld [vmem:[%s369 + $0xf1] sm:$0xff]
  %v1140 = vld [vmem:[%s369 + $0x101] sm:$0xff]
  %v1141 = vld [vmem:[%s369 + $0x111] sm:$0xff]
  %v1142 = vpack.c.bf16 %v1127, %v1126
  %v1143 = vpack.c.bf16 %v1129, %v1128
  %v1144 = vpack.c.bf16 %v1131, %v1130
  %v1145 = vpack.c.bf16 %v1133, %v1132
  %v1146 = vpack.c.bf16 %v1135, %v1134
  %v1147 = vpack.c.bf16 %v1137, %v1136
  %v1148 = vpack.c.bf16 %v1139, %v1138
  %v1149 = vpack.c.bf16 %v1141, %v1140
  %v1150 = vld [vmem:[%s3 + $0x80] sm:$0xf]
  %v1151 = vld [vmem:[%s3 + $0x84] sm:$0xf]
  %v1152 = vld [vmem:[%s3 + $0x88] sm:$0xf]
  %v1153 = vld [vmem:[%s3 + $0x8c] sm:$0xf]
  %v1154 = vld [vmem:[%s3 + $0x90] sm:$0xf]
  %v1155 = vld [vmem:[%s3 + $0x94] sm:$0xf]
  %v1156 = vld [vmem:[%s3 + $0x98] sm:$0xf]
  %v1157 = vld [vmem:[%s3 + $0x9c] sm:$0xf]
  %v1166 = vunpack.c.l.b16 %v1150
  %v1167 = vunpack.c.l.b16 %v1151
  %v1168 = vunpack.c.l.b16 %v1152
  %v1169 = vunpack.c.l.b16 %v1153
  %v1170 = vunpack.c.l.b16 %v1154
  %v1171 = vunpack.c.l.b16 %v1155
  %v1172 = vunpack.c.l.b16 %v1156
  %v1173 = vunpack.c.l.b16 %v1157
  %v1174 = vpack.c.b16 %v1167, %v1166
  %v1175 = vpack.c.b16 %v1169, %v1168
  %v1176 = vpack.c.b16 %v1171, %v1170
  %v1177 = vpack.c.b16 %v1173, %v1172
  %v1183 = vsel %vm327, %v1142, 0
  %v1186 = vsel %vm327, %v1143, 0
  %v1189 = vsel %vm327, %v1144, 0
  %v1192 = vsel %vm327, %v1145, 0
  %v1195 = vsel %vm327, %v1146, 0
  %v1198 = vsel %vm327, %v1147, 0
  %v1201 = vsel %vm327, %v1148, 0
  %v1204 = vsel %vm327, %v1149, 0
  %1206 = vmatprep.subr.bf16.mxu0 0
  %1207 = vmatpush1.bf16.msra.mxu0 %v1174
  %1208 = vmatprep.subr.bf16.mxu0 0
  %1209 = vmatpush1.bf16.msra.mxu0 %v1175
  %1210 = vmatprep.subr.bf16.mxu0 0
  %1211 = vmatpush1.bf16.msra.mxu0 %v1176
  %1212 = vmatprep.subr.bf16.mxu0 0
  %1213 = vmatpush1.bf16.msra.mxu0 %v1177
  %1214 = vmatprep.subr.bf16.mxu0 0
  %1215 = vmatpush1.bf16.msra.mxu0 0
  %1216 = vmatprep.subr.bf16.mxu0 0
  %1217 = vmatpush1.bf16.msra.mxu0 0
  %1218 = vmatprep.subr.bf16.mxu0 0
  %1219 = vmatpush1.bf16.msra.mxu0 0
  %1220 = vmatprep.subr.bf16.mxu0 0
  %1221 = vmatpush1.bf16.msra.mxu0 0
  %1222 = vmatprep.subr.bf16.mxu0 0
  %1223 = vmatpush1.bf16.msra.mxu0 0
  %1224 = vmatprep.subr.bf16.mxu0 0
  %1225 = vmatpush1.bf16.msra.mxu0 0
  %1226 = vmatprep.subr.bf16.mxu0 0
  %1227 = vmatpush1.bf16.msra.mxu0 0
  %1228 = vmatprep.subr.bf16.mxu0 0
  %1229 = vmatpush1.bf16.msra.mxu0 0
  %1230 = vmatprep.subr.bf16.mxu0 0
  %1231 = vmatpush1.bf16.msra.mxu0 0
  %1232 = vmatprep.subr.bf16.mxu0 0
  %1233 = vmatpush1.bf16.msra.mxu0 0
  %1234 = vmatprep.subr.bf16.mxu0 0
  %1235 = vmatpush1.bf16.msra.mxu0 0
  %1236 = vmatprep.subr.bf16.mxu0 0
  %1237 = vmatpush1.bf16.msra.mxu0 0
  %1238 = vmatprep.mubr.bf16.mxu0 0
  %1239 = vmatmul.mubr.bf16.gmra.mrb[0].mxu0 %v1183
  %v1240 = vpop.f32.mrb[0].mxu0
  %v1241 = vadd.f32 0.0, %v1240
  %v1242 = vpop.f32.mrb[0].mxu0
  %v1243 = vpop.f32.mrb[0].mxu0
  %v1244 = vadd.f32 0.0, %v1243
  %v1245 = vpop.f32.mrb[0].mxu0
  %1246 = vmatprep.mubr.bf16.mxu0 0
  %1247 = vmatmul.mubr.bf16.gmra.mrb[0].mxu0 %v1186
  %v1248 = vpop.f32.mrb[0].mxu0
  %v1249 = vadd.f32 0.0, %v1248
  %v1250 = vpop.f32.mrb[0].mxu0
  %v1251 = vpop.f32.mrb[0].mxu0
  %v1252 = vadd.f32 0.0, %v1251
  %v1253 = vpop.f32.mrb[0].mxu0
  %1254 = vmatprep.mubr.bf16.mxu0 0
  %1255 = vmatmul.mubr.bf16.gmra.mrb[0].mxu0 %v1189
  %v1256 = vpop.f32.mrb[0].mxu0
  %v1257 = vadd.f32 0.0, %v1256
  %v1258 = vpop.f32.mrb[0].mxu0
  %v1259 = vpop.f32.mrb[0].mxu0
  %v1260 = vadd.f32 0.0, %v1259
  %v1261 = vpop.f32.mrb[0].mxu0
  %1262 = vmatprep.mubr.bf16.mxu0 0
  %1263 = vmatmul.mubr.bf16.gmra.mrb[0].mxu0 %v1192
  %v1264 = vpop.f32.mrb[0].mxu0
  %v1265 = vadd.f32 0.0, %v1264
  %v1266 = vpop.f32.mrb[0].mxu0
  %v1267 = vpop.f32.mrb[0].mxu0
  %v1268 = vadd.f32 0.0, %v1267
  %v1269 = vpop.f32.mrb[0].mxu0
  %1270 = vmatprep.mubr.bf16.mxu0 0
  %1271 = vmatmul.mubr.bf16.gmra.mrb[0].mxu0 %v1195
  %v1272 = vpop.f32.mrb[0].mxu0
  %v1273 = vadd.f32 0.0, %v1272
  %v1274 = vpop.f32.mrb[0].mxu0
  %v1275 = vpop.f32.mrb[0].mxu0
  %v1276 = vadd.f32 0.0, %v1275
  %v1277 = vpop.f32.mrb[0].mxu0
  %1278 = vmatprep.mubr.bf16.mxu0 0
  %1279 = vmatmul.mubr.bf16.gmra.mrb[0].mxu0 %v1198
  %v1280 = vpop.f32.mrb[0].mxu0
  %v1281 = vadd.f32 0.0, %v1280
  %v1282 = vpop.f32.mrb[0].mxu0
  %v1283 = vpop.f32.mrb[0].mxu0
  %v1284 = vadd.f32 0.0, %v1283
  %v1285 = vpop.f32.mrb[0].mxu0
  %1286 = vmatprep.mubr.bf16.mxu0 0
  %1287 = vmatmul.mubr.bf16.gmra.mrb[0].mxu0 %v1201
  %v1288 = vpop.f32.mrb[0].mxu0
  %v1289 = vadd.f32 0.0, %v1288
  %v1290 = vpop.f32.mrb[0].mxu0
  %v1291 = vpop.f32.mrb[0].mxu0
  %v1292 = vadd.f32 0.0, %v1291
  %v1293 = vpop.f32.mrb[0].mxu0
  %1294 = vmatprep.mubr.bf16.mxu0 0
  %1295 = vmatmul.mubr.bf16.gmra.mrb[0].mxu0 %v1204
  %v1296 = vpop.f32.mrb[0].mxu0
  %v1297 = vadd.f32 0.0, %v1296
  %v1298 = vpop.f32.mrb[0].mxu0
  %v1299 = vpop.f32.mrb[0].mxu0
  %v1300 = vadd.f32 0.0, %v1299
  %v1301 = vpop.f32.mrb[0].mxu0
  %1302 = vdwg.mxu0
  %v1303 = vadd.f32 %v1110, %v1241
  %v1304 = vadd.f32 %v1111, %v1244
  %v1305 = vadd.f32 %v1112, %v1249
  %v1306 = vadd.f32 %v1113, %v1252
  %v1307 = vadd.f32 %v1114, %v1257
  %v1308 = vadd.f32 %v1115, %v1260
  %v1309 = vadd.f32 %v1116, %v1265
  %v1310 = vadd.f32 %v1117, %v1268
  %v1311 = vadd.f32 %v1118, %v1273
  %v1312 = vadd.f32 %v1119, %v1276
  %v1313 = vadd.f32 %v1120, %v1281
  %v1314 = vadd.f32 %v1121, %v1284
  %v1315 = vadd.f32 %v1122, %v1289
  %v1316 = vadd.f32 %v1123, %v1292
  %v1317 = vadd.f32 %v1124, %v1297
  %v1318 = vadd.f32 %v1125, %v1300
  %v1319 = vld [vmem:[%s369 + $0x2] sm:$0xff]
  %v1320 = vld [vmem:[%s369 + $0x12] sm:$0xff]
  %v1321 = vld [vmem:[%s369 + $0x22] sm:$0xff]
  %v1322 = vld [vmem:[%s369 + $0x32] sm:$0xff]
  %v1323 = vld [vmem:[%s369 + $0x42] sm:$0xff]
  %v1324 = vld [vmem:[%s369 + $0x52] sm:$0xff]
  %v1325 = vld [vmem:[%s369 + $0x62] sm:$0xff]
  %v1326 = vld [vmem:[%s369 + $0x72] sm:$0xff]
  %v1327 = vld [vmem:[%s369 + $0xa2] sm:$0xff]
  %v1328 = vld [vmem:[%s369 + $0xb2] sm:$0xff]
  %v1329 = vld [vmem:[%s369 + $0xc2] sm:$0xff]
  %v1330 = vld [vmem:[%s369 + $0xd2] sm:$0xff]
  %v1331 = vld [vmem:[%s369 + $0xe2] sm:$0xff]
  %v1332 = vld [vmem:[%s369 + $0xf2] sm:$0xff]
  %v1333 = vld [vmem:[%s369 + $0x102] sm:$0xff]
  %v1334 = vld [vmem:[%s369 + $0x112] sm:$0xff]
  %v1335 = vpack.c.bf16 %v1320, %v1319
  %v1336 = vpack.c.bf16 %v1322, %v1321
  %v1337 = vpack.c.bf16 %v1324, %v1323
  %v1338 = vpack.c.bf16 %v1326, %v1325
  %v1339 = vpack.c.bf16 %v1328, %v1327
  %v1340 = vpack.c.bf16 %v1330, %v1329
  %v1341 = vpack.c.bf16 %v1332, %v1331
  %v1342 = vpack.c.bf16 %v1334, %v1333
  %v1343 = vld [vmem:[%s3 + $0xa0] sm:$0xf]
  %v1344 = vld [vmem:[%s3 + $0xa4] sm:$0xf]
  %v1345 = vld [vmem:[%s3 + $0xa8] sm:$0xf]
  %v1346 = vld [vmem:[%s3 + $0xac] sm:$0xf]
  %v1347 = vld [vmem:[%s3 + $0xb0] sm:$0xf]
  %v1348 = vld [vmem:[%s3 + $0xb4] sm:$0xf]
  %v1349 = vld [vmem:[%s3 + $0xb8] sm:$0xf]
  %v1350 = vld [vmem:[%s3 + $0xbc] sm:$0xf]
  %v1359 = vunpack.c.l.b16 %v1343
  %v1360 = vunpack.c.l.b16 %v1344
  %v1361 = vunpack.c.l.b16 %v1345
  %v1362 = vunpack.c.l.b16 %v1346
  %v1363 = vunpack.c.l.b16 %v1347
  %v1364 = vunpack.c.l.b16 %v1348
  %v1365 = vunpack.c.l.b16 %v1349
  %v1366 = vunpack.c.l.b16 %v1350
  %v1367 = vpack.c.b16 %v1360, %v1359
  %v1368 = vpack.c.b16 %v1362, %v1361
  %v1369 = vpack.c.b16 %v1364, %v1363
  %v1370 = vpack.c.b16 %v1366, %v1365
  %v1376 = vsel %vm327, %v1335, 0
  %v1379 = vsel %vm327, %v1336, 0
  %v1382 = vsel %vm327, %v1337, 0
  %v1385 = vsel %vm327, %v1338, 0
  %v1388 = vsel %vm327, %v1339, 0
  %v1391 = vsel %vm327, %v1340, 0
  %v1394 = vsel %vm327, %v1341, 0
  %v1397 = vsel %vm327, %v1342, 0
  %1399 = vmatprep.subr.bf16.mxu0 0
  %1400 = vmatpush1.bf16.msra.mxu0 %v1367
  %1401 = vmatprep.subr.bf16.mxu0 0
  %1402 = vmatpush1.bf16.msra.mxu0 %v1368
  %1403 = vmatprep.subr.bf16.mxu0 0
  %1404 = vmatpush1.bf16.msra.mxu0 %v1369
  %1405 = vmatprep.subr.bf16.mxu0 0
  %1406 = vmatpush1.bf16.msra.mxu0 %v1370
  %1407 = vmatprep.subr.bf16.mxu0 0
  %1408 = vmatpush1.bf16.msra.mxu0 0
  %1409 = vmatprep.subr.bf16.mxu0 0
  %1410 = vmatpush1.bf16.msra.mxu0 0
  %1411 = vmatprep.subr.bf16.mxu0 0
  %1412 = vmatpush1.bf16.msra.mxu0 0
  %1413 = vmatprep.subr.bf16.mxu0 0
  %1414 = vmatpush1.bf16.msra.mxu0 0
  %1415 = vmatprep.subr.bf16.mxu0 0
  %1416 = vmatpush1.bf16.msra.mxu0 0
  %1417 = vmatprep.subr.bf16.mxu0 0
  %1418 = vmatpush1.bf16.msra.mxu0 0
  %1419 = vmatprep.subr.bf16.mxu0 0
  %1420 = vmatpush1.bf16.msra.mxu0 0
  %1421 = vmatprep.subr.bf16.mxu0 0
  %1422 = vmatpush1.bf16.msra.mxu0 0
  %1423 = vmatprep.subr.bf16.mxu0 0
  %1424 = vmatpush1.bf16.msra.mxu0 0
  %1425 = vmatprep.subr.bf16.mxu0 0
  %1426 = vmatpush1.bf16.msra.mxu0 0
  %1427 = vmatprep.subr.bf16.mxu0 0
  %1428 = vmatpush1.bf16.msra.mxu0 0
  %1429 = vmatprep.subr.bf16.mxu0 0
  %1430 = vmatpush1.bf16.msra.mxu0 0
  %1431 = vmatprep.mubr.bf16.mxu0 0
  %1432 = vmatmul.mubr.bf16.gmra.mrb[0].mxu0 %v1376
  %v1433 = vpop.f32.mrb[0].mxu0
  %v1434 = vadd.f32 0.0, %v1433
  %v1435 = vpop.f32.mrb[0].mxu0
  %v1436 = vpop.f32.mrb[0].mxu0
  %v1437 = vadd.f32 0.0, %v1436
  %v1438 = vpop.f32.mrb[0].mxu0
  %1439 = vmatprep.mubr.bf16.mxu0 0
  %1440 = vmatmul.mubr.bf16.gmra.mrb[0].mxu0 %v1379
  %v1441 = vpop.f32.mrb[0].mxu0
  %v1442 = vadd.f32 0.0, %v1441
  %v1443 = vpop.f32.mrb[0].mxu0
  %v1444 = vpop.f32.mrb[0].mxu0
  %v1445 = vadd.f32 0.0, %v1444
  %v1446 = vpop.f32.mrb[0].mxu0
  %1447 = vmatprep.mubr.bf16.mxu0 0
  %1448 = vmatmul.mubr.bf16.gmra.mrb[0].mxu0 %v1382
  %v1449 = vpop.f32.mrb[0].mxu0
  %v1450 = vadd.f32 0.0, %v1449
  %v1451 = vpop.f32.mrb[0].mxu0
  %v1452 = vpop.f32.mrb[0].mxu0
  %v1453 = vadd.f32 0.0, %v1452
  %v1454 = vpop.f32.mrb[0].mxu0
  %1455 = vmatprep.mubr.bf16.mxu0 0
  %1456 = vmatmul.mubr.bf16.gmra.mrb[0].mxu0 %v1385
  %v1457 = vpop.f32.mrb[0].mxu0
  %v1458 = vadd.f32 0.0, %v1457
  %v1459 = vpop.f32.mrb[0].mxu0
  %v1460 = vpop.f32.mrb[0].mxu0
  %v1461 = vadd.f32 0.0, %v1460
  %v1462 = vpop.f32.mrb[0].mxu0
  %1463 = vmatprep.mubr.bf16.mxu0 0
  %1464 = vmatmul.mubr.bf16.gmra.mrb[0].mxu0 %v1388
  %v1465 = vpop.f32.mrb[0].mxu0
  %v1466 = vadd.f32 0.0, %v1465
  %v1467 = vpop.f32.mrb[0].mxu0
  %v1468 = vpop.f32.mrb[0].mxu0
  %v1469 = vadd.f32 0.0, %v1468
  %v1470 = vpop.f32.mrb[0].mxu0
  %1471 = vmatprep.mubr.bf16.mxu0 0
  %1472 = vmatmul.mubr.bf16.gmra.mrb[0].mxu0 %v1391
  %v1473 = vpop.f32.mrb[0].mxu0
  %v1474 = vadd.f32 0.0, %v1473
  %v1475 = vpop.f32.mrb[0].mxu0
  %v1476 = vpop.f32.mrb[0].mxu0
  %v1477 = vadd.f32 0.0, %v1476
  %v1478 = vpop.f32.mrb[0].mxu0
  %1479 = vmatprep.mubr.bf16.mxu0 0
  %1480 = vmatmul.mubr.bf16.gmra.mrb[0].mxu0 %v1394
  %v1481 = vpop.f32.mrb[0].mxu0
  %v1482 = vadd.f32 0.0, %v1481
  %v1483 = vpop.f32.mrb[0].mxu0
  %v1484 = vpop.f32.mrb[0].mxu0
  %v1485 = vadd.f32 0.0, %v1484
  %v1486 = vpop.f32.mrb[0].mxu0
  %1487 = vmatprep.mubr.bf16.mxu0 0
  %1488 = vmatmul.mubr.bf16.gmra.mrb[0].mxu0 %v1397
  %v1489 = vpop.f32.mrb[0].mxu0
  %v1490 = vadd.f32 0.0, %v1489
  %v1491 = vpop.f32.mrb[0].mxu0
  %v1492 = vpop.f32.mrb[0].mxu0
  %v1493 = vadd.f32 0.0, %v1492
  %v1494 = vpop.f32.mrb[0].mxu0
  %1495 = vdwg.mxu0
  %v1496 = vadd.f32 %v1303, %v1434
  %v1497 = vadd.f32 %v1304, %v1437
  %v1498 = vadd.f32 %v1305, %v1442
  %v1499 = vadd.f32 %v1306, %v1445
  %v1500 = vadd.f32 %v1307, %v1450
  %v1501 = vadd.f32 %v1308, %v1453
  %v1502 = vadd.f32 %v1309, %v1458
  %v1503 = vadd.f32 %v1310, %v1461
  %v1504 = vadd.f32 %v1311, %v1466
  %v1505 = vadd.f32 %v1312, %v1469
  %v1506 = vadd.f32 %v1313, %v1474
  %v1507 = vadd.f32 %v1314, %v1477
  %v1508 = vadd.f32 %v1315, %v1482
  %v1509 = vadd.f32 %v1316, %v1485
  %v1510 = vadd.f32 %v1317, %v1490
  %v1511 = vadd.f32 %v1318, %v1493
  %s1512 = scalar_lea.vmem [#allocation2], 32
  %v1513 = vld [vmem:[%s1512] sm:$0xff]
  %v1514 = vld [vmem:[%s1512 + $0x10] sm:$0xff]
  %v1515 = vld [vmem:[%s1512 + $0x20] sm:$0xff]
  %v1516 = vld [vmem:[%s1512 + $0x30] sm:$0xff]
  %v1517 = vld [vmem:[%s1512 + $0x40] sm:$0xff]
  %v1518 = vld [vmem:[%s1512 + $0x50] sm:$0xff]
  %v1519 = vld [vmem:[%s1512 + $0x60] sm:$0xff]
  %v1520 = vld [vmem:[%s1512 + $0x70] sm:$0xff]
  %v1521 = vld [vmem:[%s1512 + $0xa0] sm:$0xff]
  %v1522 = vld [vmem:[%s1512 + $0xb0] sm:$0xff]
  %v1523 = vld [vmem:[%s1512 + $0xc0] sm:$0xff]
  %v1524 = vld [vmem:[%s1512 + $0xd0] sm:$0xff]
  %v1525 = vld [vmem:[%s1512 + $0xe0] sm:$0xff]
  %v1526 = vld [vmem:[%s1512 + $0xf0] sm:$0xff]
  %v1527 = vld [vmem:[%s1512 + $0x100] sm:$0xff]
  %v1528 = vld [vmem:[%s1512 + $0x110] sm:$0xff]
  %v1529 = vpack.c.bf16 %v1514, %v1513
  %v1530 = vpack.c.bf16 %v1516, %v1515
  %v1531 = vpack.c.bf16 %v1518, %v1517
  %v1532 = vpack.c.bf16 %v1520, %v1519
  %v1533 = vpack.c.bf16 %v1522, %v1521
  %v1534 = vpack.c.bf16 %v1524, %v1523
  %v1535 = vpack.c.bf16 %v1526, %v1525
  %v1536 = vpack.c.bf16 %v1528, %v1527
  %v1537 = vld [vmem:[%s3 + $0xc0] sm:$0xf]
  %v1538 = vld [vmem:[%s3 + $0xc4] sm:$0xf]
  %v1539 = vld [vmem:[%s3 + $0xc8] sm:$0xf]
  %v1540 = vld [vmem:[%s3 + $0xcc] sm:$0xf]
  %v1541 = vld [vmem:[%s3 + $0xd0] sm:$0xf]
  %v1542 = vld [vmem:[%s3 + $0xd4] sm:$0xf]
  %v1543 = vld [vmem:[%s3 + $0xd8] sm:$0xf]
  %v1544 = vld [vmem:[%s3 + $0xdc] sm:$0xf]
  %v1553 = vunpack.c.l.b16 %v1537
  %v1554 = vunpack.c.l.b16 %v1538
  %v1555 = vunpack.c.l.b16 %v1539
  %v1556 = vunpack.c.l.b16 %v1540
  %v1557 = vunpack.c.l.b16 %v1541
  %v1558 = vunpack.c.l.b16 %v1542
  %v1559 = vunpack.c.l.b16 %v1543
  %v1560 = vunpack.c.l.b16 %v1544
  %v1561 = vpack.c.b16 %v1554, %v1553
  %v1562 = vpack.c.b16 %v1556, %v1555
  %v1563 = vpack.c.b16 %v1558, %v1557
  %v1564 = vpack.c.b16 %v1560, %v1559
  %v1570 = vsel %vm327, %v1529, 0
  %v1573 = vsel %vm327, %v1530, 0
  %v1576 = vsel %vm327, %v1531, 0
  %v1579 = vsel %vm327, %v1532, 0
  %v1582 = vsel %vm327, %v1533, 0
  %v1585 = vsel %vm327, %v1534, 0
  %v1588 = vsel %vm327, %v1535, 0
  %v1591 = vsel %vm327, %v1536, 0
  %1593 = vmatprep.subr.bf16.mxu0 0
  %1594 = vmatpush1.bf16.msra.mxu0 %v1561
  %1595 = vmatprep.subr.bf16.mxu0 0
  %1596 = vmatpush1.bf16.msra.mxu0 %v1562
  %1597 = vmatprep.subr.bf16.mxu0 0
  %1598 = vmatpush1.bf16.msra.mxu0 %v1563
  %1599 = vmatprep.subr.bf16.mxu0 0
  %1600 = vmatpush1.bf16.msra.mxu0 %v1564
  %1601 = vmatprep.subr.bf16.mxu0 0
  %1602 = vmatpush1.bf16.msra.mxu0 0
  %1603 = vmatprep.subr.bf16.mxu0 0
  %1604 = vmatpush1.bf16.msra.mxu0 0
  %1605 = vmatprep.subr.bf16.mxu0 0
  %1606 = vmatpush1.bf16.msra.mxu0 0
  %1607 = vmatprep.subr.bf16.mxu0 0
  %1608 = vmatpush1.bf16.msra.mxu0 0
  %1609 = vmatprep.subr.bf16.mxu0 0
  %1610 = vmatpush1.bf16.msra.mxu0 0
  %1611 = vmatprep.subr.bf16.mxu0 0
  %1612 = vmatpush1.bf16.msra.mxu0 0
  %1613 = vmatprep.subr.bf16.mxu0 0
  %1614 = vmatpush1.bf16.msra.mxu0 0
  %1615 = vmatprep.subr.bf16.mxu0 0
  %1616 = vmatpush1.bf16.msra.mxu0 0
  %1617 = vmatprep.subr.bf16.mxu0 0
  %1618 = vmatpush1.bf16.msra.mxu0 0
  %1619 = vmatprep.subr.bf16.mxu0 0
  %1620 = vmatpush1.bf16.msra.mxu0 0
  %1621 = vmatprep.subr.bf16.mxu0 0
  %1622 = vmatpush1.bf16.msra.mxu0 0
  %1623 = vmatprep.subr.bf16.mxu0 0
  %1624 = vmatpush1.bf16.msra.mxu0 0
  %1625 = vmatprep.mubr.bf16.mxu0 0
  %1626 = vmatmul.mubr.bf16.gmra.mrb[0].mxu0 %v1570
  %v1627 = vpop.f32.mrb[0].mxu0
  %v1628 = vadd.f32 0.0, %v1627
  %v1629 = vpop.f32.mrb[0].mxu0
  %v1630 = vpop.f32.mrb[0].mxu0
  %v1631 = vadd.f32 0.0, %v1630
  %v1632 = vpop.f32.mrb[0].mxu0
  %1633 = vmatprep.mubr.bf16.mxu0 0
  %1634 = vmatmul.mubr.bf16.gmra.mrb[0].mxu0 %v1573
  %v1635 = vpop.f32.mrb[0].mxu0
  %v1636 = vadd.f32 0.0, %v1635
  %v1637 = vpop.f32.mrb[0].mxu0
  %v1638 = vpop.f32.mrb[0].mxu0
  %v1639 = vadd.f32 0.0, %v1638
  %v1640 = vpop.f32.mrb[0].mxu0
  %1641 = vmatprep.mubr.bf16.mxu0 0
  %1642 = vmatmul.mubr.bf16.gmra.mrb[0].mxu0 %v1576
  %v1643 = vpop.f32.mrb[0].mxu0
  %v1644 = vadd.f32 0.0, %v1643
  %v1645 = vpop.f32.mrb[0].mxu0
  %v1646 = vpop.f32.mrb[0].mxu0
  %v1647 = vadd.f32 0.0, %v1646
  %v1648 = vpop.f32.mrb[0].mxu0
  %1649 = vmatprep.mubr.bf16.mxu0 0
  %1650 = vmatmul.mubr.bf16.gmra.mrb[0].mxu0 %v1579
  %v1651 = vpop.f32.mrb[0].mxu0
  %v1652 = vadd.f32 0.0, %v1651
  %v1653 = vpop.f32.mrb[0].mxu0
  %v1654 = vpop.f32.mrb[0].mxu0
  %v1655 = vadd.f32 0.0, %v1654
  %v1656 = vpop.f32.mrb[0].mxu0
  %1657 = vmatprep.mubr.bf16.mxu0 0
  %1658 = vmatmul.mubr.bf16.gmra.mrb[0].mxu0 %v1582
  %v1659 = vpop.f32.mrb[0].mxu0
  %v1660 = vadd.f32 0.0, %v1659
  %v1661 = vpop.f32.mrb[0].mxu0
  %v1662 = vpop.f32.mrb[0].mxu0
  %v1663 = vadd.f32 0.0, %v1662
  %v1664 = vpop.f32.mrb[0].mxu0
  %1665 = vmatprep.mubr.bf16.mxu0 0
  %1666 = vmatmul.mubr.bf16.gmra.mrb[0].mxu0 %v1585
  %v1667 = vpop.f32.mrb[0].mxu0
  %v1668 = vadd.f32 0.0, %v1667
  %v1669 = vpop.f32.mrb[0].mxu0
  %v1670 = vpop.f32.mrb[0].mxu0
  %v1671 = vadd.f32 0.0, %v1670
  %v1672 = vpop.f32.mrb[0].mxu0
  %1673 = vmatprep.mubr.bf16.mxu0 0
  %1674 = vmatmul.mubr.bf16.gmra.mrb[0].mxu0 %v1588
  %v1675 = vpop.f32.mrb[0].mxu0
  %v1676 = vadd.f32 0.0, %v1675
  %v1677 = vpop.f32.mrb[0].mxu0
  %v1678 = vpop.f32.mrb[0].mxu0
  %v1679 = vadd.f32 0.0, %v1678
  %v1680 = vpop.f32.mrb[0].mxu0
  %1681 = vmatprep.mubr.bf16.mxu0 0
  %1682 = vmatmul.mubr.bf16.gmra.mrb[0].mxu0 %v1591
  %v1683 = vpop.f32.mrb[0].mxu0
  %v1684 = vadd.f32 0.0, %v1683
  %v1685 = vpop.f32.mrb[0].mxu0
  %v1686 = vpop.f32.mrb[0].mxu0
  %v1687 = vadd.f32 0.0, %v1686
  %v1688 = vpop.f32.mrb[0].mxu0
  %1689 = vdwg.mxu0
  %v1690 = vadd.f32 %v1496, %v1628
  %v1691 = vadd.f32 %v1497, %v1631
  %v1692 = vadd.f32 %v1498, %v1636
  %v1693 = vadd.f32 %v1499, %v1639
  %v1694 = vadd.f32 %v1500, %v1644
  %v1695 = vadd.f32 %v1501, %v1647
  %v1696 = vadd.f32 %v1502, %v1652
  %v1697 = vadd.f32 %v1503, %v1655
  %v1698 = vadd.f32 %v1504, %v1660
  %v1699 = vadd.f32 %v1505, %v1663
  %v1700 = vadd.f32 %v1506, %v1668
  %v1701 = vadd.f32 %v1507, %v1671
  %v1702 = vadd.f32 %v1508, %v1676
  %v1703 = vadd.f32 %v1509, %v1679
  %v1704 = vadd.f32 %v1510, %v1684
  %v1705 = vadd.f32 %v1511, %v1687
  %v1706 = vld [vmem:[%s1512 + $0x1] sm:$0xff]
  %v1707 = vld [vmem:[%s1512 + $0x11] sm:$0xff]
  %v1708 = vld [vmem:[%s1512 + $0x21] sm:$0xff]
  %v1709 = vld [vmem:[%s1512 + $0x31] sm:$0xff]
  %v1710 = vld [vmem:[%s1512 + $0x41] sm:$0xff]
  %v1711 = vld [vmem:[%s1512 + $0x51] sm:$0xff]
  %v1712 = vld [vmem:[%s1512 + $0x61] sm:$0xff]
  %v1713 = vld [vmem:[%s1512 + $0x71] sm:$0xff]
  %v1714 = vld [vmem:[%s1512 + $0xa1] sm:$0xff]
  %v1715 = vld [vmem:[%s1512 + $0xb1] sm:$0xff]
  %v1716 = vld [vmem:[%s1512 + $0xc1] sm:$0xff]
  %v1717 = vld [vmem:[%s1512 + $0xd1] sm:$0xff]
  %v1718 = vld [vmem:[%s1512 + $0xe1] sm:$0xff]
  %v1719 = vld [vmem:[%s1512 + $0xf1] sm:$0xff]
  %v1720 = vld [vmem:[%s1512 + $0x101] sm:$0xff]
  %v1721 = vld [vmem:[%s1512 + $0x111] sm:$0xff]
  %v1722 = vpack.c.bf16 %v1707, %v1706
  %v1723 = vpack.c.bf16 %v1709, %v1708
  %v1724 = vpack.c.bf16 %v1711, %v1710
  %v1725 = vpack.c.bf16 %v1713, %v1712
  %v1726 = vpack.c.bf16 %v1715, %v1714
  %v1727 = vpack.c.bf16 %v1717, %v1716
  %v1728 = vpack.c.bf16 %v1719, %v1718
  %v1729 = vpack.c.bf16 %v1721, %v1720
  %v1730 = vld [vmem:[%s3 + $0xe0] sm:$0xf]
  %v1731 = vld [vmem:[%s3 + $0xe4] sm:$0xf]
  %v1732 = vld [vmem:[%s3 + $0xe8] sm:$0xf]
  %v1733 = vld [vmem:[%s3 + $0xec] sm:$0xf]
  %v1734 = vld [vmem:[%s3 + $0xf0] sm:$0xf]
  %v1735 = vld [vmem:[%s3 + $0xf4] sm:$0xf]
  %v1736 = vld [vmem:[%s3 + $0xf8] sm:$0xf]
  %v1737 = vld [vmem:[%s3 + $0xfc] sm:$0xf]
  %v1746 = vunpack.c.l.b16 %v1730
  %v1747 = vunpack.c.l.b16 %v1731
  %v1748 = vunpack.c.l.b16 %v1732
  %v1749 = vunpack.c.l.b16 %v1733
  %v1750 = vunpack.c.l.b16 %v1734
  %v1751 = vunpack.c.l.b16 %v1735
  %v1752 = vunpack.c.l.b16 %v1736
  %v1753 = vunpack.c.l.b16 %v1737
  %v1754 = vpack.c.b16 %v1747, %v1746
  %v1755 = vpack.c.b16 %v1749, %v1748
  %v1756 = vpack.c.b16 %v1751, %v1750
  %v1757 = vpack.c.b16 %v1753, %v1752
  %v1763 = vsel %vm327, %v1722, 0
  %v1766 = vsel %vm327, %v1723, 0
  %v1769 = vsel %vm327, %v1724, 0
  %v1772 = vsel %vm327, %v1725, 0
  %v1775 = vsel %vm327, %v1726, 0
  %v1778 = vsel %vm327, %v1727, 0
  %v1781 = vsel %vm327, %v1728, 0
  %v1784 = vsel %vm327, %v1729, 0
  %1786 = vmatprep.subr.bf16.mxu0 0
  %1787 = vmatpush1.bf16.msra.mxu0 %v1754
  %1788 = vmatprep.subr.bf16.mxu0 0
  %1789 = vmatpush1.bf16.msra.mxu0 %v1755
  %1790 = vmatprep.subr.bf16.mxu0 0
  %1791 = vmatpush1.bf16.msra.mxu0 %v1756
  %1792 = vmatprep.subr.bf16.mxu0 0
  %1793 = vmatpush1.bf16.msra.mxu0 %v1757
  %1794 = vmatprep.subr.bf16.mxu0 0
  %1795 = vmatpush1.bf16.msra.mxu0 0
  %1796 = vmatprep.subr.bf16.mxu0 0
  %1797 = vmatpush1.bf16.msra.mxu0 0
  %1798 = vmatprep.subr.bf16.mxu0 0
  %1799 = vmatpush1.bf16.msra.mxu0 0
  %1800 = vmatprep.subr.bf16.mxu0 0
  %1801 = vmatpush1.bf16.msra.mxu0 0
  %1802 = vmatprep.subr.bf16.mxu0 0
  %1803 = vmatpush1.bf16.msra.mxu0 0
  %1804 = vmatprep.subr.bf16.mxu0 0
  %1805 = vmatpush1.bf16.msra.mxu0 0
  %1806 = vmatprep.subr.bf16.mxu0 0
  %1807 = vmatpush1.bf16.msra.mxu0 0
  %1808 = vmatprep.subr.bf16.mxu0 0
  %1809 = vmatpush1.bf16.msra.mxu0 0
  %1810 = vmatprep.subr.bf16.mxu0 0
  %1811 = vmatpush1.bf16.msra.mxu0 0
  %1812 = vmatprep.subr.bf16.mxu0 0
  %1813 = vmatpush1.bf16.msra.mxu0 0
  %1814 = vmatprep.subr.bf16.mxu0 0
  %1815 = vmatpush1.bf16.msra.mxu0 0
  %1816 = vmatprep.subr.bf16.mxu0 0
  %1817 = vmatpush1.bf16.msra.mxu0 0
  %1818 = vmatprep.mubr.bf16.mxu0 0
  %1819 = vmatmul.mubr.bf16.gmra.mrb[0].mxu0 %v1763
  %v1820 = vpop.f32.mrb[0].mxu0
  %v1821 = vadd.f32 0.0, %v1820
  %v1822 = vpop.f32.mrb[0].mxu0
  %v1823 = vpop.f32.mrb[0].mxu0
  %v1824 = vadd.f32 0.0, %v1823
  %v1825 = vpop.f32.mrb[0].mxu0
  %1826 = vmatprep.mubr.bf16.mxu0 0
  %1827 = vmatmul.mubr.bf16.gmra.mrb[0].mxu0 %v1766
  %v1828 = vpop.f32.mrb[0].mxu0
  %v1829 = vadd.f32 0.0, %v1828
  %v1830 = vpop.f32.mrb[0].mxu0
  %v1831 = vpop.f32.mrb[0].mxu0
  %v1832 = vadd.f32 0.0, %v1831
  %v1833 = vpop.f32.mrb[0].mxu0
  %1834 = vmatprep.mubr.bf16.mxu0 0
  %1835 = vmatmul.mubr.bf16.gmra.mrb[0].mxu0 %v1769
  %v1836 = vpop.f32.mrb[0].mxu0
  %v1837 = vadd.f32 0.0, %v1836
  %v1838 = vpop.f32.mrb[0].mxu0
  %v1839 = vpop.f32.mrb[0].mxu0
  %v1840 = vadd.f32 0.0, %v1839
  %v1841 = vpop.f32.mrb[0].mxu0
  %1842 = vmatprep.mubr.bf16.mxu0 0
  %1843 = vmatmul.mubr.bf16.gmra.mrb[0].mxu0 %v1772
  %v1844 = vpop.f32.mrb[0].mxu0
  %v1845 = vadd.f32 0.0, %v1844
  %v1846 = vpop.f32.mrb[0].mxu0
  %v1847 = vpop.f32.mrb[0].mxu0
  %v1848 = vadd.f32 0.0, %v1847
  %v1849 = vpop.f32.mrb[0].mxu0
  %1850 = vmatprep.mubr.bf16.mxu0 0
  %1851 = vmatmul.mubr.bf16.gmra.mrb[0].mxu0 %v1775
  %v1852 = vpop.f32.mrb[0].mxu0
  %v1853 = vadd.f32 0.0, %v1852
  %v1854 = vpop.f32.mrb[0].mxu0
  %v1855 = vpop.f32.mrb[0].mxu0
  %v1856 = vadd.f32 0.0, %v1855
  %v1857 = vpop.f32.mrb[0].mxu0
  %1858 = vmatprep.mubr.bf16.mxu0 0
  %1859 = vmatmul.mubr.bf16.gmra.mrb[0].mxu0 %v1778
  %v1860 = vpop.f32.mrb[0].mxu0
  %v1861 = vadd.f32 0.0, %v1860
  %v1862 = vpop.f32.mrb[0].mxu0
  %v1863 = vpop.f32.mrb[0].mxu0
  %v1864 = vadd.f32 0.0, %v1863
  %v1865 = vpop.f32.mrb[0].mxu0
  %1866 = vmatprep.mubr.bf16.mxu0 0
  %1867 = vmatmul.mubr.bf16.gmra.mrb[0].mxu0 %v1781
  %v1868 = vpop.f32.mrb[0].mxu0
  %v1869 = vadd.f32 0.0, %v1868
  %v1870 = vpop.f32.mrb[0].mxu0
  %v1871 = vpop.f32.mrb[0].mxu0
  %v1872 = vadd.f32 0.0, %v1871
  %v1873 = vpop.f32.mrb[0].mxu0
  %1874 = vmatprep.mubr.bf16.mxu0 0
  %1875 = vmatmul.mubr.bf16.gmra.mrb[0].mxu0 %v1784
  %v1876 = vpop.f32.mrb[0].mxu0
  %v1877 = vadd.f32 0.0, %v1876
  %v1878 = vpop.f32.mrb[0].mxu0
  %v1879 = vpop.f32.mrb[0].mxu0
  %v1880 = vadd.f32 0.0, %v1879
  %v1881 = vpop.f32.mrb[0].mxu0
  %1882 = vdwg.mxu0
  %v1883 = vadd.f32 %v1690, %v1821
  %v1884 = vadd.f32 %v1691, %v1824
  %v1885 = vadd.f32 %v1692, %v1829
  %v1886 = vadd.f32 %v1693, %v1832
  %v1887 = vadd.f32 %v1694, %v1837
  %v1888 = vadd.f32 %v1695, %v1840
  %v1889 = vadd.f32 %v1696, %v1845
  %v1890 = vadd.f32 %v1697, %v1848
  %v1891 = vadd.f32 %v1698, %v1853
  %v1892 = vadd.f32 %v1699, %v1856
  %v1893 = vadd.f32 %v1700, %v1861
  %v1894 = vadd.f32 %v1701, %v1864
  %v1895 = vadd.f32 %v1702, %v1869
  %v1896 = vadd.f32 %v1703, %v1872
  %v1897 = vadd.f32 %v1704, %v1877
  %v1898 = vadd.f32 %v1705, %v1880
  %v1899 = vld [vmem:[%s1512 + $0x2] sm:$0xff]
  %v1900 = vld [vmem:[%s1512 + $0x12] sm:$0xff]
  %v1901 = vld [vmem:[%s1512 + $0x22] sm:$0xff]
  %v1902 = vld [vmem:[%s1512 + $0x32] sm:$0xff]
  %v1903 = vld [vmem:[%s1512 + $0x42] sm:$0xff]
  %v1904 = vld [vmem:[%s1512 + $0x52] sm:$0xff]
  %v1905 = vld [vmem:[%s1512 + $0x62] sm:$0xff]
  %v1906 = vld [vmem:[%s1512 + $0x72] sm:$0xff]
  %v1907 = vld [vmem:[%s1512 + $0xa2] sm:$0xff]
  %v1908 = vld [vmem:[%s1512 + $0xb2] sm:$0xff]
  %v1909 = vld [vmem:[%s1512 + $0xc2] sm:$0xff]
  %v1910 = vld [vmem:[%s1512 + $0xd2] sm:$0xff]
  %v1911 = vld [vmem:[%s1512 + $0xe2] sm:$0xff]
  %v1912 = vld [vmem:[%s1512 + $0xf2] sm:$0xff]
  %v1913 = vld [vmem:[%s1512 + $0x102] sm:$0xff]
  %v1914 = vld [vmem:[%s1512 + $0x112] sm:$0xff]
  %v1915 = vpack.c.bf16 %v1900, %v1899
  %v1916 = vpack.c.bf16 %v1902, %v1901
  %v1917 = vpack.c.bf16 %v1904, %v1903
  %v1918 = vpack.c.bf16 %v1906, %v1905
  %v1919 = vpack.c.bf16 %v1908, %v1907
  %v1920 = vpack.c.bf16 %v1910, %v1909
  %v1921 = vpack.c.bf16 %v1912, %v1911
  %v1922 = vpack.c.bf16 %v1914, %v1913
  %v1923 = vld [vmem:[%s3 + $0x100] sm:$0xf]
  %v1924 = vld [vmem:[%s3 + $0x104] sm:$0xf]
  %v1925 = vld [vmem:[%s3 + $0x108] sm:$0xf]
  %v1926 = vld [vmem:[%s3 + $0x10c] sm:$0xf]
  %v1927 = vld [vmem:[%s3 + $0x110] sm:$0xf]
  %v1928 = vld [vmem:[%s3 + $0x114] sm:$0xf]
  %v1929 = vld [vmem:[%s3 + $0x118] sm:$0xf]
  %v1930 = vld [vmem:[%s3 + $0x11c] sm:$0xf]
  %v1939 = vunpack.c.l.b16 %v1923
  %v1940 = vunpack.c.l.b16 %v1924
  %v1941 = vunpack.c.l.b16 %v1925
  %v1942 = vunpack.c.l.b16 %v1926
  %v1943 = vunpack.c.l.b16 %v1927
  %v1944 = vunpack.c.l.b16 %v1928
  %v1945 = vunpack.c.l.b16 %v1929
  %v1946 = vunpack.c.l.b16 %v1930
  %v1947 = vpack.c.b16 %v1940, %v1939
  %v1948 = vpack.c.b16 %v1942, %v1941
  %v1949 = vpack.c.b16 %v1944, %v1943
  %v1950 = vpack.c.b16 %v1946, %v1945
  %v1956 = vsel %vm327, %v1915, 0
  %v1959 = vsel %vm327, %v1916, 0
  %v1962 = vsel %vm327, %v1917, 0
  %v1965 = vsel %vm327, %v1918, 0
  %v1968 = vsel %vm327, %v1919, 0
  %v1971 = vsel %vm327, %v1920, 0
  %v1974 = vsel %vm327, %v1921, 0
  %v1977 = vsel %vm327, %v1922, 0
  %1979 = vmatprep.subr.bf16.mxu0 0
  %1980 = vmatpush1.bf16.msra.mxu0 %v1947
  %1981 = vmatprep.subr.bf16.mxu0 0
  %1982 = vmatpush1.bf16.msra.mxu0 %v1948
  %1983 = vmatprep.subr.bf16.mxu0 0
  %1984 = vmatpush1.bf16.msra.mxu0 %v1949
  %1985 = vmatprep.subr.bf16.mxu0 0
  %1986 = vmatpush1.bf16.msra.mxu0 %v1950
  %1987 = vmatprep.subr.bf16.mxu0 0
  %1988 = vmatpush1.bf16.msra.mxu0 0
  %1989 = vmatprep.subr.bf16.mxu0 0
  %1990 = vmatpush1.bf16.msra.mxu0 0
  %1991 = vmatprep.subr.bf16.mxu0 0
  %1992 = vmatpush1.bf16.msra.mxu0 0
  %1993 = vmatprep.subr.bf16.mxu0 0
  %1994 = vmatpush1.bf16.msra.mxu0 0
  %1995 = vmatprep.subr.bf16.mxu0 0
  %1996 = vmatpush1.bf16.msra.mxu0 0
  %1997 = vmatprep.subr.bf16.mxu0 0
  %1998 = vmatpush1.bf16.msra.mxu0 0
  %1999 = vmatprep.subr.bf16.mxu0 0
  %2000 = vmatpush1.bf16.msra.mxu0 0
  %2001 = vmatprep.subr.bf16.mxu0 0
  %2002 = vmatpush1.bf16.msra.mxu0 0
  %2003 = vmatprep.subr.bf16.mxu0 0
  %2004 = vmatpush1.bf16.msra.mxu0 0
  %2005 = vmatprep.subr.bf16.mxu0 0
  %2006 = vmatpush1.bf16.msra.mxu0 0
  %2007 = vmatprep.subr.bf16.mxu0 0
  %2008 = vmatpush1.bf16.msra.mxu0 0
  %2009 = vmatprep.subr.bf16.mxu0 0
  %2010 = vmatpush1.bf16.msra.mxu0 0
  %2011 = vmatprep.mubr.bf16.mxu0 0
  %2012 = vmatmul.mubr.bf16.gmra.mrb[0].mxu0 %v1956
  %v2013 = vpop.f32.mrb[0].mxu0
  %v2014 = vadd.f32 0.0, %v2013
  %v2015 = vpop.f32.mrb[0].mxu0
  %v2016 = vpop.f32.mrb[0].mxu0
  %v2017 = vadd.f32 0.0, %v2016
  %v2018 = vpop.f32.mrb[0].mxu0
  %2019 = vmatprep.mubr.bf16.mxu0 0
  %2020 = vmatmul.mubr.bf16.gmra.mrb[0].mxu0 %v1959
  %v2021 = vpop.f32.mrb[0].mxu0
  %v2022 = vadd.f32 0.0, %v2021
  %v2023 = vpop.f32.mrb[0].mxu0
  %v2024 = vpop.f32.mrb[0].mxu0
  %v2025 = vadd.f32 0.0, %v2024
  %v2026 = vpop.f32.mrb[0].mxu0
  %2027 = vmatprep.mubr.bf16.mxu0 0
  %2028 = vmatmul.mubr.bf16.gmra.mrb[0].mxu0 %v1962
  %v2029 = vpop.f32.mrb[0].mxu0
  %v2030 = vadd.f32 0.0, %v2029
  %v2031 = vpop.f32.mrb[0].mxu0
  %v2032 = vpop.f32.mrb[0].mxu0
  %v2033 = vadd.f32 0.0, %v2032
  %v2034 = vpop.f32.mrb[0].mxu0
  %2035 = vmatprep.mubr.bf16.mxu0 0
  %2036 = vmatmul.mubr.bf16.gmra.mrb[0].mxu0 %v1965
  %v2037 = vpop.f32.mrb[0].mxu0
  %v2038 = vadd.f32 0.0, %v2037
  %v2039 = vpop.f32.mrb[0].mxu0
  %v2040 = vpop.f32.mrb[0].mxu0
  %v2041 = vadd.f32 0.0, %v2040
  %v2042 = vpop.f32.mrb[0].mxu0
  %2043 = vmatprep.mubr.bf16.mxu0 0
  %2044 = vmatmul.mubr.bf16.gmra.mrb[0].mxu0 %v1968
  %v2045 = vpop.f32.mrb[0].mxu0
  %v2046 = vadd.f32 0.0, %v2045
  %v2047 = vpop.f32.mrb[0].mxu0
  %v2048 = vpop.f32.mrb[0].mxu0
  %v2049 = vadd.f32 0.0, %v2048
  %v2050 = vpop.f32.mrb[0].mxu0
  %2051 = vmatprep.mubr.bf16.mxu0 0
  %2052 = vmatmul.mubr.bf16.gmra.mrb[0].mxu0 %v1971
  %v2053 = vpop.f32.mrb[0].mxu0
  %v2054 = vadd.f32 0.0, %v2053
  %v2055 = vpop.f32.mrb[0].mxu0
  %v2056 = vpop.f32.mrb[0].mxu0
  %v2057 = vadd.f32 0.0, %v2056
  %v2058 = vpop.f32.mrb[0].mxu0
  %2059 = vmatprep.mubr.bf16.mxu0 0
  %2060 = vmatmul.mubr.bf16.gmra.mrb[0].mxu0 %v1974
  %v2061 = vpop.f32.mrb[0].mxu0
  %v2062 = vadd.f32 0.0, %v2061
  %v2063 = vpop.f32.mrb[0].mxu0
  %v2064 = vpop.f32.mrb[0].mxu0
  %v2065 = vadd.f32 0.0, %v2064
  %v2066 = vpop.f32.mrb[0].mxu0
  %2067 = vmatprep.mubr.bf16.mxu0 0
  %2068 = vmatmul.mubr.bf16.gmra.mrb[0].mxu0 %v1977
  %v2069 = vpop.f32.mrb[0].mxu0
  %v2070 = vadd.f32 0.0, %v2069
  %v2071 = vpop.f32.mrb[0].mxu0
  %v2072 = vpop.f32.mrb[0].mxu0
  %v2073 = vadd.f32 0.0, %v2072
  %v2074 = vpop.f32.mrb[0].mxu0
  %2075 = vdwg.mxu0
  %v2076 = vadd.f32 %v1883, %v2014
  %v2077 = vadd.f32 %v1884, %v2017
  %v2078 = vadd.f32 %v1885, %v2022
  %v2079 = vadd.f32 %v1886, %v2025
  %v2080 = vadd.f32 %v1887, %v2030
  %v2081 = vadd.f32 %v1888, %v2033
  %v2082 = vadd.f32 %v1889, %v2038
  %v2083 = vadd.f32 %v1890, %v2041
  %v2084 = vadd.f32 %v1891, %v2046
  %v2085 = vadd.f32 %v1892, %v2049
  %v2086 = vadd.f32 %v1893, %v2054
  %v2087 = vadd.f32 %v1894, %v2057
  %v2088 = vadd.f32 %v1895, %v2062
  %v2089 = vadd.f32 %v1896, %v2065
  %v2090 = vadd.f32 %v1897, %v2070
  %v2091 = vadd.f32 %v1898, %v2073
  %v2092 = vld [vmem:[%s4] sm:$0x1]
  %v2094 = vlaneseq
  %v2095 = vshrl.u32 %v2094, 7
  %v2096 = vsub.s32 0, %v2095
  %v2097 = vrot.slane %v2092, %v2096
  %v2099 = vadd.f32 %v2076, %v2097
  %v2100 = vadd.f32 %v2077, %v2097
  %v2101 = vadd.f32 %v2078, %v2097
  %v2102 = vadd.f32 %v2079, %v2097
  %v2103 = vadd.f32 %v2080, %v2097
  %v2104 = vadd.f32 %v2081, %v2097
  %v2105 = vadd.f32 %v2082, %v2097
  %v2106 = vadd.f32 %v2083, %v2097
  %v2107 = vadd.f32 %v2084, %v2097
  %v2108 = vadd.f32 %v2085, %v2097
  %v2109 = vadd.f32 %v2086, %v2097
  %v2110 = vadd.f32 %v2087, %v2097
  %v2111 = vadd.f32 %v2088, %v2097
  %v2112 = vadd.f32 %v2089, %v2097
  %v2113 = vadd.f32 %v2090, %v2097
  %v2114 = vadd.f32 %v2091, %v2097
  %v2115 = vmax.f32 %v2099, 0.0
  %v2116 = vmax.f32 %v2100, 0.0
  %v2117 = vmax.f32 %v2101, 0.0
  %v2118 = vmax.f32 %v2102, 0.0
  %v2119 = vmax.f32 %v2103, 0.0
  %v2120 = vmax.f32 %v2104, 0.0
  %v2121 = vmax.f32 %v2105, 0.0
  %v2122 = vmax.f32 %v2106, 0.0
  %v2123 = vmax.f32 %v2107, 0.0
  %v2124 = vmax.f32 %v2108, 0.0
  %v2125 = vmax.f32 %v2109, 0.0
  %v2126 = vmax.f32 %v2110, 0.0
  %v2127 = vmax.f32 %v2111, 0.0
  %v2128 = vmax.f32 %v2112, 0.0
  %v2129 = vmax.f32 %v2113, 0.0
  %v2130 = vmax.f32 %v2114, 0.0
  %v2131 = vpack.c.bf16 %v2116, %v2115
  %v2132 = vpack.c.bf16 %v2118, %v2117
  %v2133 = vpack.c.bf16 %v2120, %v2119
  %v2134 = vpack.c.bf16 %v2122, %v2121
  %v2135 = vpack.c.bf16 %v2124, %v2123
  %v2136 = vpack.c.bf16 %v2126, %v2125
  %v2137 = vpack.c.bf16 %v2128, %v2127
  %v2138 = vpack.c.bf16 %v2130, %v2129
  %v2139 = vld [vmem:[%s5] sm:$0xf]
  %v2140 = vld [vmem:[%s5 + $0x4] sm:$0xf]
  %v2141 = vld [vmem:[%s5 + $0x8] sm:$0xf]
  %v2142 = vld [vmem:[%s5 + $0xc] sm:$0xf]
  %v2143 = vld [vmem:[%s5 + $0x10] sm:$0xf]
  %v2144 = vld [vmem:[%s5 + $0x14] sm:$0xf]
  %v2145 = vld [vmem:[%s5 + $0x18] sm:$0xf]
  %v2146 = vld [vmem:[%s5 + $0x1c] sm:$0xf]
  %v2147 = vld [vmem:[%s5 + $0x20] sm:$0xf]
  %v2148 = vld [vmem:[%s5 + $0x24] sm:$0xf]
  %v2149 = vld [vmem:[%s5 + $0x28] sm:$0xf]
  %v2150 = vld [vmem:[%s5 + $0x2c] sm:$0xf]
  %v2151 = vld [vmem:[%s5 + $0x30] sm:$0xf]
  %v2152 = vld [vmem:[%s5 + $0x34] sm:$0xf]
  %v2153 = vld [vmem:[%s5 + $0x38] sm:$0xf]
  %v2154 = vld [vmem:[%s5 + $0x3c] sm:$0xf]
  %v2155 = vld [vmem:[%s6] sm:$0x1]
  %v2157 = vlaneseq
  %v2158 = vshrl.u32 %v2157, 7
  %v2159 = vsub.s32 0, %v2158
  %v2160 = vrot.slane %v2155, %v2159
  %v2178 = vunpack.c.l.b16 %v2139
  %v2179 = vunpack.c.l.b16 %v2140
  %v2180 = vunpack.c.l.b16 %v2141
  %v2181 = vunpack.c.l.b16 %v2142
  %v2182 = vunpack.c.l.b16 %v2143
  %v2183 = vunpack.c.l.b16 %v2144
  %v2184 = vunpack.c.l.b16 %v2145
  %v2185 = vunpack.c.l.b16 %v2146
  %v2186 = vunpack.c.l.b16 %v2147
  %v2187 = vunpack.c.l.b16 %v2148
  %v2188 = vunpack.c.l.b16 %v2149
  %v2189 = vunpack.c.l.b16 %v2150
  %v2190 = vunpack.c.l.b16 %v2151
  %v2191 = vunpack.c.l.b16 %v2152
  %v2192 = vunpack.c.l.b16 %v2153
  %v2193 = vunpack.c.l.b16 %v2154
  %v2194 = vpack.c.b16 %v2179, %v2178
  %v2195 = vpack.c.b16 %v2181, %v2180
  %v2196 = vpack.c.b16 %v2183, %v2182
  %v2197 = vpack.c.b16 %v2185, %v2184
  %v2198 = vpack.c.b16 %v2187, %v2186
  %v2199 = vpack.c.b16 %v2189, %v2188
  %v2200 = vpack.c.b16 %v2191, %v2190
  %v2201 = vpack.c.b16 %v2193, %v2192
  %2210 = vmatprep.subr.bf16.mxu0 0
  %2211 = vmatpush1.bf16.msra.mxu0 %v2194
  %2212 = vmatprep.subr.bf16.mxu0 0
  %2213 = vmatpush1.bf16.msra.mxu0 %v2195
  %2214 = vmatprep.subr.bf16.mxu0 0
  %2215 = vmatpush1.bf16.msra.mxu0 %v2196
  %2216 = vmatprep.subr.bf16.mxu0 0
  %2217 = vmatpush1.bf16.msra.mxu0 %v2197
  %2218 = vmatprep.subr.bf16.mxu0 0
  %2219 = vmatpush1.bf16.msra.mxu0 %v2198
  %2220 = vmatprep.subr.bf16.mxu0 0
  %2221 = vmatpush1.bf16.msra.mxu0 %v2199
  %2222 = vmatprep.subr.bf16.mxu0 0
  %2223 = vmatpush1.bf16.msra.mxu0 %v2200
  %2224 = vmatprep.subr.bf16.mxu0 0
  %2225 = vmatpush1.bf16.msra.mxu0 %v2201
  %2226 = vmatprep.subr.bf16.mxu0 0
  %2227 = vmatpush1.bf16.msra.mxu0 0
  %2228 = vmatprep.subr.bf16.mxu0 0
  %2229 = vmatpush1.bf16.msra.mxu0 0
  %2230 = vmatprep.subr.bf16.mxu0 0
  %2231 = vmatpush1.bf16.msra.mxu0 0
  %2232 = vmatprep.subr.bf16.mxu0 0
  %2233 = vmatpush1.bf16.msra.mxu0 0
  %2234 = vmatprep.subr.bf16.mxu0 0
  %2235 = vmatpush1.bf16.msra.mxu0 0
  %2236 = vmatprep.subr.bf16.mxu0 0
  %2237 = vmatpush1.bf16.msra.mxu0 0
  %2238 = vmatprep.subr.bf16.mxu0 0
  %2239 = vmatpush1.bf16.msra.mxu0 0
  %2240 = vmatprep.subr.bf16.mxu0 0
  %2241 = vmatpush1.bf16.msra.mxu0 0
  %2242 = vmatprep.mubr.bf16.mxu0 0
  %2243 = vmatmul.mubr.bf16.gmra.mrb[0].mxu0 %v2131
  %v2244 = vpop.f32.mrb[0].mxu0
  %v2245 = vadd.f32 %v2160, %v2244
  %v2246 = vpop.f32.mrb[0].mxu0
  %v2247 = vpop.f32.mrb[0].mxu0
  %v2248 = vadd.f32 %v2160, %v2247
  %v2249 = vpop.f32.mrb[0].mxu0
  %2250 = vmatprep.mubr.bf16.mxu0 0
  %2251 = vmatmul.mubr.bf16.gmra.mrb[0].mxu0 %v2132
  %v2252 = vpop.f32.mrb[0].mxu0
  %v2253 = vadd.f32 %v2160, %v2252
  %v2254 = vpop.f32.mrb[0].mxu0
  %v2255 = vpop.f32.mrb[0].mxu0
  %v2256 = vadd.f32 %v2160, %v2255
  %v2257 = vpop.f32.mrb[0].mxu0
  %2258 = vmatprep.mubr.bf16.mxu0 0
  %2259 = vmatmul.mubr.bf16.gmra.mrb[0].mxu0 %v2133
  %v2260 = vpop.f32.mrb[0].mxu0
  %v2261 = vadd.f32 %v2160, %v2260
  %v2262 = vpop.f32.mrb[0].mxu0
  %v2263 = vpop.f32.mrb[0].mxu0
  %v2264 = vadd.f32 %v2160, %v2263
  %v2265 = vpop.f32.mrb[0].mxu0
  %2266 = vmatprep.mubr.bf16.mxu0 0
  %2267 = vmatmul.mubr.bf16.gmra.mrb[0].mxu0 %v2134
  %v2268 = vpop.f32.mrb[0].mxu0
  %v2269 = vadd.f32 %v2160, %v2268
  %v2270 = vpop.f32.mrb[0].mxu0
  %v2271 = vpop.f32.mrb[0].mxu0
  %v2272 = vadd.f32 %v2160, %v2271
  %v2273 = vpop.f32.mrb[0].mxu0
  %2274 = vmatprep.mubr.bf16.mxu0 0
  %2275 = vmatmul.mubr.bf16.gmra.mrb[0].mxu0 %v2135
  %v2276 = vpop.f32.mrb[0].mxu0
  %v2277 = vadd.f32 %v2160, %v2276
  %v2278 = vpop.f32.mrb[0].mxu0
  %v2279 = vpop.f32.mrb[0].mxu0
  %v2280 = vadd.f32 %v2160, %v2279
  %v2281 = vpop.f32.mrb[0].mxu0
  %2282 = vmatprep.mubr.bf16.mxu0 0
  %2283 = vmatmul.mubr.bf16.gmra.mrb[0].mxu0 %v2136
  %v2284 = vpop.f32.mrb[0].mxu0
  %v2285 = vadd.f32 %v2160, %v2284
  %v2286 = vpop.f32.mrb[0].mxu0
  %v2287 = vpop.f32.mrb[0].mxu0
  %v2288 = vadd.f32 %v2160, %v2287
  %v2289 = vpop.f32.mrb[0].mxu0
  %2290 = vmatprep.mubr.bf16.mxu0 0
  %2291 = vmatmul.mubr.bf16.gmra.mrb[0].mxu0 %v2137
  %v2292 = vpop.f32.mrb[0].mxu0
  %v2293 = vadd.f32 %v2160, %v2292
  %v2294 = vpop.f32.mrb[0].mxu0
  %v2295 = vpop.f32.mrb[0].mxu0
  %v2296 = vadd.f32 %v2160, %v2295
  %v2297 = vpop.f32.mrb[0].mxu0
  %2298 = vmatprep.mubr.bf16.mxu0 0
  %2299 = vmatmul.mubr.bf16.gmra.mrb[0].mxu0 %v2138
  %v2300 = vpop.f32.mrb[0].mxu0
  %v2301 = vadd.f32 %v2160, %v2300
  %v2302 = vpop.f32.mrb[0].mxu0
  %v2303 = vpop.f32.mrb[0].mxu0
  %v2304 = vadd.f32 %v2160, %v2303
  %v2305 = vpop.f32.mrb[0].mxu0
  %2306 = vdwg.mxu0
  %2307 = vst [vmem:[%s7] sm:$0xff] %v2245
  %2308 = vst [vmem:[%s7 + $0x8] sm:$0xff] %v2248
  %2309 = vst [vmem:[%s7 + $0x10] sm:$0xff] %v2253
  %2310 = vst [vmem:[%s7 + $0x18] sm:$0xff] %v2256
  %2311 = vst [vmem:[%s7 + $0x20] sm:$0xff] %v2261
  %2312 = vst [vmem:[%s7 + $0x28] sm:$0xff] %v2264
  %2313 = vst [vmem:[%s7 + $0x30] sm:$0xff] %v2269
  %2314 = vst [vmem:[%s7 + $0x38] sm:$0xff] %v2272
  %2315 = vst [vmem:[%s7 + $0x40] sm:$0xff] %v2277
  %2316 = vst [vmem:[%s7 + $0x48] sm:$0xff] %v2280
  %2317 = vst [vmem:[%s7 + $0x50] sm:$0xff] %v2285
  %2318 = vst [vmem:[%s7 + $0x58] sm:$0xff] %v2288
  %2319 = vst [vmem:[%s7 + $0x60] sm:$0xff] %v2293
  %2320 = vst [vmem:[%s7 + $0x68] sm:$0xff] %v2296
  %2321 = vst [vmem:[%s7 + $0x70] sm:$0xff] %v2301
  %2322 = vst [vmem:[%s7 + $0x78] sm:$0xff] %v2304
  // Predicated region
  $region30: #{faster_rcnn_forward.2} parent=0 // pred_check
    _
  $region31: #{faster_rcnn_forward.2} parent=0 // pred_check_branch
    %2324 = sbr.rel (0) target = $region33
  $region32: #{faster_rcnn_forward.2} parent=0 // pred_region
    _
  $region33: #{faster_rcnn_forward.2} parent=0 // pred_fallthru
    _
  // Predicated region
  $region34: #{faster_rcnn_forward.2} parent=0 // pred_check
    _
  $region35: #{faster_rcnn_forward.2} parent=0 // pred_check_branch
    %2326 = sbr.rel (0) target = $region37
  $region36: #{faster_rcnn_forward.2} parent=0 // pred_region
    _
  $region37: #{faster_rcnn_forward.2} parent=0 // pred_fallthru
    _
  // Predicated region
  $region38: #{faster_rcnn_forward.2} parent=0 // pred_check
    _
  $region39: #{faster_rcnn_forward.2} parent=0 // pred_check_branch
    %2328 = sbr.rel (0) target = $region41
  $region40: #{faster_rcnn_forward.2} parent=0 // pred_region
    _
  $region41: #{faster_rcnn_forward.2} parent=0 // pred_fallthru
    _
  // Predicated region
  $region42: #{faster_rcnn_forward.2} parent=0 // pred_check
    _
  $region43: #{faster_rcnn_forward.2} parent=0 // pred_check_branch
    %2330 = sbr.rel (0) target = $region45
  $region44: #{faster_rcnn_forward.2} parent=0 // pred_region
    _
  $region45: #{faster_rcnn_forward.2} parent=0 // pred_fallthru
    _

// kernel: faster_rcnn_forward.3
$region0: #{faster_rcnn_forward.3}
  #allocation0 [shape = 'u32[]', space=smem, size = 0x4, offset = 0x4, fixed_abs, tag = 'smem constant byte address 0x4 - core index']
  #allocation1 [shape = 'u32[144,128]{1,0:T(1,128)}', space=vmem, size = 0x12000, scoped, tag = 'internal scratch']
  %s0 = inlined_call_operand.vmem [shape: bf16[32,256], index: 0, kind: input, shape index: {}]
  %s1 = inlined_call_operand.vmem [shape: bf16[256,128], index: 1, kind: input, shape index: {}]
  %s2 = inlined_call_operand.vmem [shape: f32[1,128], index: 2, kind: input, shape index: {}]
  %s3 = inlined_call_operand.vmem [shape: bf16[128,128], index: 3, kind: input, shape index: {}]
  %s4 = inlined_call_operand.vmem [shape: f32[1,128], index: 4, kind: input, shape index: {}]
  %s5 = inlined_call_operand.vmem [shape: f32[3,9,128], index: 5, kind: input, shape index: {}]
  %s6 = inlined_call_operand.vmem [shape: f32[3,36,128], index: 6, kind: input, shape index: {}]
  %s7 = inlined_call_operand.vmem [shape: f32[3,32,128], index: 7, kind: input, shape index: {}]
  %s8 = inlined_call_operand.hbm [shape: f32[1,1], index: 8, kind: output, shape index: {}]
  %s9 = sld [smem:[#allocation0]]
  $region42: #{faster_rcnn_forward.3} parent=0
    _
  %s11 = ssub.s32 1, %s9
  %s12 = scalar_select 0, %s11, %s9
  $region1: #{faster_rcnn_forward.3} parent=0
    #allocation2 [shape = 'u8[512]{0}', space=smem, size = 0x200, scoped, tag = 'output window, operand 0, single buffered']
    #allocation3 [shape = 's32[1]{0}', space=sflag, size = 0x4, scoped, tag = 'scoped memory for faster_rcnn_forward.3']
    %13 = vsyncpa [#allocation3], 0
    // Predicated region
    $region2: #{faster_rcnn_forward.3} parent=1 // pred_check
      _
    $region3: #{faster_rcnn_forward.3} parent=1 // pred_check_branch
      %15 = sbr.rel (0) target = $region5
    $region4: #{faster_rcnn_forward.3} parent=1 // pred_region
      _
    $region5: #{faster_rcnn_forward.3} parent=1 // pred_fallthru
      _
    // Predicated region
    $region6: #{faster_rcnn_forward.3} parent=1 // pred_check
      _
    $region7: #{faster_rcnn_forward.3} parent=1 // pred_check_branch
      %17 = sbr.rel (0) target = $region9
    $region8: #{faster_rcnn_forward.3} parent=1 // pred_region
      _
    $region9: #{faster_rcnn_forward.3} parent=1 // pred_fallthru
      _
    // Predicated region
    $region10: #{faster_rcnn_forward.3} parent=1 // pred_check
      _
    $region11: #{faster_rcnn_forward.3} parent=1 // pred_check_branch
      %19 = sbr.rel (0) target = $region13
    $region12: #{faster_rcnn_forward.3} parent=1 // pred_region
      _
    $region13: #{faster_rcnn_forward.3} parent=1 // pred_fallthru
      _
    // Predicated region
    $region14: #{faster_rcnn_forward.3} parent=1 // pred_check
      _
    $region15: #{faster_rcnn_forward.3} parent=1 // pred_check_branch
      %21 = sbr.rel (0) target = $region17
    $region16: #{faster_rcnn_forward.3} parent=1 // pred_region
      _
    $region17: #{faster_rcnn_forward.3} parent=1 // pred_fallthru
      _
    // Predicated region
    $region18: #{faster_rcnn_forward.3} parent=1 // pred_check
      _
    $region19: #{faster_rcnn_forward.3} parent=1 // pred_check_branch
      %23 = sbr.rel (0) target = $region21
    $region20: #{faster_rcnn_forward.3} parent=1 // pred_region
      _
    $region21: #{faster_rcnn_forward.3} parent=1 // pred_fallthru
      _
    // Predicated region
    $region22: #{faster_rcnn_forward.3} parent=1 // pred_check
      _
    $region23: #{faster_rcnn_forward.3} parent=1 // pred_check_branch
      %25 = sbr.rel (0) target = $region25
    $region24: #{faster_rcnn_forward.3} parent=1 // pred_region
      _
    $region25: #{faster_rcnn_forward.3} parent=1 // pred_fallthru
      _
    // Predicated region
    $region26: #{faster_rcnn_forward.3} parent=1 // pred_check
      _
    $region27: #{faster_rcnn_forward.3} parent=1 // pred_check_branch
      %27 = sbr.rel (0) target = $region29
    $region28: #{faster_rcnn_forward.3} parent=1 // pred_region
      _
    $region29: #{faster_rcnn_forward.3} parent=1 // pred_fallthru
      _
    // Predicated region
    $region30: #{faster_rcnn_forward.3} parent=1 // pred_check
      _
    $region31: #{faster_rcnn_forward.3} parent=1 // pred_check_branch
      %29 = sbr.rel (0) target = $region33
    $region32: #{faster_rcnn_forward.3} parent=1 // pred_region
      _
    $region33: #{faster_rcnn_forward.3} parent=1 // pred_fallthru
      _
    %v31 = vld [vmem:[%s0] sm:$0xff]
    %v32 = vld [vmem:[%s0 + $0x8] sm:$0xff]
    %v33 = vld [vmem:[%s0 + $0x10] sm:$0xff]
    %v34 = vld [vmem:[%s0 + $0x18] sm:$0xff]
    %v35 = vld [vmem:[%s1] sm:$0xf]
    %v36 = vld [vmem:[%s1 + $0x4] sm:$0xf]
    %v37 = vld [vmem:[%s1 + $0x8] sm:$0xf]
    %v38 = vld [vmem:[%s1 + $0xc] sm:$0xf]
    %v39 = vld [vmem:[%s1 + $0x10] sm:$0xf]
    %v40 = vld [vmem:[%s1 + $0x14] sm:$0xf]
    %v41 = vld [vmem:[%s1 + $0x18] sm:$0xf]
    %v42 = vld [vmem:[%s1 + $0x1c] sm:$0xf]
    %v43 = vld [vmem:[%s1 + $0x20] sm:$0xf]
    %v44 = vld [vmem:[%s1 + $0x24] sm:$0xf]
    %v45 = vld [vmem:[%s1 + $0x28] sm:$0xf]
    %v46 = vld [vmem:[%s1 + $0x2c] sm:$0xf]
    %v47 = vld [vmem:[%s1 + $0x30] sm:$0xf]
    %v48 = vld [vmem:[%s1 + $0x34] sm:$0xf]
    %v49 = vld [vmem:[%s1 + $0x38] sm:$0xf]
    %v50 = vld [vmem:[%s1 + $0x3c] sm:$0xf]
    %v51 = vld [vmem:[%s1 + $0x40] sm:$0xf]
    %v52 = vld [vmem:[%s1 + $0x44] sm:$0xf]
    %v53 = vld [vmem:[%s1 + $0x48] sm:$0xf]
    %v54 = vld [vmem:[%s1 + $0x4c] sm:$0xf]
    %v55 = vld [vmem:[%s1 + $0x50] sm:$0xf]
    %v56 = vld [vmem:[%s1 + $0x54] sm:$0xf]
    %v57 = vld [vmem:[%s1 + $0x58] sm:$0xf]
    %v58 = vld [vmem:[%s1 + $0x5c] sm:$0xf]
    %v59 = vld [vmem:[%s1 + $0x60] sm:$0xf]
    %v60 = vld [vmem:[%s1 + $0x64] sm:$0xf]
    %v61 = vld [vmem:[%s1 + $0x68] sm:$0xf]
    %v62 = vld [vmem:[%s1 + $0x6c] sm:$0xf]
    %v63 = vld [vmem:[%s1 + $0x70] sm:$0xf]
    %v64 = vld [vmem:[%s1 + $0x74] sm:$0xf]
    %v65 = vld [vmem:[%s1 + $0x78] sm:$0xf]
    %v66 = vld [vmem:[%s1 + $0x7c] sm:$0xf]
    %v67 = vld [vmem:[%s2] sm:$0x1]
    %v69 = vlaneseq
    %v70 = vshrl.u32 %v69, 7
    %v71 = vsub.s32 0, %v70
    %v72 = vrot.slane %v67, %v71
    %v78 = vunpack.c.l.b16 %v31
    %v79 = vunpack.c.h.b16 %v31
    %v80 = vunpack.c.l.b16 %v32
    %v81 = vunpack.c.h.b16 %v32
    %v82 = vunpack.c.l.b16 %v33
    %v83 = vunpack.c.h.b16 %v33
    %v84 = vunpack.c.l.b16 %v34
    %v85 = vunpack.c.h.b16 %v34
    %v86 = vpack.c.b16 %v80, %v78
    %v87 = vpack.c.b16 %v81, %v79
    %v88 = vpack.c.b16 %v84, %v82
    %v89 = vpack.c.b16 %v85, %v83
    %v126 = vunpack.c.l.b16 %v35
    %v127 = vunpack.c.l.b16 %v36
    %v128 = vunpack.c.l.b16 %v37
    %v129 = vunpack.c.l.b16 %v38
    %v130 = vunpack.c.l.b16 %v39
    %v131 = vunpack.c.l.b16 %v40
    %v132 = vunpack.c.l.b16 %v41
    %v133 = vunpack.c.l.b16 %v42
    %v134 = vunpack.c.l.b16 %v43
    %v135 = vunpack.c.l.b16 %v44
    %v136 = vunpack.c.l.b16 %v45
    %v137 = vunpack.c.l.b16 %v46
    %v138 = vunpack.c.l.b16 %v47
    %v139 = vunpack.c.l.b16 %v48
    %v140 = vunpack.c.l.b16 %v49
    %v141 = vunpack.c.l.b16 %v50
    %v142 = vunpack.c.l.b16 %v51
    %v143 = vunpack.c.l.b16 %v52
    %v144 = vunpack.c.l.b16 %v53
    %v145 = vunpack.c.l.b16 %v54
    %v146 = vunpack.c.l.b16 %v55
    %v147 = vunpack.c.l.b16 %v56
    %v148 = vunpack.c.l.b16 %v57
    %v149 = vunpack.c.l.b16 %v58
    %v150 = vunpack.c.l.b16 %v59
    %v151 = vunpack.c.l.b16 %v60
    %v152 = vunpack.c.l.b16 %v61
    %v153 = vunpack.c.l.b16 %v62
    %v154 = vunpack.c.l.b16 %v63
    %v155 = vunpack.c.l.b16 %v64
    %v156 = vunpack.c.l.b16 %v65
    %v157 = vunpack.c.l.b16 %v66
    %v158 = vpack.c.b16 %v127, %v126
    %v159 = vpack.c.b16 %v129, %v128
    %v160 = vpack.c.b16 %v131, %v130
    %v161 = vpack.c.b16 %v133, %v132
    %v162 = vpack.c.b16 %v135, %v134
    %v163 = vpack.c.b16 %v137, %v136
    %v164 = vpack.c.b16 %v139, %v138
    %v165 = vpack.c.b16 %v141, %v140
    %v166 = vpack.c.b16 %v143, %v142
    %v167 = vpack.c.b16 %v145, %v144
    %v168 = vpack.c.b16 %v147, %v146
    %v169 = vpack.c.b16 %v149, %v148
    %v170 = vpack.c.b16 %v151, %v150
    %v171 = vpack.c.b16 %v153, %v152
    %v172 = vpack.c.b16 %v155, %v154
    %v173 = vpack.c.b16 %v157, %v156
    %190 = vmatprep.subr.bf16.mxu0 0
    %191 = vmatpush1.bf16.msra.mxu0 %v158
    %192 = vmatprep.subr.bf16.mxu0 0
    %193 = vmatpush1.bf16.msra.mxu0 %v159
    %194 = vmatprep.subr.bf16.mxu0 0
    %195 = vmatpush1.bf16.msra.mxu0 %v160
    %196 = vmatprep.subr.bf16.mxu0 0
    %197 = vmatpush1.bf16.msra.mxu0 %v161
    %198 = vmatprep.subr.bf16.mxu0 0
    %199 = vmatpush1.bf16.msra.mxu0 %v162
    %200 = vmatprep.subr.bf16.mxu0 0
    %201 = vmatpush1.bf16.msra.mxu0 %v163
    %202 = vmatprep.subr.bf16.mxu0 0
    %203 = vmatpush1.bf16.msra.mxu0 %v164
    %204 = vmatprep.subr.bf16.mxu0 0
    %205 = vmatpush1.bf16.msra.mxu0 %v165
    %206 = vmatprep.subr.bf16.mxu0 0
    %207 = vmatpush1.bf16.msra.mxu0 %v166
    %208 = vmatprep.subr.bf16.mxu0 0
    %209 = vmatpush1.bf16.msra.mxu0 %v167
    %210 = vmatprep.subr.bf16.mxu0 0
    %211 = vmatpush1.bf16.msra.mxu0 %v168
    %212 = vmatprep.subr.bf16.mxu0 0
    %213 = vmatpush1.bf16.msra.mxu0 %v169
    %214 = vmatprep.subr.bf16.mxu0 0
    %215 = vmatpush1.bf16.msra.mxu0 %v170
    %216 = vmatprep.subr.bf16.mxu0 0
    %217 = vmatpush1.bf16.msra.mxu0 %v171
    %218 = vmatprep.subr.bf16.mxu0 0
    %219 = vmatpush1.bf16.msra.mxu0 %v172
    %220 = vmatprep.subr.bf16.mxu0 0
    %221 = vmatpush1.bf16.msra.mxu0 %v173
    %222 = vmatprep.mubr.bf16.mxu0 %v87
    %223 = vmatmul.mubr.bf16.gmra.mrb[0].mxu0 %v86
    %v224 = vpop.f32.mrb[0].mxu0
    %v225 = vadd.f32 %v72, %v224
    %v226 = vpop.f32.mrb[0].mxu0
    %v227 = vpop.f32.mrb[0].mxu0
    %v228 = vadd.f32 %v72, %v227
    %v229 = vpop.f32.mrb[0].mxu0
    %230 = vmatprep.mubr.bf16.mxu0 %v89
    %231 = vmatmul.mubr.bf16.gmra.mrb[0].mxu0 %v88
    %v232 = vpop.f32.mrb[0].mxu0
    %v233 = vadd.f32 %v72, %v232
    %v234 = vpop.f32.mrb[0].mxu0
    %v235 = vpop.f32.mrb[0].mxu0
    %v236 = vadd.f32 %v72, %v235
    %v237 = vpop.f32.mrb[0].mxu0
    %238 = vdwg.mxu0
    %v239 = vmax.f32 %v225, 0.0
    %v240 = vmax.f32 %v228, 0.0
    %v241 = vmax.f32 %v233, 0.0
    %v242 = vmax.f32 %v236, 0.0
    %v243 = vpack.c.bf16 %v240, %v239
    %v244 = vpack.c.bf16 %v242, %v241
    %v245 = vld [vmem:[%s3] sm:$0xf]
    %v246 = vld [vmem:[%s3 + $0x4] sm:$0xf]
    %v247 = vld [vmem:[%s3 + $0x8] sm:$0xf]
    %v248 = vld [vmem:[%s3 + $0xc] sm:$0xf]
    %v249 = vld [vmem:[%s3 + $0x10] sm:$0xf]
    %v250 = vld [vmem:[%s3 + $0x14] sm:$0xf]
    %v251 = vld [vmem:[%s3 + $0x18] sm:$0xf]
    %v252 = vld [vmem:[%s3 + $0x1c] sm:$0xf]
    %v253 = vld [vmem:[%s3 + $0x20] sm:$0xf]
    %v254 = vld [vmem:[%s3 + $0x24] sm:$0xf]
    %v255 = vld [vmem:[%s3 + $0x28] sm:$0xf]
    %v256 = vld [vmem:[%s3 + $0x2c] sm:$0xf]
    %v257 = vld [vmem:[%s3 + $0x30] sm:$0xf]
    %v258 = vld [vmem:[%s3 + $0x34] sm:$0xf]
    %v259 = vld [vmem:[%s3 + $0x38] sm:$0xf]
    %v260 = vld [vmem:[%s3 + $0x3c] sm:$0xf]
    %v261 = vld [vmem:[%s4] sm:$0x1]
    %v263 = vlaneseq
    %v264 = vshrl.u32 %v263, 7
    %v265 = vsub.s32 0, %v264
    %v266 = vrot.slane %v261, %v265
    %v284 = vunpack.c.l.b16 %v245
    %v285 = vunpack.c.l.b16 %v246
    %v286 = vunpack.c.l.b16 %v247
    %v287 = vunpack.c.l.b16 %v248
    %v288 = vunpack.c.l.b16 %v249
    %v289 = vunpack.c.l.b16 %v250
    %v290 = vunpack.c.l.b16 %v251
    %v291 = vunpack.c.l.b16 %v252
    %v292 = vunpack.c.l.b16 %v253
    %v293 = vunpack.c.l.b16 %v254
    %v294 = vunpack.c.l.b16 %v255
    %v295 = vunpack.c.l.b16 %v256
    %v296 = vunpack.c.l.b16 %v257
    %v297 = vunpack.c.l.b16 %v258
    %v298 = vunpack.c.l.b16 %v259
    %v299 = vunpack.c.l.b16 %v260
    %v300 = vpack.c.b16 %v285, %v284
    %v301 = vpack.c.b16 %v287, %v286
    %v302 = vpack.c.b16 %v289, %v288
    %v303 = vpack.c.b16 %v291, %v290
    %v304 = vpack.c.b16 %v293, %v292
    %v305 = vpack.c.b16 %v295, %v294
    %v306 = vpack.c.b16 %v297, %v296
    %v307 = vpack.c.b16 %v299, %v298
    %316 = vmatprep.subr.bf16.mxu0 0
    %317 = vmatpush1.bf16.msra.mxu0 %v300
    %318 = vmatprep.subr.bf16.mxu0 0
    %319 = vmatpush1.bf16.msra.mxu0 %v301
    %320 = vmatprep.subr.bf16.mxu0 0
    %321 = vmatpush1.bf16.msra.mxu0 %v302
    %322 = vmatprep.subr.bf16.mxu0 0
    %323 = vmatpush1.bf16.msra.mxu0 %v303
    %324 = vmatprep.subr.bf16.mxu0 0
    %325 = vmatpush1.bf16.msra.mxu0 %v304
    %326 = vmatprep.subr.bf16.mxu0 0
    %327 = vmatpush1.bf16.msra.mxu0 %v305
    %328 = vmatprep.subr.bf16.mxu0 0
    %329 = vmatpush1.bf16.msra.mxu0 %v306
    %330 = vmatprep.subr.bf16.mxu0 0
    %331 = vmatpush1.bf16.msra.mxu0 %v307
    %332 = vmatprep.subr.bf16.mxu0 0
    %333 = vmatpush1.bf16.msra.mxu0 0
    %334 = vmatprep.subr.bf16.mxu0 0
    %335 = vmatpush1.bf16.msra.mxu0 0
    %336 = vmatprep.subr.bf16.mxu0 0
    %337 = vmatpush1.bf16.msra.mxu0 0
    %338 = vmatprep.subr.bf16.mxu0 0
    %339 = vmatpush1.bf16.msra.mxu0 0
    %340 = vmatprep.subr.bf16.mxu0 0
    %341 = vmatpush1.bf16.msra.mxu0 0
    %342 = vmatprep.subr.bf16.mxu0 0
    %343 = vmatpush1.bf16.msra.mxu0 0
    %344 = vmatprep.subr.bf16.mxu0 0
    %345 = vmatpush1.bf16.msra.mxu0 0
    %346 = vmatprep.subr.bf16.mxu0 0
    %347 = vmatpush1.bf16.msra.mxu0 0
    %348 = vmatprep.mubr.bf16.mxu0 0
    %349 = vmatmul.mubr.bf16.gmra.mrb[0].mxu0 %v243
    %v350 = vpop.f32.mrb[0].mxu0
    %v351 = vadd.f32 %v266, %v350
    %v352 = vpop.f32.mrb[0].mxu0
    %v353 = vpop.f32.mrb[0].mxu0
    %v354 = vadd.f32 %v266, %v353
    %v355 = vpop.f32.mrb[0].mxu0
    %356 = vmatprep.mubr.bf16.mxu0 0
    %357 = vmatmul.mubr.bf16.gmra.mrb[0].mxu0 %v244
    %v358 = vpop.f32.mrb[0].mxu0
    %v359 = vadd.f32 %v266, %v358
    %v360 = vpop.f32.mrb[0].mxu0
    %v361 = vpop.f32.mrb[0].mxu0
    %v362 = vadd.f32 %v266, %v361
    %v363 = vpop.f32.mrb[0].mxu0
    %364 = vdwg.mxu0
    %v365 = vld [vmem:[%s5] sm:$0xff]
    %v366 = vld [vmem:[%s5 + $0x8] sm:$0x1]
    %s367 = scalar_lea.vmem %s5, 16
    %v368 = vld [vmem:[%s367] sm:$0xff]
    %v369 = vld [vmem:[%s367 + $0x8] sm:$0x1]
    %s370 = scalar_lea.vmem %s5, 32
    %v371 = vld [vmem:[%s370] sm:$0xff]
    %v372 = vld [vmem:[%s370 + $0x8] sm:$0x1]
    %v373 = vmax.f32 %v365, 0.0
    %v374 = vmax.f32 %v366, 0.0
    %v375 = vmul.f32 %v365, %v368
    %v376 = vmul.f32 %v366, %v369
    %v377 = vsub.f32 %v373, %v375
    %v378 = vsub.f32 %v374, %v376
    %v379 = vand.u32 2147483647, %v365
    %v380 = vand.u32 2147483647, %v366
    %v381 = vsub.f32 0.0, %v379
    %v382 = vsub.f32 0.0, %v380
    %v383 = vmul.f32 %v381, 1.442695
    %v384 = vpow.pop %v383
    %v385 = vmul.f32 %v382, 1.442695
    %v386 = vpow.pop %v385
    %v387 = vadd.f32 %v384, 1.0
    %v388 = vadd.f32 %v386, 1.0
    %v389 = vlog2.pop %v387
    %v390 = vmul.f32 %v389, 0.6931472
    %v391 = vlog2.pop %v388
    %v392 = vmul.f32 %v391, 0.6931472
    %v393 = vadd.f32 %v377, %v390
    %v394 = vadd.f32 %v378, %v392
    %vm395 = vcmask 1040384
    %v396 = vsel %vm395, %v372, 0.0
    %v397 = vadd.f32 %v371, %v396
    %398 = vadd.xlane.f32.xlu0 %v397
    %v399 = vpop.xlane.xlu0 %398
    %v400 = vrot.slane %v399, 4
    %v401 = vadd.f32 %v399, %v400
    %v402 = vrot.slane %v401, 2
    %v403 = vadd.f32 %v401, %v402
    %v404 = vrot.slane %v403, 1
    %v405 = vadd.f32 %v403, %v404
    %s406 = vtos %v405
    %s407 = smax.f32 %s406, 1.0
    %v408 = vmul.f32 %v393, %v371
    %v409 = vmul.f32 %v394, %v372
    %v410 = vsel %vm395, %v409, 0.0
    %v411 = vadd.f32 %v408, %v410
    %412 = vadd.xlane.f32.xlu0 %v411
    %v413 = vpop.xlane.xlu0 %412
    %v414 = vrot.slane %v413, 4
    %v415 = vadd.f32 %v413, %v414
    %v416 = vrot.slane %v415, 2
    %v417 = vadd.f32 %v415, %v416
    %v418 = vrot.slane %v417, 1
    %v419 = vadd.f32 %v417, %v418
    %s420 = vtos %v419
    %v421 = vstv %s407
    %v422 = vrcp.pop %v421
    %s423 = vtos %v422
    %s424 = smul.f32 %s420, %s423
    %v425 = vld [vmem:[%s6] sm:$0xff]
    %v426 = vld [vmem:[%s6 + $0x8] sm:$0xff]
    %v427 = vld [vmem:[%s6 + $0x10] sm:$0xff]
    %v428 = vld [vmem:[%s6 + $0x18] sm:$0xff]
    %v429 = vld [vmem:[%s6 + $0x20] sm:$0xf]
    %s430 = scalar_lea.vmem %s6, 40
    %v431 = vld [vmem:[%s430] sm:$0xff]
    %v432 = vld [vmem:[%s430 + $0x8] sm:$0xff]
    %v433 = vld [vmem:[%s430 + $0x10] sm:$0xff]
    %v434 = vld [vmem:[%s430 + $0x18] sm:$0xff]
    %v435 = vld [vmem:[%s430 + $0x20] sm:$0xf]
    %v436 = vsub.f32 %v425, %v431
    %v437 = vsub.f32 %v426, %v432
    %v438 = vsub.f32 %v427, %v433
    %v439 = vsub.f32 %v428, %v434
    %v440 = vsub.f32 %v429, %v435
    %v441 = vand.u32 2147483647, %v436
    %v442 = vand.u32 2147483647, %v437
    %v443 = vand.u32 2147483647, %v438
    %v444 = vand.u32 2147483647, %v439
    %v445 = vand.u32 2147483647, %v440
    %s446 = scalar_lea.vmem %s6, 80
    %v447 = vld [vmem:[%s446] sm:$0xff]
    %v448 = vld [vmem:[%s446 + $0x8] sm:$0xff]
    %v449 = vld [vmem:[%s446 + $0x10] sm:$0xff]
    %v450 = vld [vmem:[%s446 + $0x18] sm:$0xff]
    %v451 = vld [vmem:[%s446 + $0x20] sm:$0xf]
    %vm452 = vcmp.lt.f32.partialorder %v441, 1.0
    %vm453 = vcmp.lt.f32.partialorder %v442, 1.0
    %vm454 = vcmp.lt.f32.partialorder %v443, 1.0
    %vm455 = vcmp.lt.f32.partialorder %v444, 1.0
    %vm456 = vcmp.lt.f32.partialorder %v445, 1.0
    %v457 = vmul.f32 %v441, 0.5
    %v458 = vmul.f32 %v442, 0.5
    %v459 = vmul.f32 %v443, 0.5
    %v460 = vmul.f32 %v444, 0.5
    %v461 = vmul.f32 %v445, 0.5
    %v462 = vmul.f32 %v457, %v441
    %v463 = vmul.f32 %v458, %v442
    %v464 = vmul.f32 %v459, %v443
    %v465 = vmul.f32 %v460, %v444
    %v466 = vmul.f32 %v461, %v445
    %v467 = vsub.f32 %v441, 0.5
    %v468 = vsub.f32 %v442, 0.5
    %v469 = vsub.f32 %v443, 0.5
    %v470 = vsub.f32 %v444, 0.5
    %v471 = vsub.f32 %v445, 0.5
    %v472 = vsel %vm452, %v462, %v467
    %v473 = vsel %vm453, %v463, %v468
    %v474 = vsel %vm454, %v464, %v469
    %v475 = vsel %vm455, %v465, %v470
    %v476 = vsel %vm456, %v466, %v471
    %v477 = vmul.f32 %v472, %v447
    %v478 = vmul.f32 %v473, %v448
    %v479 = vmul.f32 %v474, %v449
    %v480 = vmul.f32 %v475, %v450
    %v481 = vmul.f32 %v476, %v451
    %v482 = vadd.f32 %v477, %v478
    %v483 = vadd.f32 %v482, %v479
    %v484 = vadd.f32 %v483, %v480
    %vm485 = vcmask 1043456
    %v486 = vsel %vm485, %v481, 0.0
    %v487 = vadd.f32 %v484, %v486
    %488 = vadd.xlane.f32.xlu0 %v487
    %v489 = vpop.xlane.xlu0 %488
    %v490 = vrot.slane %v489, 4
    %v491 = vadd.f32 %v489, %v490
    %v492 = vrot.slane %v491, 2
    %v493 = vadd.f32 %v491, %v492
    %v494 = vrot.slane %v493, 1
    %v495 = vadd.f32 %v493, %v494
    %s496 = vtos %v495
    %v497 = vadd.f32 %v447, %v448
    %v498 = vadd.f32 %v497, %v449
    %v499 = vadd.f32 %v498, %v450
    %v500 = vsel %vm485, %v451, 0.0
    %v501 = vadd.f32 %v499, %v500
    %502 = vadd.xlane.f32.xlu0 %v501
    %v503 = vpop.xlane.xlu0 %502
    %v504 = vrot.slane %v503, 4
    %v505 = vadd.f32 %v503, %v504
    %v506 = vrot.slane %v505, 2
    %v507 = vadd.f32 %v505, %v506
    %v508 = vrot.slane %v507, 1
    %v509 = vadd.f32 %v507, %v508
    %s510 = vtos %v509
    %s511 = smul.f32 %s510, 0.25
    %s512 = smax.f32 %s511, 1.0
    %s513 = smul.f32 %s512, 4.0
    %v514 = vstv %s513
    %v515 = vrcp.pop %v514
    %s516 = vtos %v515
    %s517 = smul.f32 %s496, %s516
    %v518 = vlaneseq
    %v519 = vand.u32 %v518, 127
    %vm520 = vcmp.lt.s32.totalorder %v519, 5
    %v521 = vsel %vm520, %v351, -1e+30
    %v522 = vsel %vm520, %v354, -1e+30
    %v523 = vsel %vm520, %v359, -1e+30
    %v524 = vsel %vm520, %v362, -1e+30
    %525 = vmax.xlane.f32.xlu0 %v521
    %v526 = vpop.xlane.xlu0 %525
    %527 = vmax.xlane.f32.xlu0 %v522
    %v528 = vpop.xlane.xlu0 %527
    %529 = vmax.xlane.f32.xlu0 %v523
    %v530 = vpop.xlane.xlu0 %529
    %531 = vmax.xlane.f32.xlu0 %v524
    %v532 = vpop.xlane.xlu0 %531
    %v533 = vsub.f32 %v521, %v526
    %v534 = vsub.f32 %v522, %v528
    %v535 = vsub.f32 %v523, %v530
    %v536 = vsub.f32 %v524, %v532
    %v537 = vmul.f32 %v533, 1.442695
    %v538 = vpow.pop %v537
    %v539 = vmul.f32 %v534, 1.442695
    %v540 = vpow.pop %v539
    %v541 = vmul.f32 %v535, 1.442695
    %v542 = vpow.pop %v541
    %v543 = vmul.f32 %v536, 1.442695
    %v544 = vpow.pop %v543
    %545 = vadd.xlane.f32.xlu0 %v538
    %v546 = vpop.xlane.xlu0 %545
    %547 = vadd.xlane.f32.xlu0 %v540
    %v548 = vpop.xlane.xlu0 %547
    %549 = vadd.xlane.f32.xlu0 %v542
    %v550 = vpop.xlane.xlu0 %549
    %551 = vadd.xlane.f32.xlu0 %v544
    %v552 = vpop.xlane.xlu0 %551
    %v553 = vlog2.pop %v546
    %v554 = vmul.f32 %v553, 0.6931472
    %v555 = vlog2.pop %v548
    %v556 = vmul.f32 %v555, 0.6931472
    %v557 = vlog2.pop %v550
    %v558 = vmul.f32 %v557, 0.6931472
    %v559 = vlog2.pop %v552
    %v560 = vmul.f32 %v559, 0.6931472
    %v561 = vadd.f32 %v526, %v554
    %v562 = vadd.f32 %v528, %v556
    %v563 = vadd.f32 %v530, %v558
    %v564 = vadd.f32 %v532, %v560
    %v565 = vld [vmem:[%s7] sm:$0xff]
    %v566 = vld [vmem:[%s7 + $0x8] sm:$0xff]
    %v567 = vld [vmem:[%s7 + $0x10] sm:$0xff]
    %v568 = vld [vmem:[%s7 + $0x18] sm:$0xff]
    %v569 = vmul.f32 %v565, %v351
    %v570 = vmul.f32 %v566, %v354
    %v571 = vmul.f32 %v567, %v359
    %v572 = vmul.f32 %v568, %v362
    %573 = vadd.xlane.f32.xlu0 %v569
    %v574 = vpop.xlane.xlu0 %573
    %575 = vadd.xlane.f32.xlu0 %v570
    %v576 = vpop.xlane.xlu0 %575
    %577 = vadd.xlane.f32.xlu0 %v571
    %v578 = vpop.xlane.xlu0 %577
    %579 = vadd.xlane.f32.xlu0 %v572
    %v580 = vpop.xlane.xlu0 %579
    %v581 = vsub.f32 %v561, %v574
    %v582 = vsub.f32 %v562, %v576
    %v583 = vsub.f32 %v563, %v578
    %v584 = vsub.f32 %v564, %v580
    %vm585 = vcmask 7168
    %v586 = vsel %vm585, %v581, 0.0
    %v587 = vsel %vm585, %v582, 0.0
    %v588 = vadd.f32 %v586, %v587
    %v589 = vsel %vm585, %v583, 0.0
    %v590 = vadd.f32 %v588, %v589
    %v591 = vsel %vm585, %v584, 0.0
    %v592 = vadd.f32 %v590, %v591
    %593 = vadd.xlane.f32.xlu0 %v592
    %v594 = vpop.xlane.xlu0 %593
    %v595 = vrot.slane %v594, 4
    %v596 = vadd.f32 %v594, %v595
    %v597 = vrot.slane %v596, 2
    %v598 = vadd.f32 %v596, %v597
    %v599 = vrot.slane %v598, 1
    %v600 = vadd.f32 %v598, %v599
    %s601 = vtos %v600
    %v602 = vrcp.pop 32.0
    %s603 = vtos %v602
    %s604 = smul.f32 %s601, %s603
    %s605 = scalar_lea.vmem %s7, 64
    %v606 = vld [vmem:[%s605] sm:$0xff]
    %v607 = vld [vmem:[%s605 + $0x8] sm:$0xff]
    %v608 = vld [vmem:[%s605 + $0x10] sm:$0xff]
    %v609 = vld [vmem:[%s605 + $0x18] sm:$0xff]
    %v610 = vsub.f32 %v351, %v606
    %v611 = vsub.f32 %v354, %v607
    %v612 = vsub.f32 %v359, %v608
    %v613 = vsub.f32 %v362, %v609
    %v614 = vand.u32 2147483647, %v610
    %v615 = vand.u32 2147483647, %v611
    %v616 = vand.u32 2147483647, %v612
    %v617 = vand.u32 2147483647, %v613
    %s618 = scalar_lea.vmem %s7, 32
    %v619 = vld [vmem:[%s618] sm:$0xff]
    %v620 = vld [vmem:[%s618 + $0x8] sm:$0xff]
    %v621 = vld [vmem:[%s618 + $0x10] sm:$0xff]
    %v622 = vld [vmem:[%s618 + $0x18] sm:$0xff]
    %vm623 = vcmp.lt.f32.partialorder %v614, 1.0
    %vm624 = vcmp.lt.f32.partialorder %v615, 1.0
    %vm625 = vcmp.lt.f32.partialorder %v616, 1.0
    %vm626 = vcmp.lt.f32.partialorder %v617, 1.0
    %v627 = vmul.f32 %v614, 0.5
    %v628 = vmul.f32 %v615, 0.5
    %v629 = vmul.f32 %v616, 0.5
    %v630 = vmul.f32 %v617, 0.5
    %v631 = vmul.f32 %v627, %v614
    %v632 = vmul.f32 %v628, %v615
    %v633 = vmul.f32 %v629, %v616
    %v634 = vmul.f32 %v630, %v617
    %v635 = vsub.f32 %v614, 0.5
    %v636 = vsub.f32 %v615, 0.5
    %v637 = vsub.f32 %v616, 0.5
    %v638 = vsub.f32 %v617, 0.5
    %v639 = vsel %vm623, %v631, %v635
    %v640 = vsel %vm624, %v632, %v636
    %v641 = vsel %vm625, %v633, %v637
    %v642 = vsel %vm626, %v634, %v638
    %v643 = vmul.f32 %v639, %v619
    %v644 = vmul.f32 %v640, %v620
    %v645 = vmul.f32 %v641, %v621
    %v646 = vmul.f32 %v642, %v622
    %v647 = vadd.f32 %v643, %v644
    %v648 = vadd.f32 %v647, %v645
    %v649 = vadd.f32 %v648, %v646
    %650 = vadd.xlane.f32.xlu0 %v649
    %v651 = vpop.xlane.xlu0 %650
    %v652 = vrot.slane %v651, 4
    %v653 = vadd.f32 %v651, %v652
    %v654 = vrot.slane %v653, 2
    %v655 = vadd.f32 %v653, %v654
    %v656 = vrot.slane %v655, 1
    %v657 = vadd.f32 %v655, %v656
    %s658 = vtos %v657
    %v659 = vadd.f32 %v619, %v620
    %v660 = vadd.f32 %v659, %v621
    %v661 = vadd.f32 %v660, %v622
    %662 = vadd.xlane.f32.xlu0 %v661
    %v663 = vpop.xlane.xlu0 %662
    %v664 = vrot.slane %v663, 4
    %v665 = vadd.f32 %v663, %v664
    %v666 = vrot.slane %v665, 2
    %v667 = vadd.f32 %v665, %v666
    %v668 = vrot.slane %v667, 1
    %v669 = vadd.f32 %v667, %v668
    %s670 = vtos %v669
    %s671 = smul.f32 %s670, 0.25
    %s672 = smax.f32 %s671, 1.0
    %s673 = smul.f32 %s672, 4.0
    %v674 = vstv %s673
    %v675 = vrcp.pop %v674
    %s676 = vtos %v675
    %s677 = smul.f32 %s658, %s676
    %s678 = sadd.f32 %s424, %s517
    %s679 = sadd.f32 %s678, %s604
    %s680 = sadd.f32 %s679, %s677
    %s681 = scalar_lea.smem [#allocation2], 0
    %682 = sst [smem:[%s681]] %s680
    // Predicated region
    $region34: #{faster_rcnn_forward.3} parent=1 // pred_check
      _
    $region35: #{faster_rcnn_forward.3} parent=1 // pred_check_branch
      %684 = sbr.rel (0) target = $region37
    $region36: #{faster_rcnn_forward.3} parent=1 // pred_region
      %s686 = ssub.s32 16, 16
      %687 = vsyncadd [#allocation3], %s686
      %690 = dma.smem_to_hbm [#allocation2], 16, %s8, [#allocation3]
    $region37: #{faster_rcnn_forward.3} parent=1 // pred_fallthru
      _
    // Predicated region
    $region38: #{faster_rcnn_forward.3} parent=1 // pred_check
      _
    $region39: #{faster_rcnn_forward.3} parent=1 // pred_check_branch
      %692 = sbr.rel (0) target = $region41
    $region40: #{faster_rcnn_forward.3} parent=1 // pred_region
      %693 = dma.done [#allocation3], 16
    $region41: #{faster_rcnn_forward.3} parent=1 // pred_fallthru
      _
    %694 = sfence
    %695 = vsyncpa [#allocation3], 1

</llo_original>
